<compile_context>
chip_gen: v6e
topology: v6e:2x2x1
jax: 0.10.0
libtpu: 0.0.40
codegen_flags: <defaults>
</compile_context>

<pallas_src>
import numpy as np
import jax
import jax.numpy as jnp
from jax.experimental import pallas as pl
from jax.experimental.pallas import tpu as pltpu


# ---------------------------------------------------------------------------- helpers

def _round_up(x, m):
    return ((x + m - 1) // m) * m


def _pick_row_tile(p):
    """Largest power-of-two divisor of p, capped at 512 rows (VMEM-friendly on v7x)."""
    t = 512
    while t > 8 and p % t != 0:
        t //= 2
    return t if p % t == 0 else p


# ---------------------------------------------------------------------------- Pallas kernels

def _proj_stats_kernel(x_ref, w1_ref, h_ref, sum_ref, ssq_ref):
    """1x1 conv (matmul, bf16 operands -> f32 acc) + running BN sum / sum-of-squares."""
    @pl.when(pl.program_id(0) == 0)
    def _():
        sum_ref[...] = jnp.zeros_like(sum_ref)
        ssq_ref[...] = jnp.zeros_like(ssq_ref)

    h = jnp.dot(x_ref[...], w1_ref[...], preferred_element_type=jnp.float32)
    h_ref[...] = h
    sum_ref[...] += jnp.sum(h, axis=0, keepdims=True)
    ssq_ref[...] += jnp.sum(h * h, axis=0, keepdims=True)


def _proj_stats_call(x_slab, w1_bf16, tp):
    p, cs = x_slab.shape
    cpad = w1_bf16.shape[1]
    return pl.pallas_call(
        _proj_stats_kernel,
        out_shape=(jax.ShapeDtypeStruct((p, cpad), jnp.float32),
                   jax.ShapeDtypeStruct((1, cpad), jnp.float32),
                   jax.ShapeDtypeStruct((1, cpad), jnp.float32)),
        grid=(p // tp,),
        in_specs=[pl.BlockSpec((tp, cs), lambda i: (i, 0)),
                  pl.BlockSpec((cs, cpad), lambda i: (0, 0))],
        out_specs=(pl.BlockSpec((tp, cpad), lambda i: (i, 0)),
                   pl.BlockSpec((1, cpad), lambda i: (0, 0)),
                   pl.BlockSpec((1, cpad), lambda i: (0, 0))),
        compiler_params=pltpu.CompilerParams(dimension_semantics=("arbitrary",)),
    )(x_slab, w1_bf16)


def _proj_finish_kernel(h_ref, sc_ref, sh_ref, w2_ref, out_ref):
    """BN apply + ReLU + second 1x1 conv (bf16 MXU) + per-pixel L2 normalize."""
    hn = jnp.maximum(h_ref[...] * sc_ref[...] + sh_ref[...], 0.0)
    y = jnp.dot(hn.astype(jnp.bfloat16), w2_ref[...], preferred_element_type=jnp.float32)
    ssq = jnp.sum(y * y, axis=1, keepdims=True)
    # F.normalize: x / max(||x||, 1e-12)  ==  x * rsqrt(max(||x||^2, 1e-24)) (EUP rsqrt)
    out_ref[...] = y * jax.lax.rsqrt(jnp.maximum(ssq, 1e-24))


def _proj_finish_call(h_slab, scale, shift, w2_bf16, tp):
    p, cpad = h_slab.shape
    return pl.pallas_call(
        _proj_finish_kernel,
        out_shape=jax.ShapeDtypeStruct((p, cpad), jnp.float32),
        grid=(p // tp,),
        in_specs=[pl.BlockSpec((tp, cpad), lambda i: (i, 0)),
                  pl.BlockSpec((1, cpad), lambda i: (0, 0)),
                  pl.BlockSpec((1, cpad), lambda i: (0, 0)),
                  pl.BlockSpec((cpad, cpad), lambda i: (0, 0))],
        out_specs=pl.BlockSpec((tp, cpad), lambda i: (i, 0)),
        compiler_params=pltpu.CompilerParams(dimension_semantics=("parallel",)),
    )(h_slab, scale, shift, w2_bf16)


def _l2norm_kernel(x_ref, out_ref):
    x = x_ref[...]
    ssq = jnp.sum(x * x, axis=1, keepdims=True)
    out_ref[...] = x * jax.lax.rsqrt(jnp.maximum(ssq, 1e-24))


def _l2norm_call(x_slab, tp):
    p, cpad = x_slab.shape
    return pl.pallas_call(
        _l2norm_kernel,
        out_shape=jax.ShapeDtypeStruct((p, cpad), jnp.float32),
        grid=(p // tp,),
        in_specs=[pl.BlockSpec((tp, cpad), lambda i: (i, 0))],
        out_specs=pl.BlockSpec((tp, cpad), lambda i: (i, 0)),
        compiler_params=pltpu.CompilerParams(dimension_semantics=("parallel",)),
    )(x_slab)


def _gram_kernel(t_ref, s_ref, gtt_ref, gss_ref):
    t = t_ref[0]
    s = s_ref[0]
    dims = (((1,), (1,)), ((), ()))                      # A @ A^T on the MXU
    gtt_ref[0] = jax.lax.dot_general(t, t, dims, preferred_element_type=jnp.float32)
    gss_ref[0] = jax.lax.dot_general(s, s, dims, preferred_element_type=jnp.float32)


def _gram_call(t_samp, s_samp):
    b, s_max, ch = t_samp.shape
    return pl.pallas_call(
        _gram_kernel,
        out_shape=(jax.ShapeDtypeStruct((b, s_max, s_max), jnp.float32),
                   jax.ShapeDtypeStruct((b, s_max, s_max), jnp.float32)),
        grid=(b,),
        in_specs=[pl.BlockSpec((1, s_max, ch), lambda i: (i, 0, 0)),
                  pl.BlockSpec((1, s_max, ch), lambda i: (i, 0, 0))],
        out_specs=(pl.BlockSpec((1, s_max, s_max), lambda i: (i, 0, 0)),
                   pl.BlockSpec((1, s_max, s_max), lambda i: (i, 0, 0))),
        compiler_params=pltpu.CompilerParams(dimension_semantics=("parallel",)),
    )(t_samp, s_samp)


def _make_kl_kernel(inv_temp):
    def _kl_kernel(tt_ref, ss_ref, w_ref, out_ref):
        w = w_ref[0]                                     # per-element weight; 0 => padding
        valid = w > 0.0
        neg = jnp.float32(-1e30)
        tt = jnp.where(valid, tt_ref[0] * inv_temp, neg)
        ss = jnp.where(valid, ss_ref[0] * inv_temp, neg)
        m_t = jnp.max(tt, axis=1, keepdims=True)
        e_t = jnp.exp(tt - m_t)
        z_t = jnp.sum(e_t, axis=1, keepdims=True)
        p = e_t * pl.reciprocal(z_t, approx=True)        # softmax(teacher), EUP reciprocal
        log_p = (tt - m_t) - jnp.log(z_t)
        m_s = jnp.max(ss, axis=1, keepdims=True)
        z_s = jnp.sum(jnp.exp(ss - m_s), axis=1, keepdims=True)
        log_q = (ss - m_s) - jnp.log(z_s)
        # w folds batchmean 1/d, the 1/col averaging and the T^2 factor.
        contrib = w * p * (log_p - log_q)
        total = jnp.sum(jnp.sum(contrib, axis=1, keepdims=True), axis=0, keepdims=True)
        out_ref[0] = total
    return _kl_kernel


def _kl_call(tt_ch, ss_ch, wch, inv_temp):
    b, k, d = tt_ch.shape
    return pl.pallas_call(
        _make_kl_kernel(float(inv_temp)),
        out_shape=jax.ShapeDtypeStruct((b, 1, 1), jnp.float32),
        grid=(b,),
        in_specs=[pl.BlockSpec((1, k, d), lambda i: (i, 0, 0)),
                  pl.BlockSpec((1, k, d), lambda i: (i, 0, 0)),
                  pl.BlockSpec((1, k, d), lambda i: (i, 0, 0))],
        out_specs=pl.BlockSpec((1, 1, 1), lambda i: (i, 0, 0)),
        compiler_params=pltpu.CompilerParams(dimension_semantics=("parallel",)),
    )(tt_ch, ss_ch, wch)


# ---------------------------------------------------------------------------- module

class GSKDBPallas:
    """Forward-only JAX/Pallas port of CIRKD's GSKDB loss (gskd_loss_B)."""

    def __init__(self, num_classes, ignore_label, temperature, N, S,
                 t_channel, s_channel, key):
        self.num_classes = num_classes
        self.ignore_label = ignore_label
        self.temperature = float(temperature)
        self.N = int(N)
        self.S = S
        self.t_channel = t_channel
        self.s_channel = s_channel
        self.ct_pad = max(128, _round_up(t_channel, 128))     # lane-dense channel padding
        self.s_max = self.N * num_classes                     # padded sampled-row count
        self.K_max, self.D_max = self._chunk_dims()

        # Deterministic synthetic project_head parameters (conv weights stored as (Cin, Cout)),
        # zero-padded to the lane-dense width: padded rows/cols contribute exactly 0.
        k1, k2 = jax.random.split(key, 2)
        w1 = jax.random.normal(k1, (s_channel, t_channel), jnp.float32) / jnp.sqrt(
            jnp.float32(s_channel))
        w2 = jax.random.normal(k2, (t_channel, t_channel), jnp.float32) / jnp.sqrt(
            jnp.float32(t_channel))
        self.w1p = jnp.zeros((s_channel, self.ct_pad), jnp.float32).at[:, :t_channel].set(w1)
        self.w2p = jnp.zeros((self.ct_pad, self.ct_pad), jnp.float32).at[
            :t_channel, :t_channel].set(w2)
        self.gamma = jnp.ones((1, self.ct_pad), jnp.float32)   # BN weight
        self.beta = jnp.zeros((1, self.ct_pad), jnp.float32)   # BN bias

        self._pipeline = jax.jit(self._device_pipeline)

    # ------------------------------------------------------------- config-derived bucket sizes
    def _chunk_dims(self):
        k_max, d_max = 1, 1
        for c in range(1, self.num_classes + 1):
            sample = self.N * c
            stride = int(-1 * self.S * c) if self.S < 0 else int(self.S)
            col = 0 if stride == 0 else sample // stride
            if col > 0:
                k = col + (1 if sample % stride != 0 else 0)
                d = sample * stride
            else:                                   # reference's full-matrix per-column path
                k, d = sample, sample
            k_max = max(k_max, k)
            d_max = max(d_max, d)
        return max(8, _round_up(k_max, 8)), max(128, _round_up(d_max, 128))

    # ------------------------------------------------------------- device pipeline (jitted)
    def _device_pipeline(self, s_feats, t_feats, w1p, w2p, gamma, beta, gidx, cidx, wch):
        cs, ct, cpad = self.s_channel, self.t_channel, self.ct_pad
        b, _, h, w = s_feats.shape
        p = b * h * w
        tp = _pick_row_tile(p)

        # channel-last pixel slabs (bf16 for the MXU-facing student input)
        x_slab = jnp.transpose(s_feats, (0, 2, 3, 1)).reshape(p, cs).astype(jnp.bfloat16)
        t_slab = jnp.transpose(t_feats, (0, 2, 3, 1)).reshape(p, ct)
        t_slab = jnp.pad(t_slab, ((0, 0), (0, cpad - ct)))

        # student: 1x1 conv + BN stats (pass A), then BN / ReLU / 1x1 conv / L2 (pass B)
        h_slab, h_sum, h_ssq = _proj_stats_call(x_slab, w1p.astype(jnp.bfloat16), tp)
        mean = h_sum / p
        var = h_ssq / p - mean * mean                       # biased variance (training BN)
        scale = gamma * jax.lax.rsqrt(var + 1e-5)
        shift = beta - mean * scale
        s_norm = _proj_finish_call(h_slab, scale, shift, w2p.astype(jnp.bfloat16), tp)

        # teacher: per-pixel L2 normalize
        t_norm = _l2norm_call(t_slab, tp)

        # reference's `0.0 * (students ** 2).mean()` fallback term
        zero_term = 0.0 * jnp.mean(jnp.square(s_norm[:, :ct]))

        # gather sampled rows (host-precomputed flat indices into the padded pixel-major slab;
        # reproduces the reference's raw .reshape(B,H,W,C) / .view(C,-1) scramble quirk)
        t_samp = jnp.take(t_norm.reshape(-1), gidx).astype(jnp.bfloat16)   # (B, s_max, Ct)
        s_samp = jnp.take(s_norm.reshape(-1), gidx).astype(jnp.bfloat16)

        # per-image Gram matrices (MXU)
        gtt, gss = _gram_call(t_samp, s_samp)                              # (B, s_max, s_max)

        # shuffled chunk gather -- device-side XLA gather driven by host-built index tables
        flat_idx = cidx.reshape(b, self.K_max * self.D_max)
        tt_ch = jnp.take_along_axis(gtt.reshape(b, -1), flat_idx, axis=1).reshape(
            b, self.K_max, self.D_max)
        ss_ch = jnp.take_along_axis(gss.reshape(b, -1), flat_idx, axis=1).reshape(
            b, self.K_max, self.D_max)

        # chunked softmax / log-softmax / KL(batchmean) * T^2, per image
        losses = _kl_call(tt_ch, ss_ch, wch, 1.0 / self.temperature)       # (B, 1, 1)
        return losses, zero_term

    # ------------------------------------------------------------- host-side sampling / tables
    def _host_sampling(self, t_pred_np, labels_np, b, h, w):
        n, ct, cpad = self.N, self.t_channel, self.ct_pad
        s_max, k_max, d_max = self.s_max, self.K_max, self.D_max
        hw = h * w

        # nearest-neighbour label downsample (F.interpolate(mode='nearest') on integer labels)
        in_h, in_w = labels_np.shape[1], labels_np.shape[2]
        ri = (np.arange(h) * in_h) // h
        ci = (np.arange(w) * in_w) // w
        lab = labels_np[:, ri[:, None], ci[None, :]].astype(np.int64)
        gt = (t_pred_np.astype(np.int64) == lab)             # True where prediction is correct

        gidx = np.zeros((b, s_max, ct), np.int64)
        cidx = np.zeros((b, k_max, d_max), np.int32)
        wch = np.zeros((b, k_max, d_max), np.float32)
        # TODO(synk): torch RNG stream is not reproducible; deterministic numpy replacement.
        rng = np.random.RandomState(0)
        last_valid = False
        early_return = False

        for bs in range(b):
            mask_flat = gt[bs].reshape(-1)
            pixflat = np.nonzero(mask_flat)[0]               # row-major masked pixel indices
            n_true = pixflat.shape[0]
            this_labels = lab[bs].reshape(-1)[pixflat]
            label_ids = [int(x) for x in np.unique(this_labels) if int(x) != self.ignore_label]

            sel_list = []
            wrong = 0
            for lb in label_ids:
                idxs = np.nonzero(this_labels == lb)[0]
                if idxs.size == 1:                           # torch .squeeze() 0-d case
                    wrong += 1
                    continue
                num_pixel = idxs.shape[0]
                perm = rng.permutation(num_pixel)
                k = min(num_pixel, n)
                if k == n:
                    sel = idxs[perm[:k]]
                else:
                    rand_idxs = np.ones(n_true, dtype=np.int64)
                    rand_idxs[idxs] = 0
                    rand_idxs = np.nonzero(rand_idxs)[0]
                    if rand_idxs.size == 1:                  # reference's early-return branch
                        early_return = True
                        break
                    rand_perm = rng.permutation(rand_idxs.shape[0])
                    sel = np.concatenate([idxs, rand_idxs[rand_perm[:n - k]]])
                sel_list.append(sel)
            if early_return:
                break

            valid = (wrong != len(label_ids)) and len(sel_list) > 0
            if bs == b - 1:
                last_valid = valid
            if not valid:
                continue

            c_valid = len(sel_list)
            sample = n * c_valid
            # Flat slab indices reproducing:
            #   keys.reshape(B,H,W,C)[bs][mask].view(C,-1)[:, sel].T
            sel_all = np.concatenate(sel_list)                           # (sample,)
            a = np.arange(ct)[None, :]                                   # (1, Ct)
            m = a * n_true + sel_all[:, None]                            # (sample, Ct)
            imgflat = pixflat[m // ct] * ct + (m % ct)                   # flat idx in (C,H,W) image
            c_orig = imgflat // hw
            pix = imgflat % hw
            gidx[bs, :sample, :] = (bs * hw + pix) * cpad + c_orig

            shuffle_map = np.argsort(rng.rand(sample, sample), axis=1)
            self._build_chunks(cidx[bs], wch[bs], shuffle_map, sample, c_valid)

        return gidx.astype(np.int32), cidx, wch, last_valid, early_return

    def _build_chunks(self, cidx_b, wch_b, shuffle_map, sample, c_valid):
        s_max = self.s_max
        t2 = self.temperature ** 2
        stride = int(-1 * self.S * c_valid) if self.S < 0 else int(self.S)
        col = 0 if stride == 0 else sample // stride
        rows = np.arange(sample)[:, None]
        if col > 0:
            for i in range(col):
                colsel = shuffle_map[:, i * stride:(i + 1) * stride]
                flat = (rows * s_max + colsel).reshape(-1)
                d = flat.shape[0]                                        # = sample * stride
                cidx_b[i, :d] = flat
                wch_b[i, :d] = t2 / (col * d)            # (1/col) * batchmean(1/d) * T^2
            if sample % stride != 0:                     # remainder chunk (weight 1, own denom)
                colsel = shuffle_map[:, col * stride:]
                flat = (rows * s_max + colsel).reshape(-1)
                d = flat.shape[0]
                cidx_b[col, :d] = flat
                wch_b[col, :d] = t2 / d
        else:
            # col == 0: reference softmaxes the full shuffled matrix over dim=0, batchmean /sample
            for c_i in range(sample):
                flat = rows[:, 0] * s_max + shuffle_map[:, c_i]
                cidx_b[c_i, :sample] = flat
                wch_b[c_i, :sample] = t2 / sample

    # ------------------------------------------------------------- forward
    def forward(self, t_predicts, s_feats, t_feats, labels):
        b, _, h, w = s_feats.shape
        assert t_feats.shape == (b, self.t_channel, h, w)

        # Host-side glue (depends only on labels / predictions / host RNG; runs BEFORE any
        # device work, so it never forces a sync between device kernels).
        gidx, cidx, wch, last_valid, early_return = self._host_sampling(
            np.asarray(t_predicts), np.asarray(labels), b, h, w)

        losses, zero_term = self._pipeline(
            s_feats, t_feats, self.w1p, self.w2p, self.gamma, self.beta,
            jnp.asarray(gidx), jnp.asarray(cidx), jnp.asarray(wch))

        if early_return or not last_valid:
            return zero_term
        # NOTE: the reference resets image_desc_error inside its per-image loop, so only the
        # last batch element's contribution survives; reproduced deliberately.
        return losses[b - 1, 0, 0]


# ---------------------------------------------------------------------------- demo

if __name__ == "__main__":
    key = jax.random.PRNGKey(0)
    k1, k2, k3, k4, k5, k6 = jax.random.split(key, 6)

    B, H, W = 2, 32, 32            # feature resolution (P = 2048 -> 4 pixel tiles of 512)
    HL, WL = 64, 64                # label resolution (2x, exercises nearest downsample)
    num_classes, ignore_label = 4, 255
    temperature, N, S = 2.0, 8, -1
    t_channel, s_channel = 32, 16

    s_feats = jax.random.normal(k1, (B, s_channel, H, W), jnp.float32)   # NCHW
    t_feats = jax.random.normal(k2, (B, t_channel, H, W), jnp.float32)   # NCHW
    labels = jax.random.randint(k3, (B, HL, WL), 0, num_classes, jnp.int32)

    # teacher predictions: mostly-correct (matches downsampled labels) with ~10% flips
    lab_ds = labels[:, ::2, ::2]
    flip = jax.random.bernoulli(k4, 0.1, (B, H, W))
    rand_cls = jax.random.randint(k5, (B, H, W), 0, num_classes, jnp.int32)
    t_predicts = jnp.where(flip, rand_cls, lab_ds)

    module = GSKDBPallas(num_classes, ignore_label, temperature, N, S,
                         t_channel, s_channel, key=k6)
    loss = module.forward(t_predicts, s_feats, t_feats, labels)
    jax.block_until_ready(loss)
    assert jnp.isfinite(loss)
    print("KERNEL_OK")
</pallas_src>

<mosaic_0001>
module attributes {stable_mosaic.version = 11 : i64} {
  func.func @_proj_stats_kernel(%arg0: i32, %arg1: memref<512x16xbf16, #tpu.memory_space<vmem>>, %arg2: memref<16x128xbf16, #tpu.memory_space<vmem>>, %arg3: memref<512x128xf32, #tpu.memory_space<vmem>>, %arg4: memref<1x128xf32, #tpu.memory_space<vmem>>, %arg5: memref<1x128xf32, #tpu.memory_space<vmem>>) attributes {dimension_semantics = [#tpu.dimension_semantics<arbitrary>], iteration_bounds = array<i64: 4>, scalar_prefetch = 0 : i64, scratch_operands = 0 : i64, tpu.core_type = #tpu.core_type<tc>, window_params = [{transform_indices = @transform_0, window_bounds = array<i64: 512, 16>}, {pipeline_mode = #tpu.pipeline_mode<synchronous>, transform_indices = @transform_1, window_bounds = array<i64: 16, 128>}, {transform_indices = @transform_2, window_bounds = array<i64: 512, 128>}, {pipeline_mode = #tpu.pipeline_mode<synchronous>, transform_indices = @transform_3, window_bounds = array<i64: 1, 128>}, {pipeline_mode = #tpu.pipeline_mode<synchronous>, transform_indices = @transform_4, window_bounds = array<i64: 1, 128>}]} {
    %c0_i32 = arith.constant 0 : i32
    %0 = arith.cmpi eq, %arg0, %c0_i32 : i32
    %1 = arith.extui %0 : i1 to i32
    %c0_i32_0 = arith.constant 0 : i32
    %2 = arith.cmpi ne, %1, %c0_i32_0 : i32
    scf.if %2 {
      %cst_16 = arith.constant 0.000000e+00 : f32
      %18 = vector.broadcast %cst_16 : f32 to vector<1x128xf32>
      %c0_17 = arith.constant 0 : index
      %c0_18 = arith.constant 0 : index
      %19 = vector.load %arg4[%c0_17, %c0_18] : memref<1x128xf32, #tpu.memory_space<vmem>>, vector<1x128xf32>
      tpu.vector_store %arg4[%c0_17, %c0_18], %18 {strides = array<i32>} : memref<1x128xf32, #tpu.memory_space<vmem>>, vector<1x128xf32>,
      %cst_19 = arith.constant 0.000000e+00 : f32
      %20 = vector.broadcast %cst_19 : f32 to vector<1x128xf32>
      %c0_20 = arith.constant 0 : index
      %c0_21 = arith.constant 0 : index
      %21 = vector.load %arg5[%c0_20, %c0_21] : memref<1x128xf32, #tpu.memory_space<vmem>>, vector<1x128xf32>
      tpu.vector_store %arg5[%c0_20, %c0_21], %20 {strides = array<i32>} : memref<1x128xf32, #tpu.memory_space<vmem>>, vector<1x128xf32>,
    } else {
    }
    %c0 = arith.constant 0 : index
    %c0_1 = arith.constant 0 : index
    %3 = vector.load %arg1[%c0, %c0_1] : memref<512x16xbf16, #tpu.memory_space<vmem>>, vector<512x16xbf16>
    %c0_2 = arith.constant 0 : index
    %c0_3 = arith.constant 0 : index
    %4 = vector.load %arg2[%c0_2, %c0_3] : memref<16x128xbf16, #tpu.memory_space<vmem>>, vector<16x128xbf16>
    %cst = arith.constant dense<0.000000e+00> : vector<512x128xf32>
    %5 = tpu.matmul %3, %4, %cst {dimension_numbers = #tpu.dot_dimension_numbers<[1], [0], [0], [1], [0, 0, 1, 1], [], []>} : vector<512x16xbf16>, vector<16x128xbf16>, vector<512x128xf32> -> vector<512x128xf32>
    %c0_4 = arith.constant 0 : index
    %c0_5 = arith.constant 0 : index
    %6 = vector.load %arg3[%c0_4, %c0_5] : memref<512x128xf32, #tpu.memory_space<vmem>>, vector<512x128xf32>
    tpu.vector_store %arg3[%c0_4, %c0_5], %5 {strides = array<i32>} : memref<512x128xf32, #tpu.memory_space<vmem>>, vector<512x128xf32>,
    %c0_6 = arith.constant 0 : index
    %c0_7 = arith.constant 0 : index
    %7 = vector.load %arg4[%c0_6, %c0_7] : memref<1x128xf32, #tpu.memory_space<vmem>>, vector<1x128xf32>
    %cst_8 = arith.constant dense<0.000000e+00> : vector<128xf32>
    %8 = vector.multi_reduction <add>, %5, %cst_8 [0] : vector<512x128xf32> to vector<128xf32>
    %9 = vector.shape_cast %8 : vector<128xf32> to vector<1x128xf32>
    %10 = arith.addf %7, %9 : vector<1x128xf32>
    %c0_9 = arith.constant 0 : index
    %c0_10 = arith.constant 0 : index
    %11 = vector.load %arg4[%c0_9, %c0_10] : memref<1x128xf32, #tpu.memory_space<vmem>>, vector<1x128xf32>
    tpu.vector_store %arg4[%c0_9, %c0_10], %10 {strides = array<i32>} : memref<1x128xf32, #tpu.memory_space<vmem>>, vector<1x128xf32>,
    %c0_11 = arith.constant 0 : index
    %c0_12 = arith.constant 0 : index
    %12 = vector.load %arg5[%c0_11, %c0_12] : memref<1x128xf32, #tpu.memory_space<vmem>>, vector<1x128xf32>
    %13 = arith.mulf %5, %5 : vector<512x128xf32>
    %cst_13 = arith.constant dense<0.000000e+00> : vector<128xf32>
    %14 = vector.multi_reduction <add>, %13, %cst_13 [0] : vector<512x128xf32> to vector<128xf32>
    %15 = vector.shape_cast %14 : vector<128xf32> to vector<1x128xf32>
    %16 = arith.addf %12, %15 : vector<1x128xf32>
    %c0_14 = arith.constant 0 : index
    %c0_15 = arith.constant 0 : index
    %17 = vector.load %arg5[%c0_14, %c0_15] : memref<1x128xf32, #tpu.memory_space<vmem>>, vector<1x128xf32>
    tpu.vector_store %arg5[%c0_14, %c0_15], %16 {strides = array<i32>} : memref<1x128xf32, #tpu.memory_space<vmem>>, vector<1x128xf32>,
    return
  }
  func.func @transform_0(%arg0: i32) -> (i32, i32) {
    %c0_i32 = arith.constant 0 : i32
    %c0_i32_0 = arith.constant 0 : i32
    return %arg0, %c0_i32 : i32, i32
  }
  func.func @transform_1(%arg0: i32) -> (i32, i32) {
    %c0_i32 = arith.constant 0 : i32
    %c0_i32_0 = arith.constant 0 : i32
    %c0_i32_1 = arith.constant 0 : i32
    return %c0_i32, %c0_i32_0 : i32, i32
  }
  func.func @transform_2(%arg0: i32) -> (i32, i32) {
    %c0_i32 = arith.constant 0 : i32
    %c0_i32_0 = arith.constant 0 : i32
    return %arg0, %c0_i32 : i32, i32
  }
  func.func @transform_3(%arg0: i32) -> (i32, i32) {
    %c0_i32 = arith.constant 0 : i32
    %c0_i32_0 = arith.constant 0 : i32
    %c0_i32_1 = arith.constant 0 : i32
    return %c0_i32, %c0_i32_0 : i32, i32
  }
  func.func @transform_4(%arg0: i32) -> (i32, i32) {
    %c0_i32 = arith.constant 0 : i32
    %c0_i32_0 = arith.constant 0 : i32
    %c0_i32_1 = arith.constant 0 : i32
    return %c0_i32, %c0_i32_0 : i32, i32
  }
}

module attributes {stable_mosaic.version = 11 : i64} {
  func.func @_proj_finish_kernel(%arg0: i32, %arg1: memref<512x128xf32, #tpu.memory_space<vmem>>, %arg2: memref<1x128xf32, #tpu.memory_space<vmem>>, %arg3: memref<1x128xf32, #tpu.memory_space<vmem>>, %arg4: memref<128x128xbf16, #tpu.memory_space<vmem>>, %arg5: memref<512x128xf32, #tpu.memory_space<vmem>>) attributes {dimension_semantics = [#tpu.dimension_semantics<parallel>], iteration_bounds = array<i64: 4>, scalar_prefetch = 0 : i64, scratch_operands = 0 : i64, tpu.core_type = #tpu.core_type<tc>, window_params = [{transform_indices = @transform_0, window_bounds = array<i64: 512, 128>}, {pipeline_mode = #tpu.pipeline_mode<synchronous>, transform_indices = @transform_1, window_bounds = array<i64: 1, 128>}, {pipeline_mode = #tpu.pipeline_mode<synchronous>, transform_indices = @transform_2, window_bounds = array<i64: 1, 128>}, {pipeline_mode = #tpu.pipeline_mode<synchronous>, transform_indices = @transform_3, window_bounds = array<i64: 128, 128>}, {transform_indices = @transform_4, window_bounds = array<i64: 512, 128>}]} {
    %c0 = arith.constant 0 : index
    %c0_0 = arith.constant 0 : index
    %0 = vector.load %arg1[%c0, %c0_0] : memref<512x128xf32, #tpu.memory_space<vmem>>, vector<512x128xf32>
    %c0_1 = arith.constant 0 : index
    %c0_2 = arith.constant 0 : index
    %1 = vector.load %arg2[%c0_1, %c0_2] : memref<1x128xf32, #tpu.memory_space<vmem>>, vector<1x128xf32>
    %2 = vector.broadcast %1 : vector<1x128xf32> to vector<512x128xf32>
    %3 = arith.mulf %0, %2 : vector<512x128xf32>
    %c0_3 = arith.constant 0 : index
    %c0_4 = arith.constant 0 : index
    %4 = vector.load %arg3[%c0_3, %c0_4] : memref<1x128xf32, #tpu.memory_space<vmem>>, vector<1x128xf32>
    %5 = vector.broadcast %4 : vector<1x128xf32> to vector<512x128xf32>
    %6 = arith.addf %3, %5 : vector<512x128xf32>
    %cst = arith.constant 0.000000e+00 : f32
    %7 = vector.broadcast %cst : f32 to vector<512x128xf32>
    %8 = arith.maximumf %6, %7 : vector<512x128xf32>
    %9 = arith.truncf %8 : vector<512x128xf32> to vector<512x128xbf16>
    %c0_5 = arith.constant 0 : index
    %c0_6 = arith.constant 0 : index
    %10 = vector.load %arg4[%c0_5, %c0_6] : memref<128x128xbf16, #tpu.memory_space<vmem>>, vector<128x128xbf16>
    %cst_7 = arith.constant dense<0.000000e+00> : vector<512x128xf32>
    %11 = tpu.matmul %9, %10, %cst_7 {dimension_numbers = #tpu.dot_dimension_numbers<[1], [0], [0], [1], [0, 0, 1, 1], [], []>} : vector<512x128xbf16>, vector<128x128xbf16>, vector<512x128xf32> -> vector<512x128xf32>
    %12 = arith.mulf %11, %11 : vector<512x128xf32>
    %cst_8 = arith.constant dense<0.000000e+00> : vector<512xf32>
    %13 = vector.multi_reduction <add>, %12, %cst_8 [1] : vector<512x128xf32> to vector<512xf32>
    %14 = vector.shape_cast %13 : vector<512xf32> to vector<512x1xf32>
    %cst_9 = arith.constant 1.000000e-24 : f32
    %15 = vector.broadcast %cst_9 : f32 to vector<512x1xf32>
    %16 = arith.maximumf %14, %15 : vector<512x1xf32>
    %17 = math.rsqrt %16 : vector<512x1xf32>
    %18 = vector.broadcast %17 : vector<512x1xf32> to vector<512x128xf32>
    %19 = arith.mulf %11, %18 : vector<512x128xf32>
    %c0_10 = arith.constant 0 : index
    %c0_11 = arith.constant 0 : index
    %20 = vector.load %arg5[%c0_10, %c0_11] : memref<512x128xf32, #tpu.memory_space<vmem>>, vector<512x128xf32>
    tpu.vector_store %arg5[%c0_10, %c0_11], %19 {strides = array<i32>} : memref<512x128xf32, #tpu.memory_space<vmem>>, vector<512x128xf32>,
    return
  }
  func.func @transform_0(%arg0: i32) -> (i32, i32) {
    %c0_i32 = arith.constant 0 : i32
    %c0_i32_0 = arith.constant 0 : i32
    return %arg0, %c0_i32 : i32, i32
  }
  func.func @transform_1(%arg0: i32) -> (i32, i32) {
    %c0_i32 = arith.constant 0 : i32
    %c0_i32_0 = arith.constant 0 : i32
    %c0_i32_1 = arith.constant 0 : i32
    return %c0_i32, %c0_i32_0 : i32, i32
  }
  func.func @transform_2(%arg0: i32) -> (i32, i32) {
    %c0_i32 = arith.constant 0 : i32
    %c0_i32_0 = arith.constant 0 : i32
    %c0_i32_1 = arith.constant 0 : i32
    return %c0_i32, %c0_i32_0 : i32, i32
  }
  func.func @transform_3(%arg0: i32) -> (i32, i32) {
    %c0_i32 = arith.constant 0 : i32
    %c0_i32_0 = arith.constant 0 : i32
    %c0_i32_1 = arith.constant 0 : i32
    return %c0_i32, %c0_i32_0 : i32, i32
  }
  func.func @transform_4(%arg0: i32) -> (i32, i32) {
    %c0_i32 = arith.constant 0 : i32
    %c0_i32_0 = arith.constant 0 : i32
    return %arg0, %c0_i32 : i32, i32
  }
}

module attributes {stable_mosaic.version = 11 : i64} {
  func.func @_l2norm_kernel(%arg0: i32, %arg1: memref<512x128xf32, #tpu.memory_space<vmem>>, %arg2: memref<512x128xf32, #tpu.memory_space<vmem>>) attributes {dimension_semantics = [#tpu.dimension_semantics<parallel>], iteration_bounds = array<i64: 4>, scalar_prefetch = 0 : i64, scratch_operands = 0 : i64, tpu.core_type = #tpu.core_type<tc>, window_params = [{transform_indices = @transform_0, window_bounds = array<i64: 512, 128>}, {transform_indices = @transform_1, window_bounds = array<i64: 512, 128>}]} {
    %c0 = arith.constant 0 : index
    %c0_0 = arith.constant 0 : index
    %0 = vector.load %arg1[%c0, %c0_0] : memref<512x128xf32, #tpu.memory_space<vmem>>, vector<512x128xf32>
    %1 = arith.mulf %0, %0 : vector<512x128xf32>
    %cst = arith.constant dense<0.000000e+00> : vector<512xf32>
    %2 = vector.multi_reduction <add>, %1, %cst [1] : vector<512x128xf32> to vector<512xf32>
    %3 = vector.shape_cast %2 : vector<512xf32> to vector<512x1xf32>
    %cst_1 = arith.constant 1.000000e-24 : f32
    %4 = vector.broadcast %cst_1 : f32 to vector<512x1xf32>
    %5 = arith.maximumf %3, %4 : vector<512x1xf32>
    %6 = math.rsqrt %5 : vector<512x1xf32>
    %7 = vector.broadcast %6 : vector<512x1xf32> to vector<512x128xf32>
    %8 = arith.mulf %0, %7 : vector<512x128xf32>
    %c0_2 = arith.constant 0 : index
    %c0_3 = arith.constant 0 : index
    %9 = vector.load %arg2[%c0_2, %c0_3] : memref<512x128xf32, #tpu.memory_space<vmem>>, vector<512x128xf32>
    tpu.vector_store %arg2[%c0_2, %c0_3], %8 {strides = array<i32>} : memref<512x128xf32, #tpu.memory_space<vmem>>, vector<512x128xf32>,
    return
  }
  func.func @transform_0(%arg0: i32) -> (i32, i32) {
    %c0_i32 = arith.constant 0 : i32
    %c0_i32_0 = arith.constant 0 : i32
    return %arg0, %c0_i32 : i32, i32
  }
  func.func @transform_1(%arg0: i32) -> (i32, i32) {
    %c0_i32 = arith.constant 0 : i32
    %c0_i32_0 = arith.constant 0 : i32
    return %arg0, %c0_i32 : i32, i32
  }
}

module attributes {stable_mosaic.version = 11 : i64} {
  func.func @_gram_kernel(%arg0: i32, %arg1: memref<1x32x32xbf16, #tpu.memory_space<vmem>>, %arg2: memref<1x32x32xbf16, #tpu.memory_space<vmem>>, %arg3: memref<1x32x32xf32, #tpu.memory_space<vmem>>, %arg4: memref<1x32x32xf32, #tpu.memory_space<vmem>>) attributes {dimension_semantics = [#tpu.dimension_semantics<parallel>], iteration_bounds = array<i64: 2>, scalar_prefetch = 0 : i64, scratch_operands = 0 : i64, tpu.core_type = #tpu.core_type<tc>, window_params = [{transform_indices = @transform_0, window_bounds = array<i64: 1, 32, 32>}, {transform_indices = @transform_1, window_bounds = array<i64: 1, 32, 32>}, {transform_indices = @transform_2, window_bounds = array<i64: 1, 32, 32>}, {transform_indices = @transform_3, window_bounds = array<i64: 1, 32, 32>}]} {
    %c0 = arith.constant 0 : index
    %c0_0 = arith.constant 0 : index
    %c0_1 = arith.constant 0 : index
    %0 = vector.load %arg1[%c0, %c0_0, %c0_1] : memref<1x32x32xbf16, #tpu.memory_space<vmem>>, vector<1x32x32xbf16>
    %1 = vector.shape_cast %0 : vector<1x32x32xbf16> to vector<32x32xbf16>
    %c0_2 = arith.constant 0 : index
    %c0_3 = arith.constant 0 : index
    %c0_4 = arith.constant 0 : index
    %2 = vector.load %arg2[%c0_2, %c0_3, %c0_4] : memref<1x32x32xbf16, #tpu.memory_space<vmem>>, vector<1x32x32xbf16>
    %3 = vector.shape_cast %2 : vector<1x32x32xbf16> to vector<32x32xbf16>
    %cst = arith.constant dense<0.000000e+00> : vector<32x32xf32>
    %4 = tpu.matmul %1, %1, %cst {dimension_numbers = #tpu.dot_dimension_numbers<[1], [1], [0], [0], [0, 0, 1, 0], [], []>} : vector<32x32xbf16>, vector<32x32xbf16>, vector<32x32xf32> -> vector<32x32xf32>
    %c0_5 = arith.constant 0 : index
    %c0_6 = arith.constant 0 : index
    %c0_7 = arith.constant 0 : index
    %5 = vector.load %arg3[%c0_5, %c0_6, %c0_7] : memref<1x32x32xf32, #tpu.memory_space<vmem>>, vector<1x32x32xf32>
    %6 = vector.shape_cast %5 : vector<1x32x32xf32> to vector<32x32xf32>
    %7 = vector.shape_cast %4 : vector<32x32xf32> to vector<1x32x32xf32>
    tpu.vector_store %arg3[%c0_5, %c0_6, %c0_7], %7 {strides = array<i32>} : memref<1x32x32xf32, #tpu.memory_space<vmem>>, vector<1x32x32xf32>,
    %cst_8 = arith.constant dense<0.000000e+00> : vector<32x32xf32>
    %8 = tpu.matmul %3, %3, %cst_8 {dimension_numbers = #tpu.dot_dimension_numbers<[1], [1], [0], [0], [0, 0, 1, 0], [], []>} : vector<32x32xbf16>, vector<32x32xbf16>, vector<32x32xf32> -> vector<32x32xf32>
    %c0_9 = arith.constant 0 : index
    %c0_10 = arith.constant 0 : index
    %c0_11 = arith.constant 0 : index
    %9 = vector.load %arg4[%c0_9, %c0_10, %c0_11] : memref<1x32x32xf32, #tpu.memory_space<vmem>>, vector<1x32x32xf32>
    %10 = vector.shape_cast %9 : vector<1x32x32xf32> to vector<32x32xf32>
    %11 = vector.shape_cast %8 : vector<32x32xf32> to vector<1x32x32xf32>
    tpu.vector_store %arg4[%c0_9, %c0_10, %c0_11], %11 {strides = array<i32>} : memref<1x32x32xf32, #tpu.memory_space<vmem>>, vector<1x32x32xf32>,
    return
  }
  func.func @transform_0(%arg0: i32) -> (i32, i32, i32) {
    %c0_i32 = arith.constant 0 : i32
    %c0_i32_0 = arith.constant 0 : i32
    %c0_i32_1 = arith.constant 0 : i32
    return %arg0, %c0_i32, %c0_i32_0 : i32, i32, i32
  }
  func.func @transform_1(%arg0: i32) -> (i32, i32, i32) {
    %c0_i32 = arith.constant 0 : i32
    %c0_i32_0 = arith.constant 0 : i32
    %c0_i32_1 = arith.constant 0 : i32
    return %arg0, %c0_i32, %c0_i32_0 : i32, i32, i32
  }
  func.func @transform_2(%arg0: i32) -> (i32, i32, i32) {
    %c0_i32 = arith.constant 0 : i32
    %c0_i32_0 = arith.constant 0 : i32
    %c0_i32_1 = arith.constant 0 : i32
    return %arg0, %c0_i32, %c0_i32_0 : i32, i32, i32
  }
  func.func @transform_3(%arg0: i32) -> (i32, i32, i32) {
    %c0_i32 = arith.constant 0 : i32
    %c0_i32_0 = arith.constant 0 : i32
    %c0_i32_1 = arith.constant 0 : i32
    return %arg0, %c0_i32, %c0_i32_0 : i32, i32, i32
  }
}

module attributes {stable_mosaic.version = 11 : i64} {
  func.func @_kl_kernel(%arg0: i32, %arg1: memref<1x8x128xf32, #tpu.memory_space<vmem>>, %arg2: memref<1x8x128xf32, #tpu.memory_space<vmem>>, %arg3: memref<1x8x128xf32, #tpu.memory_space<vmem>>, %arg4: memref<1x1x1xf32, #tpu.memory_space<vmem>>) attributes {dimension_semantics = [#tpu.dimension_semantics<parallel>], iteration_bounds = array<i64: 2>, scalar_prefetch = 0 : i64, scratch_operands = 0 : i64, tpu.core_type = #tpu.core_type<tc>, window_params = [{transform_indices = @transform_0, window_bounds = array<i64: 1, 8, 128>}, {transform_indices = @transform_1, window_bounds = array<i64: 1, 8, 128>}, {transform_indices = @transform_2, window_bounds = array<i64: 1, 8, 128>}, {transform_indices = @transform_3, window_bounds = array<i64: 1, 1, 1>}]} {
    %c0 = arith.constant 0 : index
    %c0_0 = arith.constant 0 : index
    %c0_1 = arith.constant 0 : index
    %0 = vector.load %arg3[%c0, %c0_0, %c0_1] : memref<1x8x128xf32, #tpu.memory_space<vmem>>, vector<1x8x128xf32>
    %1 = vector.shape_cast %0 : vector<1x8x128xf32> to vector<8x128xf32>
    %cst = arith.constant 0.000000e+00 : f32
    %2 = vector.broadcast %cst : f32 to vector<8x128xf32>
    %3 = arith.cmpf ogt, %1, %2 : vector<8x128xf32>
    %c0_2 = arith.constant 0 : index
    %c0_3 = arith.constant 0 : index
    %c0_4 = arith.constant 0 : index
    %4 = vector.load %arg1[%c0_2, %c0_3, %c0_4] : memref<1x8x128xf32, #tpu.memory_space<vmem>>, vector<1x8x128xf32>
    %5 = vector.shape_cast %4 : vector<1x8x128xf32> to vector<8x128xf32>
    %cst_5 = arith.constant 5.000000e-01 : f32
    %6 = vector.broadcast %cst_5 : f32 to vector<8x128xf32>
    %7 = arith.mulf %5, %6 : vector<8x128xf32>
    %cst_6 = arith.constant -1.000000e+30 : f32
    %8 = vector.broadcast %cst_6 : f32 to vector<8x128xf32>
    %9 = arith.select %3, %7, %8 : vector<8x128xi1>, vector<8x128xf32>
    %c0_7 = arith.constant 0 : index
    %c0_8 = arith.constant 0 : index
    %c0_9 = arith.constant 0 : index
    %10 = vector.load %arg2[%c0_7, %c0_8, %c0_9] : memref<1x8x128xf32, #tpu.memory_space<vmem>>, vector<1x8x128xf32>
    %11 = vector.shape_cast %10 : vector<1x8x128xf32> to vector<8x128xf32>
    %cst_10 = arith.constant 5.000000e-01 : f32
    %12 = vector.broadcast %cst_10 : f32 to vector<8x128xf32>
    %13 = arith.mulf %11, %12 : vector<8x128xf32>
    %cst_11 = arith.constant -1.000000e+30 : f32
    %14 = vector.broadcast %cst_11 : f32 to vector<8x128xf32>
    %15 = arith.select %3, %13, %14 : vector<8x128xi1>, vector<8x128xf32>
    %cst_12 = arith.constant dense<0xFF800000> : vector<8xf32>
    %16 = vector.multi_reduction <maximumf>, %9, %cst_12 [1] : vector<8x128xf32> to vector<8xf32>
    %17 = vector.shape_cast %16 : vector<8xf32> to vector<8x1xf32>
    %18 = vector.broadcast %17 : vector<8x1xf32> to vector<8x128xf32>
    %19 = arith.subf %9, %18 : vector<8x128xf32>
    %20 = math.exp %19 : vector<8x128xf32>
    %cst_13 = arith.constant dense<0.000000e+00> : vector<8xf32>
    %21 = vector.multi_reduction <add>, %20, %cst_13 [1] : vector<8x128xf32> to vector<8xf32>
    %22 = vector.shape_cast %21 : vector<8xf32> to vector<8x1xf32>
    %23 = tpu.reciprocal %22 {approx = true} : vector<8x1xf32> -> vector<8x1xf32>
    %24 = vector.broadcast %23 : vector<8x1xf32> to vector<8x128xf32>
    %25 = arith.mulf %20, %24 : vector<8x128xf32>
    %26 = vector.broadcast %17 : vector<8x1xf32> to vector<8x128xf32>
    %27 = arith.subf %9, %26 : vector<8x128xf32>
    %28 = math.log %22 : vector<8x1xf32>
    %29 = vector.broadcast %28 : vector<8x1xf32> to vector<8x128xf32>
    %30 = arith.subf %27, %29 : vector<8x128xf32>
    %cst_14 = arith.constant dense<0xFF800000> : vector<8xf32>
    %31 = vector.multi_reduction <maximumf>, %15, %cst_14 [1] : vector<8x128xf32> to vector<8xf32>
    %32 = vector.shape_cast %31 : vector<8xf32> to vector<8x1xf32>
    %33 = vector.broadcast %32 : vector<8x1xf32> to vector<8x128xf32>
    %34 = arith.subf %15, %33 : vector<8x128xf32>
    %35 = math.exp %34 : vector<8x128xf32>
    %cst_15 = arith.constant dense<0.000000e+00> : vector<8xf32>
    %36 = vector.multi_reduction <add>, %35, %cst_15 [1] : vector<8x128xf32> to vector<8xf32>
    %37 = vector.shape_cast %36 : vector<8xf32> to vector<8x1xf32>
    %38 = vector.broadcast %32 : vector<8x1xf32> to vector<8x128xf32>
    %39 = arith.subf %15, %38 : vector<8x128xf32>
    %40 = math.log %37 : vector<8x1xf32>
    %41 = vector.broadcast %40 : vector<8x1xf32> to vector<8x128xf32>
    %42 = arith.subf %39, %41 : vector<8x128xf32>
    %43 = arith.mulf %1, %25 : vector<8x128xf32>
    %44 = arith.subf %30, %42 : vector<8x128xf32>
    %45 = arith.mulf %43, %44 : vector<8x128xf32>
    %cst_16 = arith.constant dense<0.000000e+00> : vector<8xf32>
    %46 = vector.multi_reduction <add>, %45, %cst_16 [1] : vector<8x128xf32> to vector<8xf32>
    %47 = vector.shape_cast %46 : vector<8xf32> to vector<8x1xf32>
    %cst_17 = arith.constant dense<0.000000e+00> : vector<1xf32>
    %48 = vector.multi_reduction <add>, %47, %cst_17 [0] : vector<8x1xf32> to vector<1xf32>
    %49 = vector.shape_cast %48 : vector<1xf32> to vector<1x1xf32>
    %c0_18 = arith.constant 0 : index
    %c0_19 = arith.constant 0 : index
    %c0_20 = arith.constant 0 : index
    %50 = vector.load %arg4[%c0_18, %c0_19, %c0_20] : memref<1x1x1xf32, #tpu.memory_space<vmem>>, vector<1x1x1xf32>
    %51 = vector.shape_cast %50 : vector<1x1x1xf32> to vector<1x1xf32>
    %52 = vector.shape_cast %49 : vector<1x1xf32> to vector<1x1x1xf32>
    tpu.vector_store %arg4[%c0_18, %c0_19, %c0_20], %52 {strides = array<i32>} : memref<1x1x1xf32, #tpu.memory_space<vmem>>, vector<1x1x1xf32>,
    return
  }
  func.func @transform_0(%arg0: i32) -> (i32, i32, i32) {
    %c0_i32 = arith.constant 0 : i32
    %c0_i32_0 = arith.constant 0 : i32
    %c0_i32_1 = arith.constant 0 : i32
    return %arg0, %c0_i32, %c0_i32_0 : i32, i32, i32
  }
  func.func @transform_1(%arg0: i32) -> (i32, i32, i32) {
    %c0_i32 = arith.constant 0 : i32
    %c0_i32_0 = arith.constant 0 : i32
    %c0_i32_1 = arith.constant 0 : i32
    return %arg0, %c0_i32, %c0_i32_0 : i32, i32, i32
  }
  func.func @transform_2(%arg0: i32) -> (i32, i32, i32) {
    %c0_i32 = arith.constant 0 : i32
    %c0_i32_0 = arith.constant 0 : i32
    %c0_i32_1 = arith.constant 0 : i32
    return %arg0, %c0_i32, %c0_i32_0 : i32, i32, i32
  }
  func.func @transform_3(%arg0: i32) -> (i32, i32, i32) {
    %c0_i32 = arith.constant 0 : i32
    %c0_i32_0 = arith.constant 0 : i32
    %c0_i32_1 = arith.constant 0 : i32
    return %arg0, %c0_i32, %c0_i32_0 : i32, i32, i32
  }
}

</mosaic_0001>

<llo_original>
// kernel: _device_pipeline.5
$region0: #{_device_pipeline.5}
  #allocation0 [shape = 'u32[]', space=smem, size = 0x4, offset = 0x4, fixed_abs, tag = 'smem constant byte address 0x4 - core index']
  #allocation1 [shape = 'u32[144,128]{1,0:T(1,128)}', space=vmem, size = 0x12000, scoped, tag = 'internal scratch']
  %s0 = inlined_call_operand.vmem [shape: bf16[2048,16], index: 0, kind: input, shape index: {}]
  %s1 = inlined_call_operand.vmem [shape: bf16[16,128], index: 1, kind: input, shape index: {}]
  %s2 = inlined_call_operand.vmem [shape: f32[2048,128], index: 2, kind: output, shape index: {0}]
  %s3 = inlined_call_operand.vmem [shape: f32[1,128], index: 3, kind: output, shape index: {1}]
  %s4 = inlined_call_operand.vmem [shape: f32[1,128], index: 4, kind: output, shape index: {2}]
  %5 = xla_tuple %s2, %s3, %s4
  %s6 = sld [smem:[#allocation0]]
  $region61: #{_device_pipeline.5} parent=0
    _
  %s8 = ssub.s32 1, %s6
  %s9 = scalar_select 0, %s8, %s6
  loop: start=0, step=1, limit=6
  $region2: #{_device_pipeline.5} parent=0 // loop_pre_header
    _
  $region3: #{_device_pipeline.5} parent=0 // loop_header
    %s11 = sphi 0, %s15
    %p12 = scmp.ge.s32.totalorder %s11, 6
    %s21 = sphi 0, %s23
    %s24 = sphi 0, %s21
    %s25 = sphi 0, %s24
    %s41 = sphi 0, %s25
    %s45 = sphi 0, %s45
    %s47 = sphi 0, %s45
    %s48 = sphi 0, %s47
    %s62 = sphi 0, %s48
    %s68 = sphi 0, %s70
    %s71 = sphi 0, %s68
    %s72 = sphi 0, %s71
    %s88 = sphi 0, %s72
    %s92 = sphi 0, %s92
    %s94 = sphi 0, %s92
    %s95 = sphi 0, %s94
    %s109 = sphi 0, %s95
    %s113 = sphi 0, %s113
    %s115 = sphi 0, %s113
    %s116 = sphi 0, %s115
    %s130 = sphi 0, %s116
  $region4: #{_device_pipeline.5} parent=0 // loop_header_branch
    %14 = sbr.rel (%p12) target = $region8
  $region5: #{_device_pipeline.5} parent=0 // loop_body
    %s16 = ssub.s32 %s11, 1
    %s17 = ssub.s32 %s11, 2
    %s18 = sadd.s32 %s11, 1
    %s19 = ssub.s32 %s11, %s18
    %p20 = scmp.eq.s32.totalorder %s19, 0
    %s22 = sadd.s32 %s21, 1
    %s23 = scalar_select %p20, %s21, %s22
    %p26 = pneg %p20
    %p27 = scmp.eq.s32.totalorder %s11, 3
    %p28 = por %p26, %p27
    %p29 = scmp.ne.s32.totalorder %s21, %s24
    %p30 = scmp.eq.s32.totalorder %s11, 0
    %p31 = por %p29, %p30
    %p32 = scmp.ne.s32.totalorder %s21, %s24
    %p33 = scmp.eq.s32.totalorder %s16, 3
    %p34 = por %p32, %p33
    %p35 = scmp.ne.s32.totalorder %s24, %s25
    %p36 = scmp.eq.s32.totalorder %s16, 0
    %p37 = por %p35, %p36
    %p38 = scmp.ne.s32.totalorder %s24, %s25
    %p39 = scmp.eq.s32.totalorder %s17, 3
    %p40 = por %p38, %p39
    %p42 = scmp.ne.s32.totalorder %s25, %s41
    %p43 = scmp.eq.s32.totalorder %s17, 0
    %p44 = por %p42, %p43
    %s46 = sadd.s32 %s45, 1
    %p49 = scmp.eq.s32.totalorder %s11, 3
    %p50 = scmp.ne.s32.totalorder %s45, %s47
    %p51 = scmp.eq.s32.totalorder %s11, 0
    %p52 = por %p50, %p51
    %p53 = scmp.ne.s32.totalorder %s45, %s47
    %p54 = scmp.eq.s32.totalorder %s16, 3
    %p55 = por %p53, %p54
    %p56 = scmp.ne.s32.totalorder %s47, %s48
    %p57 = scmp.eq.s32.totalorder %s16, 0
    %p58 = por %p56, %p57
    %p59 = scmp.ne.s32.totalorder %s47, %s48
    %p60 = scmp.eq.s32.totalorder %s17, 3
    %p61 = por %p59, %p60
    %p63 = scmp.ne.s32.totalorder %s48, %s62
    %p64 = scmp.eq.s32.totalorder %s17, 0
    %p65 = por %p63, %p64
    %s66 = ssub.s32 %s11, %s18
    %p67 = scmp.eq.s32.totalorder %s66, 0
    %s69 = sadd.s32 %s68, 1
    %s70 = scalar_select %p67, %s68, %s69
    %p73 = pneg %p67
    %p74 = scmp.eq.s32.totalorder %s11, 3
    %p75 = por %p73, %p74
    %p76 = scmp.ne.s32.totalorder %s68, %s71
    %p77 = scmp.eq.s32.totalorder %s11, 0
    %p78 = por %p76, %p77
    %p79 = scmp.ne.s32.totalorder %s68, %s71
    %p80 = scmp.eq.s32.totalorder %s16, 3
    %p81 = por %p79, %p80
    %p82 = scmp.ne.s32.totalorder %s71, %s72
    %p83 = scmp.eq.s32.totalorder %s16, 0
    %p84 = por %p82, %p83
    %p85 = scmp.ne.s32.totalorder %s71, %s72
    %p86 = scmp.eq.s32.totalorder %s17, 3
    %p87 = por %p85, %p86
    %p89 = scmp.ne.s32.totalorder %s72, %s88
    %p90 = scmp.eq.s32.totalorder %s17, 0
    %p91 = por %p89, %p90
    %s93 = sadd.s32 %s92, 1
    %p96 = scmp.eq.s32.totalorder %s11, 3
    %p97 = scmp.ne.s32.totalorder %s92, %s94
    %p98 = scmp.eq.s32.totalorder %s11, 0
    %p99 = por %p97, %p98
    %p100 = scmp.ne.s32.totalorder %s92, %s94
    %p101 = scmp.eq.s32.totalorder %s16, 3
    %p102 = por %p100, %p101
    %p103 = scmp.ne.s32.totalorder %s94, %s95
    %p104 = scmp.eq.s32.totalorder %s16, 0
    %p105 = por %p103, %p104
    %p106 = scmp.ne.s32.totalorder %s94, %s95
    %p107 = scmp.eq.s32.totalorder %s17, 3
    %p108 = por %p106, %p107
    %p110 = scmp.ne.s32.totalorder %s95, %s109
    %p111 = scmp.eq.s32.totalorder %s17, 0
    %p112 = por %p110, %p111
    %s114 = sadd.s32 %s113, 1
    %p117 = scmp.eq.s32.totalorder %s11, 3
    %p118 = scmp.ne.s32.totalorder %s113, %s115
    %p119 = scmp.eq.s32.totalorder %s11, 0
    %p120 = por %p118, %p119
    %p121 = scmp.ne.s32.totalorder %s113, %s115
    %p122 = scmp.eq.s32.totalorder %s16, 3
    %p123 = por %p121, %p122
    %p124 = scmp.ne.s32.totalorder %s115, %s116
    %p125 = scmp.eq.s32.totalorder %s16, 0
    %p126 = por %p124, %p125
    %p127 = scmp.ne.s32.totalorder %s115, %s116
    %p128 = scmp.eq.s32.totalorder %s17, 3
    %p129 = por %p127, %p128
    %p131 = scmp.ne.s32.totalorder %s116, %s130
    %p132 = scmp.eq.s32.totalorder %s17, 0
    %p133 = por %p131, %p132
    %p134 = scmp.le.s32.totalorder 1, %s11
    %p135 = scmp.lt.s32.totalorder %s11, 5
    %p136 = pnand %p134, %p135
    %p137 = pneg %p136
    // Predicated region
    $region9: #{_device_pipeline.5} parent=5 // pred_check
      _
    $region10: #{_device_pipeline.5} parent=5 // pred_check_branch
      %139 = sbr.rel (%p136) target = $region12
    $region11: #{_device_pipeline.5} parent=5 // pred_region
      %s140 = ssub.s32 %s11, 1
      // Predicated region
      $region13: #{_device_pipeline.5} parent=11 // pred_check
        %p141 = pneg %p58
      $region14: #{_device_pipeline.5} parent=11 // pred_check_branch
        %143 = sbr.rel (%p141) target = $region16
      $region15: #{_device_pipeline.5} parent=11 // pred_region
        _
      $region16: #{_device_pipeline.5} parent=11 // pred_fallthru
        _
    $region12: #{_device_pipeline.5} parent=5 // pred_fallthru
      _
    %p144 = scmp.lt.s32.totalorder %s11, 4
    // Predicated region
    $region17: #{_device_pipeline.5} parent=5 // pred_check
      %p145 = pneg %p144
    $region18: #{_device_pipeline.5} parent=5 // pred_check_branch
      %147 = sbr.rel (%p145) target = $region20
    $region19: #{_device_pipeline.5} parent=5 // pred_region
      // Predicated region
      $region21: #{_device_pipeline.5} parent=19 // pred_check
        %p148 = pneg %p31
      $region22: #{_device_pipeline.5} parent=19 // pred_check_branch
        %150 = sbr.rel (%p148) target = $region24
      $region23: #{_device_pipeline.5} parent=19 // pred_region
        %s151 = smul.u32 64, %s11
        %p152 = scmp.lt.s32.totalorder %s151, 255
        %s153 = scalar_select %p152, %s151, 255
        %s154 = smul.addr %s153, 4
        %s155 = scalar_lea.vmem %s0, %s154
        %s156 = smul.u32 64, %s11
      $region24: #{_device_pipeline.5} parent=19 // pred_fallthru
        _
    $region20: #{_device_pipeline.5} parent=5 // pred_fallthru
      _
    %p157 = scmp.le.s32.totalorder 1, %s11
    %p158 = scmp.lt.s32.totalorder %s11, 5
    %p159 = pnand %p157, %p158
    %p160 = pneg %p159
    // Predicated region
    $region25: #{_device_pipeline.5} parent=5 // pred_check
      _
    $region26: #{_device_pipeline.5} parent=5 // pred_check_branch
      %162 = sbr.rel (%p159) target = $region28
    $region27: #{_device_pipeline.5} parent=5 // pred_region
      %s163 = ssub.s32 %s11, 1
      %s164 = smul.u32 64, %s16
      %p165 = scmp.lt.s32.totalorder %s164, 255
      %s166 = scalar_select %p165, %s164, 255
      %s167 = smul.addr %s166, 4
      %s168 = scalar_lea.vmem %s0, %s167
      %p169 = pneg %p37
      %p170 = pneg %p34
      %p171 = pneg %p58
      %p172 = pneg %p55
      %p173 = pneg %p84
      %p174 = pneg %p81
      %s175 = smul.u32 64, %s16
      %p176 = scmp.lt.s32.totalorder %s175, 255
      %s177 = scalar_select %p176, %s175, 255
      %s178 = smul.addr %s177, 8
      %s179 = scalar_lea.vmem %s2, %s178
      %p180 = pneg %p105
      %p181 = pneg %p102
      %p182 = pneg %p126
      %p183 = pneg %p123
      %s184 = smul.u32 64, %s16
      %p185 = scmp.lt.s32.totalorder %s184, 255
      %s186 = scalar_select %p185, %s184, 255
      %s187 = smul.addr %s186, 4
      %s188 = scalar_lea.vmem %s0, %s187
      %s189 = smul.u32 64, %s16
      %s190 = smul.u32 64, %s16
      %p191 = scmp.lt.s32.totalorder %s190, 255
      %s192 = scalar_select %p191, %s190, 255
      %s193 = smul.addr %s192, 8
      %s194 = scalar_lea.vmem %s2, %s193
      %s195 = smul.u32 64, %s16
      %p197 = scmp.eq.s32.totalorder %s16, 0
      // Predicated region
      $region29: #{_device_pipeline.5} parent=27 // pred_check
        %p198 = pneg %p197
      $region30: #{_device_pipeline.5} parent=27 // pred_check_branch
        %200 = sbr.rel (%p198) target = $region32
      $region31: #{_device_pipeline.5} parent=27 // pred_region
        %201 = vst [vmem:[%s3] sm:$0x1] 0.0
        %202 = vst [vmem:[%s4] sm:$0x1] 0.0
      $region32: #{_device_pipeline.5} parent=27 // pred_fallthru
        _
      %v203 = vld [vmem:[%s188] sm:$0xf]
      %v204 = vld [vmem:[%s188 + $0x4] sm:$0xf]
      %v205 = vld [vmem:[%s188 + $0x8] sm:$0xf]
      %v206 = vld [vmem:[%s188 + $0xc] sm:$0xf]
      %v207 = vld [vmem:[%s188 + $0x10] sm:$0xf]
      %v208 = vld [vmem:[%s188 + $0x14] sm:$0xf]
      %v209 = vld [vmem:[%s188 + $0x18] sm:$0xf]
      %v210 = vld [vmem:[%s188 + $0x1c] sm:$0xf]
      %v211 = vld [vmem:[%s188 + $0x20] sm:$0xf]
      %v212 = vld [vmem:[%s188 + $0x24] sm:$0xf]
      %v213 = vld [vmem:[%s188 + $0x28] sm:$0xf]
      %v214 = vld [vmem:[%s188 + $0x2c] sm:$0xf]
      %v215 = vld [vmem:[%s188 + $0x30] sm:$0xf]
      %v216 = vld [vmem:[%s188 + $0x34] sm:$0xf]
      %v217 = vld [vmem:[%s188 + $0x38] sm:$0xf]
      %v218 = vld [vmem:[%s188 + $0x3c] sm:$0xf]
      %v219 = vld [vmem:[%s188 + $0x40] sm:$0xf]
      %v220 = vld [vmem:[%s188 + $0x44] sm:$0xf]
      %v221 = vld [vmem:[%s188 + $0x48] sm:$0xf]
      %v222 = vld [vmem:[%s188 + $0x4c] sm:$0xf]
      %v223 = vld [vmem:[%s188 + $0x50] sm:$0xf]
      %v224 = vld [vmem:[%s188 + $0x54] sm:$0xf]
      %v225 = vld [vmem:[%s188 + $0x58] sm:$0xf]
      %v226 = vld [vmem:[%s188 + $0x5c] sm:$0xf]
      %v227 = vld [vmem:[%s188 + $0x60] sm:$0xf]
      %v228 = vld [vmem:[%s188 + $0x64] sm:$0xf]
      %v229 = vld [vmem:[%s188 + $0x68] sm:$0xf]
      %v230 = vld [vmem:[%s188 + $0x6c] sm:$0xf]
      %v231 = vld [vmem:[%s188 + $0x70] sm:$0xf]
      %v232 = vld [vmem:[%s188 + $0x74] sm:$0xf]
      %v233 = vld [vmem:[%s188 + $0x78] sm:$0xf]
      %v234 = vld [vmem:[%s188 + $0x7c] sm:$0xf]
      %v235 = vld [vmem:[%s188 + $0x80] sm:$0xf]
      %v236 = vld [vmem:[%s188 + $0x84] sm:$0xf]
      %v237 = vld [vmem:[%s188 + $0x88] sm:$0xf]
      %v238 = vld [vmem:[%s188 + $0x8c] sm:$0xf]
      %v239 = vld [vmem:[%s188 + $0x90] sm:$0xf]
      %v240 = vld [vmem:[%s188 + $0x94] sm:$0xf]
      %v241 = vld [vmem:[%s188 + $0x98] sm:$0xf]
      %v242 = vld [vmem:[%s188 + $0x9c] sm:$0xf]
      %v243 = vld [vmem:[%s188 + $0xa0] sm:$0xf]
      %v244 = vld [vmem:[%s188 + $0xa4] sm:$0xf]
      %v245 = vld [vmem:[%s188 + $0xa8] sm:$0xf]
      %v246 = vld [vmem:[%s188 + $0xac] sm:$0xf]
      %v247 = vld [vmem:[%s188 + $0xb0] sm:$0xf]
      %v248 = vld [vmem:[%s188 + $0xb4] sm:$0xf]
      %v249 = vld [vmem:[%s188 + $0xb8] sm:$0xf]
      %v250 = vld [vmem:[%s188 + $0xbc] sm:$0xf]
      %v251 = vld [vmem:[%s188 + $0xc0] sm:$0xf]
      %v252 = vld [vmem:[%s188 + $0xc4] sm:$0xf]
      %v253 = vld [vmem:[%s188 + $0xc8] sm:$0xf]
      %v254 = vld [vmem:[%s188 + $0xcc] sm:$0xf]
      %v255 = vld [vmem:[%s188 + $0xd0] sm:$0xf]
      %v256 = vld [vmem:[%s188 + $0xd4] sm:$0xf]
      %v257 = vld [vmem:[%s188 + $0xd8] sm:$0xf]
      %v258 = vld [vmem:[%s188 + $0xdc] sm:$0xf]
      %v259 = vld [vmem:[%s188 + $0xe0] sm:$0xf]
      %v260 = vld [vmem:[%s188 + $0xe4] sm:$0xf]
      %v261 = vld [vmem:[%s188 + $0xe8] sm:$0xf]
      %v262 = vld [vmem:[%s188 + $0xec] sm:$0xf]
      %v263 = vld [vmem:[%s188 + $0xf0] sm:$0xf]
      %v264 = vld [vmem:[%s188 + $0xf4] sm:$0xf]
      %v265 = vld [vmem:[%s188 + $0xf8] sm:$0xf]
      %v266 = vld [vmem:[%s188 + $0xfc] sm:$0xf]
      %v267 = vld [vmem:[%s1] sm:$0xf]
      %v268 = vld [vmem:[%s1 + $0x4] sm:$0xf]
      %v333 = vunpack.c.l.b16 %v203
      %v334 = vunpack.c.l.b16 %v204
      %v335 = vunpack.c.l.b16 %v205
      %v336 = vunpack.c.l.b16 %v206
      %v337 = vunpack.c.l.b16 %v207
      %v338 = vunpack.c.l.b16 %v208
      %v339 = vunpack.c.l.b16 %v209
      %v340 = vunpack.c.l.b16 %v210
      %v341 = vunpack.c.l.b16 %v211
      %v342 = vunpack.c.l.b16 %v212
      %v343 = vunpack.c.l.b16 %v213
      %v344 = vunpack.c.l.b16 %v214
      %v345 = vunpack.c.l.b16 %v215
      %v346 = vunpack.c.l.b16 %v216
      %v347 = vunpack.c.l.b16 %v217
      %v348 = vunpack.c.l.b16 %v218
      %v349 = vunpack.c.l.b16 %v219
      %v350 = vunpack.c.l.b16 %v220
      %v351 = vunpack.c.l.b16 %v221
      %v352 = vunpack.c.l.b16 %v222
      %v353 = vunpack.c.l.b16 %v223
      %v354 = vunpack.c.l.b16 %v224
      %v355 = vunpack.c.l.b16 %v225
      %v356 = vunpack.c.l.b16 %v226
      %v357 = vunpack.c.l.b16 %v227
      %v358 = vunpack.c.l.b16 %v228
      %v359 = vunpack.c.l.b16 %v229
      %v360 = vunpack.c.l.b16 %v230
      %v361 = vunpack.c.l.b16 %v231
      %v362 = vunpack.c.l.b16 %v232
      %v363 = vunpack.c.l.b16 %v233
      %v364 = vunpack.c.l.b16 %v234
      %v365 = vunpack.c.l.b16 %v235
      %v366 = vunpack.c.l.b16 %v236
      %v367 = vunpack.c.l.b16 %v237
      %v368 = vunpack.c.l.b16 %v238
      %v369 = vunpack.c.l.b16 %v239
      %v370 = vunpack.c.l.b16 %v240
      %v371 = vunpack.c.l.b16 %v241
      %v372 = vunpack.c.l.b16 %v242
      %v373 = vunpack.c.l.b16 %v243
      %v374 = vunpack.c.l.b16 %v244
      %v375 = vunpack.c.l.b16 %v245
      %v376 = vunpack.c.l.b16 %v246
      %v377 = vunpack.c.l.b16 %v247
      %v378 = vunpack.c.l.b16 %v248
      %v379 = vunpack.c.l.b16 %v249
      %v380 = vunpack.c.l.b16 %v250
      %v381 = vunpack.c.l.b16 %v251
      %v382 = vunpack.c.l.b16 %v252
      %v383 = vunpack.c.l.b16 %v253
      %v384 = vunpack.c.l.b16 %v254
      %v385 = vunpack.c.l.b16 %v255
      %v386 = vunpack.c.l.b16 %v256
      %v387 = vunpack.c.l.b16 %v257
      %v388 = vunpack.c.l.b16 %v258
      %v389 = vunpack.c.l.b16 %v259
      %v390 = vunpack.c.l.b16 %v260
      %v391 = vunpack.c.l.b16 %v261
      %v392 = vunpack.c.l.b16 %v262
      %v393 = vunpack.c.l.b16 %v263
      %v394 = vunpack.c.l.b16 %v264
      %v395 = vunpack.c.l.b16 %v265
      %v396 = vunpack.c.l.b16 %v266
      %v397 = vpack.c.b16 %v334, %v333
      %v398 = vpack.c.b16 %v336, %v335
      %v399 = vpack.c.b16 %v338, %v337
      %v400 = vpack.c.b16 %v340, %v339
      %v401 = vpack.c.b16 %v342, %v341
      %v402 = vpack.c.b16 %v344, %v343
      %v403 = vpack.c.b16 %v346, %v345
      %v404 = vpack.c.b16 %v348, %v347
      %v405 = vpack.c.b16 %v350, %v349
      %v406 = vpack.c.b16 %v352, %v351
      %v407 = vpack.c.b16 %v354, %v353
      %v408 = vpack.c.b16 %v356, %v355
      %v409 = vpack.c.b16 %v358, %v357
      %v410 = vpack.c.b16 %v360, %v359
      %v411 = vpack.c.b16 %v362, %v361
      %v412 = vpack.c.b16 %v364, %v363
      %v413 = vpack.c.b16 %v366, %v365
      %v414 = vpack.c.b16 %v368, %v367
      %v415 = vpack.c.b16 %v370, %v369
      %v416 = vpack.c.b16 %v372, %v371
      %v417 = vpack.c.b16 %v374, %v373
      %v418 = vpack.c.b16 %v376, %v375
      %v419 = vpack.c.b16 %v378, %v377
      %v420 = vpack.c.b16 %v380, %v379
      %v421 = vpack.c.b16 %v382, %v381
      %v422 = vpack.c.b16 %v384, %v383
      %v423 = vpack.c.b16 %v386, %v385
      %v424 = vpack.c.b16 %v388, %v387
      %v425 = vpack.c.b16 %v390, %v389
      %v426 = vpack.c.b16 %v392, %v391
      %v427 = vpack.c.b16 %v394, %v393
      %v428 = vpack.c.b16 %v396, %v395
      %v431 = vunpack.c.l.b16 %v267
      %v432 = vunpack.c.l.b16 %v268
      %v433 = vpack.c.b16 %v432, %v431
      %vm435 = vcmask 130048
      %v437 = vsel %vm435, %v397, 0
      %v440 = vsel %vm435, %v398, 0
      %v443 = vsel %vm435, %v399, 0
      %v446 = vsel %vm435, %v400, 0
      %v449 = vsel %vm435, %v401, 0
      %v452 = vsel %vm435, %v402, 0
      %v455 = vsel %vm435, %v403, 0
      %v458 = vsel %vm435, %v404, 0
      %v461 = vsel %vm435, %v405, 0
      %v464 = vsel %vm435, %v406, 0
      %v467 = vsel %vm435, %v407, 0
      %v470 = vsel %vm435, %v408, 0
      %v473 = vsel %vm435, %v409, 0
      %v476 = vsel %vm435, %v410, 0
      %v479 = vsel %vm435, %v411, 0
      %v482 = vsel %vm435, %v412, 0
      %v485 = vsel %vm435, %v413, 0
      %v488 = vsel %vm435, %v414, 0
      %v491 = vsel %vm435, %v415, 0
      %v494 = vsel %vm435, %v416, 0
      %v497 = vsel %vm435, %v417, 0
      %v500 = vsel %vm435, %v418, 0
      %v503 = vsel %vm435, %v419, 0
      %v506 = vsel %vm435, %v420, 0
      %v509 = vsel %vm435, %v421, 0
      %v512 = vsel %vm435, %v422, 0
      %v515 = vsel %vm435, %v423, 0
      %v518 = vsel %vm435, %v424, 0
      %v521 = vsel %vm435, %v425, 0
      %v524 = vsel %vm435, %v426, 0
      %v527 = vsel %vm435, %v427, 0
      %v530 = vsel %vm435, %v428, 0
      %532 = vmatprep.subr.bf16.mxu0 0
      %533 = vmatpush1.bf16.msra.mxu0 0
      %534 = vmatprep.subr.bf16.mxu0 0
      %535 = vmatpush1.bf16.msra.mxu0 0
      %536 = vmatprep.subr.bf16.mxu0 0
      %537 = vmatpush1.bf16.msra.mxu0 0
      %538 = vmatprep.subr.bf16.mxu0 0
      %539 = vmatpush1.bf16.msra.mxu0 0
      %540 = vmatprep.subr.bf16.mxu0 0
      %541 = vmatpush1.bf16.msra.mxu0 0
      %542 = vmatprep.subr.bf16.mxu0 0
      %543 = vmatpush1.bf16.msra.mxu0 0
      %544 = vmatprep.subr.bf16.mxu0 0
      %545 = vmatpush1.bf16.msra.mxu0 0
      %546 = vmatprep.subr.bf16.mxu0 0
      %547 = vmatpush1.bf16.msra.mxu0 %v433
      %548 = vmatprep.subr.bf16.mxu0 0
      %549 = vmatpush2.bf16.msra.mxu0 0
      %550 = vmatprep.subr.bf16.mxu0 0
      %551 = vmatpush2.bf16.msra.mxu0 0
      %552 = vmatprep.subr.bf16.mxu0 0
      %553 = vmatpush2.bf16.msra.mxu0 0
      %554 = vmatprep.subr.bf16.mxu0 0
      %555 = vmatpush2.bf16.msra.mxu0 0
      %556 = vmatprep.subr.bf16.mxu0 0
      %557 = vmatpush2.bf16.msra.mxu0 0
      %558 = vmatprep.subr.bf16.mxu0 0
      %559 = vmatpush2.bf16.msra.mxu0 0
      %560 = vmatprep.subr.bf16.mxu0 0
      %561 = vmatpush2.bf16.msra.mxu0 0
      %562 = vmatprep.subr.bf16.mxu0 0
      %563 = vmatpush2.bf16.msra.mxu0 0
      %564 = vmatprep.mubr.bf16.mxu0 0
      %565 = vmatmul.mubr.bf16.gmra.mxu0 %v437
      %v566 = vpop.f32.mrf.mxu0
      %v567 = vadd.f32 0.0, %v566
      %v568 = vpop.f32.mrf.mxu0
      %v569 = vpop.f32.mrf.mxu0
      %v570 = vadd.f32 0.0, %v569
      %v571 = vpop.f32.mrf.mxu0
      %572 = vmatprep.mubr.bf16.mxu0 0
      %573 = vmatmul.mubr.bf16.gmra.mxu0 %v440
      %v574 = vpop.f32.mrf.mxu0
      %v575 = vadd.f32 0.0, %v574
      %v576 = vpop.f32.mrf.mxu0
      %v577 = vpop.f32.mrf.mxu0
      %v578 = vadd.f32 0.0, %v577
      %v579 = vpop.f32.mrf.mxu0
      %580 = vmatprep.mubr.bf16.mxu0 0
      %581 = vmatmul.mubr.bf16.gmra.mxu0 %v443
      %v582 = vpop.f32.mrf.mxu0
      %v583 = vadd.f32 0.0, %v582
      %v584 = vpop.f32.mrf.mxu0
      %v585 = vpop.f32.mrf.mxu0
      %v586 = vadd.f32 0.0, %v585
      %v587 = vpop.f32.mrf.mxu0
      %588 = vmatprep.mubr.bf16.mxu0 0
      %589 = vmatmul.mubr.bf16.gmra.mxu0 %v446
      %v590 = vpop.f32.mrf.mxu0
      %v591 = vadd.f32 0.0, %v590
      %v592 = vpop.f32.mrf.mxu0
      %v593 = vpop.f32.mrf.mxu0
      %v594 = vadd.f32 0.0, %v593
      %v595 = vpop.f32.mrf.mxu0
      %596 = vmatprep.mubr.bf16.mxu0 0
      %597 = vmatmul.mubr.bf16.gmra.mxu0 %v449
      %v598 = vpop.f32.mrf.mxu0
      %v599 = vadd.f32 0.0, %v598
      %v600 = vpop.f32.mrf.mxu0
      %v601 = vpop.f32.mrf.mxu0
      %v602 = vadd.f32 0.0, %v601
      %v603 = vpop.f32.mrf.mxu0
      %604 = vmatprep.mubr.bf16.mxu0 0
      %605 = vmatmul.mubr.bf16.gmra.mxu0 %v452
      %v606 = vpop.f32.mrf.mxu0
      %v607 = vadd.f32 0.0, %v606
      %v608 = vpop.f32.mrf.mxu0
      %v609 = vpop.f32.mrf.mxu0
      %v610 = vadd.f32 0.0, %v609
      %v611 = vpop.f32.mrf.mxu0
      %612 = vmatprep.mubr.bf16.mxu0 0
      %613 = vmatmul.mubr.bf16.gmra.mxu0 %v455
      %v614 = vpop.f32.mrf.mxu0
      %v615 = vadd.f32 0.0, %v614
      %v616 = vpop.f32.mrf.mxu0
      %v617 = vpop.f32.mrf.mxu0
      %v618 = vadd.f32 0.0, %v617
      %v619 = vpop.f32.mrf.mxu0
      %620 = vmatprep.mubr.bf16.mxu0 0
      %621 = vmatmul.mubr.bf16.gmra.mxu0 %v458
      %v622 = vpop.f32.mrf.mxu0
      %v623 = vadd.f32 0.0, %v622
      %v624 = vpop.f32.mrf.mxu0
      %v625 = vpop.f32.mrf.mxu0
      %v626 = vadd.f32 0.0, %v625
      %v627 = vpop.f32.mrf.mxu0
      %628 = vmatprep.mubr.bf16.mxu0 0
      %629 = vmatmul.mubr.bf16.gmra.mxu0 %v461
      %v630 = vpop.f32.mrf.mxu0
      %v631 = vadd.f32 0.0, %v630
      %v632 = vpop.f32.mrf.mxu0
      %v633 = vpop.f32.mrf.mxu0
      %v634 = vadd.f32 0.0, %v633
      %v635 = vpop.f32.mrf.mxu0
      %636 = vmatprep.mubr.bf16.mxu0 0
      %637 = vmatmul.mubr.bf16.gmra.mxu0 %v464
      %v638 = vpop.f32.mrf.mxu0
      %v639 = vadd.f32 0.0, %v638
      %v640 = vpop.f32.mrf.mxu0
      %v641 = vpop.f32.mrf.mxu0
      %v642 = vadd.f32 0.0, %v641
      %v643 = vpop.f32.mrf.mxu0
      %644 = vmatprep.mubr.bf16.mxu0 0
      %645 = vmatmul.mubr.bf16.gmra.mxu0 %v467
      %v646 = vpop.f32.mrf.mxu0
      %v647 = vadd.f32 0.0, %v646
      %v648 = vpop.f32.mrf.mxu0
      %v649 = vpop.f32.mrf.mxu0
      %v650 = vadd.f32 0.0, %v649
      %v651 = vpop.f32.mrf.mxu0
      %652 = vmatprep.mubr.bf16.mxu0 0
      %653 = vmatmul.mubr.bf16.gmra.mxu0 %v470
      %v654 = vpop.f32.mrf.mxu0
      %v655 = vadd.f32 0.0, %v654
      %v656 = vpop.f32.mrf.mxu0
      %v657 = vpop.f32.mrf.mxu0
      %v658 = vadd.f32 0.0, %v657
      %v659 = vpop.f32.mrf.mxu0
      %660 = vmatprep.mubr.bf16.mxu0 0
      %661 = vmatmul.mubr.bf16.gmra.mxu0 %v473
      %v662 = vpop.f32.mrf.mxu0
      %v663 = vadd.f32 0.0, %v662
      %v664 = vpop.f32.mrf.mxu0
      %v665 = vpop.f32.mrf.mxu0
      %v666 = vadd.f32 0.0, %v665
      %v667 = vpop.f32.mrf.mxu0
      %668 = vmatprep.mubr.bf16.mxu0 0
      %669 = vmatmul.mubr.bf16.gmra.mxu0 %v476
      %v670 = vpop.f32.mrf.mxu0
      %v671 = vadd.f32 0.0, %v670
      %v672 = vpop.f32.mrf.mxu0
      %v673 = vpop.f32.mrf.mxu0
      %v674 = vadd.f32 0.0, %v673
      %v675 = vpop.f32.mrf.mxu0
      %676 = vmatprep.mubr.bf16.mxu0 0
      %677 = vmatmul.mubr.bf16.gmra.mxu0 %v479
      %v678 = vpop.f32.mrf.mxu0
      %v679 = vadd.f32 0.0, %v678
      %v680 = vpop.f32.mrf.mxu0
      %v681 = vpop.f32.mrf.mxu0
      %v682 = vadd.f32 0.0, %v681
      %v683 = vpop.f32.mrf.mxu0
      %684 = vmatprep.mubr.bf16.mxu0 0
      %685 = vmatmul.mubr.bf16.gmra.mxu0 %v482
      %v686 = vpop.f32.mrf.mxu0
      %v687 = vadd.f32 0.0, %v686
      %v688 = vpop.f32.mrf.mxu0
      %v689 = vpop.f32.mrf.mxu0
      %v690 = vadd.f32 0.0, %v689
      %v691 = vpop.f32.mrf.mxu0
      %692 = vmatprep.mubr.bf16.mxu0 0
      %693 = vmatmul.mubr.bf16.gmra.mxu0 %v485
      %v694 = vpop.f32.mrf.mxu0
      %v695 = vadd.f32 0.0, %v694
      %v696 = vpop.f32.mrf.mxu0
      %v697 = vpop.f32.mrf.mxu0
      %v698 = vadd.f32 0.0, %v697
      %v699 = vpop.f32.mrf.mxu0
      %700 = vmatprep.mubr.bf16.mxu0 0
      %701 = vmatmul.mubr.bf16.gmra.mxu0 %v488
      %v702 = vpop.f32.mrf.mxu0
      %v703 = vadd.f32 0.0, %v702
      %v704 = vpop.f32.mrf.mxu0
      %v705 = vpop.f32.mrf.mxu0
      %v706 = vadd.f32 0.0, %v705
      %v707 = vpop.f32.mrf.mxu0
      %708 = vmatprep.mubr.bf16.mxu0 0
      %709 = vmatmul.mubr.bf16.gmra.mxu0 %v491
      %v710 = vpop.f32.mrf.mxu0
      %v711 = vadd.f32 0.0, %v710
      %v712 = vpop.f32.mrf.mxu0
      %v713 = vpop.f32.mrf.mxu0
      %v714 = vadd.f32 0.0, %v713
      %v715 = vpop.f32.mrf.mxu0
      %716 = vmatprep.mubr.bf16.mxu0 0
      %717 = vmatmul.mubr.bf16.gmra.mxu0 %v494
      %v718 = vpop.f32.mrf.mxu0
      %v719 = vadd.f32 0.0, %v718
      %v720 = vpop.f32.mrf.mxu0
      %v721 = vpop.f32.mrf.mxu0
      %v722 = vadd.f32 0.0, %v721
      %v723 = vpop.f32.mrf.mxu0
      %724 = vmatprep.mubr.bf16.mxu0 0
      %725 = vmatmul.mubr.bf16.gmra.mxu0 %v497
      %v726 = vpop.f32.mrf.mxu0
      %v727 = vadd.f32 0.0, %v726
      %v728 = vpop.f32.mrf.mxu0
      %v729 = vpop.f32.mrf.mxu0
      %v730 = vadd.f32 0.0, %v729
      %v731 = vpop.f32.mrf.mxu0
      %732 = vmatprep.mubr.bf16.mxu0 0
      %733 = vmatmul.mubr.bf16.gmra.mxu0 %v500
      %v734 = vpop.f32.mrf.mxu0
      %v735 = vadd.f32 0.0, %v734
      %v736 = vpop.f32.mrf.mxu0
      %v737 = vpop.f32.mrf.mxu0
      %v738 = vadd.f32 0.0, %v737
      %v739 = vpop.f32.mrf.mxu0
      %740 = vmatprep.mubr.bf16.mxu0 0
      %741 = vmatmul.mubr.bf16.gmra.mxu0 %v503
      %v742 = vpop.f32.mrf.mxu0
      %v743 = vadd.f32 0.0, %v742
      %v744 = vpop.f32.mrf.mxu0
      %v745 = vpop.f32.mrf.mxu0
      %v746 = vadd.f32 0.0, %v745
      %v747 = vpop.f32.mrf.mxu0
      %748 = vmatprep.mubr.bf16.mxu0 0
      %749 = vmatmul.mubr.bf16.gmra.mxu0 %v506
      %v750 = vpop.f32.mrf.mxu0
      %v751 = vadd.f32 0.0, %v750
      %v752 = vpop.f32.mrf.mxu0
      %v753 = vpop.f32.mrf.mxu0
      %v754 = vadd.f32 0.0, %v753
      %v755 = vpop.f32.mrf.mxu0
      %756 = vmatprep.mubr.bf16.mxu0 0
      %757 = vmatmul.mubr.bf16.gmra.mxu0 %v509
      %v758 = vpop.f32.mrf.mxu0
      %v759 = vadd.f32 0.0, %v758
      %v760 = vpop.f32.mrf.mxu0
      %v761 = vpop.f32.mrf.mxu0
      %v762 = vadd.f32 0.0, %v761
      %v763 = vpop.f32.mrf.mxu0
      %764 = vmatprep.mubr.bf16.mxu0 0
      %765 = vmatmul.mubr.bf16.gmra.mxu0 %v512
      %v766 = vpop.f32.mrf.mxu0
      %v767 = vadd.f32 0.0, %v766
      %v768 = vpop.f32.mrf.mxu0
      %v769 = vpop.f32.mrf.mxu0
      %v770 = vadd.f32 0.0, %v769
      %v771 = vpop.f32.mrf.mxu0
      %772 = vmatprep.mubr.bf16.mxu0 0
      %773 = vmatmul.mubr.bf16.gmra.mxu0 %v515
      %v774 = vpop.f32.mrf.mxu0
      %v775 = vadd.f32 0.0, %v774
      %v776 = vpop.f32.mrf.mxu0
      %v777 = vpop.f32.mrf.mxu0
      %v778 = vadd.f32 0.0, %v777
      %v779 = vpop.f32.mrf.mxu0
      %780 = vmatprep.mubr.bf16.mxu0 0
      %781 = vmatmul.mubr.bf16.gmra.mxu0 %v518
      %v782 = vpop.f32.mrf.mxu0
      %v783 = vadd.f32 0.0, %v782
      %v784 = vpop.f32.mrf.mxu0
      %v785 = vpop.f32.mrf.mxu0
      %v786 = vadd.f32 0.0, %v785
      %v787 = vpop.f32.mrf.mxu0
      %788 = vmatprep.mubr.bf16.mxu0 0
      %789 = vmatmul.mubr.bf16.gmra.mxu0 %v521
      %v790 = vpop.f32.mrf.mxu0
      %v791 = vadd.f32 0.0, %v790
      %v792 = vpop.f32.mrf.mxu0
      %v793 = vpop.f32.mrf.mxu0
      %v794 = vadd.f32 0.0, %v793
      %v795 = vpop.f32.mrf.mxu0
      %796 = vmatprep.mubr.bf16.mxu0 0
      %797 = vmatmul.mubr.bf16.gmra.mxu0 %v524
      %v798 = vpop.f32.mrf.mxu0
      %v799 = vadd.f32 0.0, %v798
      %v800 = vpop.f32.mrf.mxu0
      %v801 = vpop.f32.mrf.mxu0
      %v802 = vadd.f32 0.0, %v801
      %v803 = vpop.f32.mrf.mxu0
      %804 = vmatprep.mubr.bf16.mxu0 0
      %805 = vmatmul.mubr.bf16.gmra.mxu0 %v527
      %v806 = vpop.f32.mrf.mxu0
      %v807 = vadd.f32 0.0, %v806
      %v808 = vpop.f32.mrf.mxu0
      %v809 = vpop.f32.mrf.mxu0
      %v810 = vadd.f32 0.0, %v809
      %v811 = vpop.f32.mrf.mxu0
      %812 = vmatprep.mubr.bf16.mxu0 0
      %813 = vmatmul.mubr.bf16.gmra.mxu0 %v530
      %v814 = vpop.f32.mrf.mxu0
      %v815 = vadd.f32 0.0, %v814
      %v816 = vpop.f32.mrf.mxu0
      %v817 = vpop.f32.mrf.mxu0
      %v818 = vadd.f32 0.0, %v817
      %v819 = vpop.f32.mrf.mxu0
      %820 = vdwg.mxu0
      %821 = vst [vmem:[%s194] sm:$0xff] %v567
      %822 = vst [vmem:[%s194 + $0x8] sm:$0xff] %v570
      %823 = vst [vmem:[%s194 + $0x10] sm:$0xff] %v575
      %824 = vst [vmem:[%s194 + $0x18] sm:$0xff] %v578
      %825 = vst [vmem:[%s194 + $0x20] sm:$0xff] %v583
      %826 = vst [vmem:[%s194 + $0x28] sm:$0xff] %v586
      %827 = vst [vmem:[%s194 + $0x30] sm:$0xff] %v591
      %828 = vst [vmem:[%s194 + $0x38] sm:$0xff] %v594
      %829 = vst [vmem:[%s194 + $0x40] sm:$0xff] %v599
      %830 = vst [vmem:[%s194 + $0x48] sm:$0xff] %v602
      %831 = vst [vmem:[%s194 + $0x50] sm:$0xff] %v607
      %832 = vst [vmem:[%s194 + $0x58] sm:$0xff] %v610
      %833 = vst [vmem:[%s194 + $0x60] sm:$0xff] %v615
      %834 = vst [vmem:[%s194 + $0x68] sm:$0xff] %v618
      %835 = vst [vmem:[%s194 + $0x70] sm:$0xff] %v623
      %836 = vst [vmem:[%s194 + $0x78] sm:$0xff] %v626
      %837 = vst [vmem:[%s194 + $0x80] sm:$0xff] %v631
      %838 = vst [vmem:[%s194 + $0x88] sm:$0xff] %v634
      %839 = vst [vmem:[%s194 + $0x90] sm:$0xff] %v639
      %840 = vst [vmem:[%s194 + $0x98] sm:$0xff] %v642
      %841 = vst [vmem:[%s194 + $0xa0] sm:$0xff] %v647
      %842 = vst [vmem:[%s194 + $0xa8] sm:$0xff] %v650
      %843 = vst [vmem:[%s194 + $0xb0] sm:$0xff] %v655
      %844 = vst [vmem:[%s194 + $0xb8] sm:$0xff] %v658
      %845 = vst [vmem:[%s194 + $0xc0] sm:$0xff] %v663
      %846 = vst [vmem:[%s194 + $0xc8] sm:$0xff] %v666
      %847 = vst [vmem:[%s194 + $0xd0] sm:$0xff] %v671
      %848 = vst [vmem:[%s194 + $0xd8] sm:$0xff] %v674
      %849 = vst [vmem:[%s194 + $0xe0] sm:$0xff] %v679
      %850 = vst [vmem:[%s194 + $0xe8] sm:$0xff] %v682
      %851 = vst [vmem:[%s194 + $0xf0] sm:$0xff] %v687
      %852 = vst [vmem:[%s194 + $0xf8] sm:$0xff] %v690
      %853 = vst [vmem:[%s194 + $0x100] sm:$0xff] %v695
      %854 = vst [vmem:[%s194 + $0x108] sm:$0xff] %v698
      %855 = vst [vmem:[%s194 + $0x110] sm:$0xff] %v703
      %856 = vst [vmem:[%s194 + $0x118] sm:$0xff] %v706
      %857 = vst [vmem:[%s194 + $0x120] sm:$0xff] %v711
      %858 = vst [vmem:[%s194 + $0x128] sm:$0xff] %v714
      %859 = vst [vmem:[%s194 + $0x130] sm:$0xff] %v719
      %860 = vst [vmem:[%s194 + $0x138] sm:$0xff] %v722
      %861 = vst [vmem:[%s194 + $0x140] sm:$0xff] %v727
      %862 = vst [vmem:[%s194 + $0x148] sm:$0xff] %v730
      %863 = vst [vmem:[%s194 + $0x150] sm:$0xff] %v735
      %864 = vst [vmem:[%s194 + $0x158] sm:$0xff] %v738
      %865 = vst [vmem:[%s194 + $0x160] sm:$0xff] %v743
      %866 = vst [vmem:[%s194 + $0x168] sm:$0xff] %v746
      %867 = vst [vmem:[%s194 + $0x170] sm:$0xff] %v751
      %868 = vst [vmem:[%s194 + $0x178] sm:$0xff] %v754
      %869 = vst [vmem:[%s194 + $0x180] sm:$0xff] %v759
      %870 = vst [vmem:[%s194 + $0x188] sm:$0xff] %v762
      %871 = vst [vmem:[%s194 + $0x190] sm:$0xff] %v767
      %872 = vst [vmem:[%s194 + $0x198] sm:$0xff] %v770
      %873 = vst [vmem:[%s194 + $0x1a0] sm:$0xff] %v775
      %874 = vst [vmem:[%s194 + $0x1a8] sm:$0xff] %v778
      %875 = vst [vmem:[%s194 + $0x1b0] sm:$0xff] %v783
      %876 = vst [vmem:[%s194 + $0x1b8] sm:$0xff] %v786
      %877 = vst [vmem:[%s194 + $0x1c0] sm:$0xff] %v791
      %878 = vst [vmem:[%s194 + $0x1c8] sm:$0xff] %v794
      %879 = vst [vmem:[%s194 + $0x1d0] sm:$0xff] %v799
      %880 = vst [vmem:[%s194 + $0x1d8] sm:$0xff] %v802
      %881 = vst [vmem:[%s194 + $0x1e0] sm:$0xff] %v807
      %882 = vst [vmem:[%s194 + $0x1e8] sm:$0xff] %v810
      %883 = vst [vmem:[%s194 + $0x1f0] sm:$0xff] %v815
      %884 = vst [vmem:[%s194 + $0x1f8] sm:$0xff] %v818
      %v885 = vld [vmem:[%s3] sm:$0x1]
      %v886 = vadd.f32 %v567, %v570
      %v887 = vadd.f32 %v886, %v575
      %v888 = vadd.f32 %v887, %v578
      %v889 = vadd.f32 %v888, %v583
      %v890 = vadd.f32 %v889, %v586
      %v891 = vadd.f32 %v890, %v591
      %v892 = vadd.f32 %v891, %v594
      %v893 = vadd.f32 %v892, %v599
      %v894 = vadd.f32 %v893, %v602
      %v895 = vadd.f32 %v894, %v607
      %v896 = vadd.f32 %v895, %v610
      %v897 = vadd.f32 %v896, %v615
      %v898 = vadd.f32 %v897, %v618
      %v899 = vadd.f32 %v898, %v623
      %v900 = vadd.f32 %v899, %v626
      %v901 = vadd.f32 %v900, %v631
      %v902 = vadd.f32 %v901, %v634
      %v903 = vadd.f32 %v902, %v639
      %v904 = vadd.f32 %v903, %v642
      %v905 = vadd.f32 %v904, %v647
      %v906 = vadd.f32 %v905, %v650
      %v907 = vadd.f32 %v906, %v655
      %v908 = vadd.f32 %v907, %v658
      %v909 = vadd.f32 %v908, %v663
      %v910 = vadd.f32 %v909, %v666
      %v911 = vadd.f32 %v910, %v671
      %v912 = vadd.f32 %v911, %v674
      %v913 = vadd.f32 %v912, %v679
      %v914 = vadd.f32 %v913, %v682
      %v915 = vadd.f32 %v914, %v687
      %v916 = vadd.f32 %v915, %v690
      %v917 = vadd.f32 %v916, %v695
      %v918 = vadd.f32 %v917, %v698
      %v919 = vadd.f32 %v918, %v703
      %v920 = vadd.f32 %v919, %v706
      %v921 = vadd.f32 %v920, %v711
      %v922 = vadd.f32 %v921, %v714
      %v923 = vadd.f32 %v922, %v719
      %v924 = vadd.f32 %v923, %v722
      %v925 = vadd.f32 %v924, %v727
      %v926 = vadd.f32 %v925, %v730
      %v927 = vadd.f32 %v926, %v735
      %v928 = vadd.f32 %v927, %v738
      %v929 = vadd.f32 %v928, %v743
      %v930 = vadd.f32 %v929, %v746
      %v931 = vadd.f32 %v930, %v751
      %v932 = vadd.f32 %v931, %v754
      %v933 = vadd.f32 %v932, %v759
      %v934 = vadd.f32 %v933, %v762
      %v935 = vadd.f32 %v934, %v767
      %v936 = vadd.f32 %v935, %v770
      %v937 = vadd.f32 %v936, %v775
      %v938 = vadd.f32 %v937, %v778
      %v939 = vadd.f32 %v938, %v783
      %v940 = vadd.f32 %v939, %v786
      %v941 = vadd.f32 %v940, %v791
      %v942 = vadd.f32 %v941, %v794
      %v943 = vadd.f32 %v942, %v799
      %v944 = vadd.f32 %v943, %v802
      %v945 = vadd.f32 %v944, %v807
      %v946 = vadd.f32 %v945, %v810
      %v947 = vadd.f32 %v946, %v815
      %v948 = vadd.f32 %v947, %v818
      %v949 = vrot.slane %v948, 4
      %v950 = vadd.f32 %v948, %v949
      %v951 = vrot.slane %v950, 2
      %v952 = vadd.f32 %v950, %v951
      %v953 = vrot.slane %v952, 1
      %v954 = vadd.f32 %v952, %v953
      %v955 = vadd.f32 %v885, %v954
      %956 = vst [vmem:[%s3] sm:$0x1] %v955
      %v957 = vld [vmem:[%s4] sm:$0x1]
      %v958 = vmul.f32 %v567, %v567
      %v959 = vmul.f32 %v570, %v570
      %v960 = vmul.f32 %v575, %v575
      %v961 = vmul.f32 %v578, %v578
      %v962 = vmul.f32 %v583, %v583
      %v963 = vmul.f32 %v586, %v586
      %v964 = vmul.f32 %v591, %v591
      %v965 = vmul.f32 %v594, %v594
      %v966 = vmul.f32 %v599, %v599
      %v967 = vmul.f32 %v602, %v602
      %v968 = vmul.f32 %v607, %v607
      %v969 = vmul.f32 %v610, %v610
      %v970 = vmul.f32 %v615, %v615
      %v971 = vmul.f32 %v618, %v618
      %v972 = vmul.f32 %v623, %v623
      %v973 = vmul.f32 %v626, %v626
      %v974 = vmul.f32 %v631, %v631
      %v975 = vmul.f32 %v634, %v634
      %v976 = vmul.f32 %v639, %v639
      %v977 = vmul.f32 %v642, %v642
      %v978 = vmul.f32 %v647, %v647
      %v979 = vmul.f32 %v650, %v650
      %v980 = vmul.f32 %v655, %v655
      %v981 = vmul.f32 %v658, %v658
      %v982 = vmul.f32 %v663, %v663
      %v983 = vmul.f32 %v666, %v666
      %v984 = vmul.f32 %v671, %v671
      %v985 = vmul.f32 %v674, %v674
      %v986 = vmul.f32 %v679, %v679
      %v987 = vmul.f32 %v682, %v682
      %v988 = vmul.f32 %v687, %v687
      %v989 = vmul.f32 %v690, %v690
      %v990 = vmul.f32 %v695, %v695
      %v991 = vmul.f32 %v698, %v698
      %v992 = vmul.f32 %v703, %v703
      %v993 = vmul.f32 %v706, %v706
      %v994 = vmul.f32 %v711, %v711
      %v995 = vmul.f32 %v714, %v714
      %v996 = vmul.f32 %v719, %v719
      %v997 = vmul.f32 %v722, %v722
      %v998 = vmul.f32 %v727, %v727
      %v999 = vmul.f32 %v730, %v730
      %v1000 = vmul.f32 %v735, %v735
      %v1001 = vmul.f32 %v738, %v738
      %v1002 = vmul.f32 %v743, %v743
      %v1003 = vmul.f32 %v746, %v746
      %v1004 = vmul.f32 %v751, %v751
      %v1005 = vmul.f32 %v754, %v754
      %v1006 = vmul.f32 %v759, %v759
      %v1007 = vmul.f32 %v762, %v762
      %v1008 = vmul.f32 %v767, %v767
      %v1009 = vmul.f32 %v770, %v770
      %v1010 = vmul.f32 %v775, %v775
      %v1011 = vmul.f32 %v778, %v778
      %v1012 = vmul.f32 %v783, %v783
      %v1013 = vmul.f32 %v786, %v786
      %v1014 = vmul.f32 %v791, %v791
      %v1015 = vmul.f32 %v794, %v794
      %v1016 = vmul.f32 %v799, %v799
      %v1017 = vmul.f32 %v802, %v802
      %v1018 = vmul.f32 %v807, %v807
      %v1019 = vmul.f32 %v810, %v810
      %v1020 = vmul.f32 %v815, %v815
      %v1021 = vmul.f32 %v818, %v818
      %v1022 = vadd.f32 %v958, %v959
      %v1023 = vadd.f32 %v1022, %v960
      %v1024 = vadd.f32 %v1023, %v961
      %v1025 = vadd.f32 %v1024, %v962
      %v1026 = vadd.f32 %v1025, %v963
      %v1027 = vadd.f32 %v1026, %v964
      %v1028 = vadd.f32 %v1027, %v965
      %v1029 = vadd.f32 %v1028, %v966
      %v1030 = vadd.f32 %v1029, %v967
      %v1031 = vadd.f32 %v1030, %v968
      %v1032 = vadd.f32 %v1031, %v969
      %v1033 = vadd.f32 %v1032, %v970
      %v1034 = vadd.f32 %v1033, %v971
      %v1035 = vadd.f32 %v1034, %v972
      %v1036 = vadd.f32 %v1035, %v973
      %v1037 = vadd.f32 %v1036, %v974
      %v1038 = vadd.f32 %v1037, %v975
      %v1039 = vadd.f32 %v1038, %v976
      %v1040 = vadd.f32 %v1039, %v977
      %v1041 = vadd.f32 %v1040, %v978
      %v1042 = vadd.f32 %v1041, %v979
      %v1043 = vadd.f32 %v1042, %v980
      %v1044 = vadd.f32 %v1043, %v981
      %v1045 = vadd.f32 %v1044, %v982
      %v1046 = vadd.f32 %v1045, %v983
      %v1047 = vadd.f32 %v1046, %v984
      %v1048 = vadd.f32 %v1047, %v985
      %v1049 = vadd.f32 %v1048, %v986
      %v1050 = vadd.f32 %v1049, %v987
      %v1051 = vadd.f32 %v1050, %v988
      %v1052 = vadd.f32 %v1051, %v989
      %v1053 = vadd.f32 %v1052, %v990
      %v1054 = vadd.f32 %v1053, %v991
      %v1055 = vadd.f32 %v1054, %v992
      %v1056 = vadd.f32 %v1055, %v993
      %v1057 = vadd.f32 %v1056, %v994
      %v1058 = vadd.f32 %v1057, %v995
      %v1059 = vadd.f32 %v1058, %v996
      %v1060 = vadd.f32 %v1059, %v997
      %v1061 = vadd.f32 %v1060, %v998
      %v1062 = vadd.f32 %v1061, %v999
      %v1063 = vadd.f32 %v1062, %v1000
      %v1064 = vadd.f32 %v1063, %v1001
      %v1065 = vadd.f32 %v1064, %v1002
      %v1066 = vadd.f32 %v1065, %v1003
      %v1067 = vadd.f32 %v1066, %v1004
      %v1068 = vadd.f32 %v1067, %v1005
      %v1069 = vadd.f32 %v1068, %v1006
      %v1070 = vadd.f32 %v1069, %v1007
      %v1071 = vadd.f32 %v1070, %v1008
      %v1072 = vadd.f32 %v1071, %v1009
      %v1073 = vadd.f32 %v1072, %v1010
      %v1074 = vadd.f32 %v1073, %v1011
      %v1075 = vadd.f32 %v1074, %v1012
      %v1076 = vadd.f32 %v1075, %v1013
      %v1077 = vadd.f32 %v1076, %v1014
      %v1078 = vadd.f32 %v1077, %v1015
      %v1079 = vadd.f32 %v1078, %v1016
      %v1080 = vadd.f32 %v1079, %v1017
      %v1081 = vadd.f32 %v1080, %v1018
      %v1082 = vadd.f32 %v1081, %v1019
      %v1083 = vadd.f32 %v1082, %v1020
      %v1084 = vadd.f32 %v1083, %v1021
      %v1085 = vrot.slane %v1084, 4
      %v1086 = vadd.f32 %v1084, %v1085
      %v1087 = vrot.slane %v1086, 2
      %v1088 = vadd.f32 %v1086, %v1087
      %v1089 = vrot.slane %v1088, 1
      %v1090 = vadd.f32 %v1088, %v1089
      %v1091 = vadd.f32 %v957, %v1090
      %1092 = vst [vmem:[%s4] sm:$0x1] %v1091
      %s1093 = smul.u32 64, %s16
      %p1094 = scmp.lt.s32.totalorder %s1093, 255
      %s1095 = scalar_select %p1094, %s1093, 255
      %s1096 = smul.addr %s1095, 8
      %s1097 = scalar_lea.vmem %s2, %s1096
      // Predicated region
      $region33: #{_device_pipeline.5} parent=27 // pred_check
        %p1098 = pneg %p81
      $region34: #{_device_pipeline.5} parent=27 // pred_check_branch
        %1100 = sbr.rel (%p1098) target = $region36
      $region35: #{_device_pipeline.5} parent=27 // pred_region
        %s1101 = smul.u32 64, %s16
      $region36: #{_device_pipeline.5} parent=27 // pred_fallthru
        _
      // Predicated region
      $region37: #{_device_pipeline.5} parent=27 // pred_check
        %p1102 = pneg %p102
      $region38: #{_device_pipeline.5} parent=27 // pred_check_branch
        %1104 = sbr.rel (%p1102) target = $region40
      $region39: #{_device_pipeline.5} parent=27 // pred_region
        _
      $region40: #{_device_pipeline.5} parent=27 // pred_fallthru
        _
      // Predicated region
      $region41: #{_device_pipeline.5} parent=27 // pred_check
        %p1105 = pneg %p123
      $region42: #{_device_pipeline.5} parent=27 // pred_check_branch
        %1107 = sbr.rel (%p1105) target = $region44
      $region43: #{_device_pipeline.5} parent=27 // pred_region
        _
      $region44: #{_device_pipeline.5} parent=27 // pred_fallthru
        _
      // Predicated region
      $region45: #{_device_pipeline.5} parent=27 // pred_check
        %p1108 = pneg %p102
      $region46: #{_device_pipeline.5} parent=27 // pred_check_branch
        %1110 = sbr.rel (%p1108) target = $region48
      $region47: #{_device_pipeline.5} parent=27 // pred_region
        _
      $region48: #{_device_pipeline.5} parent=27 // pred_fallthru
        _
      // Predicated region
      $region49: #{_device_pipeline.5} parent=27 // pred_check
        %p1111 = pneg %p123
      $region50: #{_device_pipeline.5} parent=27 // pred_check_branch
        %1113 = sbr.rel (%p1111) target = $region52
      $region51: #{_device_pipeline.5} parent=27 // pred_region
        _
      $region52: #{_device_pipeline.5} parent=27 // pred_fallthru
        _
    $region28: #{_device_pipeline.5} parent=5 // pred_fallthru
      _
    %p1114 = scmp.le.s32.totalorder 2, %s11
    // Predicated region
    $region53: #{_device_pipeline.5} parent=5 // pred_check
      %p1115 = pneg %p1114
    $region54: #{_device_pipeline.5} parent=5 // pred_check_branch
      %1117 = sbr.rel (%p1115) target = $region56
    $region55: #{_device_pipeline.5} parent=5 // pred_region
      %s1118 = ssub.s32 %s11, 2
      // Predicated region
      $region57: #{_device_pipeline.5} parent=55 // pred_check
        %p1119 = pneg %p87
      $region58: #{_device_pipeline.5} parent=55 // pred_check_branch
        %1121 = sbr.rel (%p1119) target = $region60
      $region59: #{_device_pipeline.5} parent=55 // pred_region
        %s1122 = smul.u32 64, %s17
        %p1123 = scmp.lt.s32.totalorder %s1122, 255
        %s1124 = scalar_select %p1123, %s1122, 255
        %s1125 = smul.addr %s1124, 8
        %s1126 = scalar_lea.vmem %s2, %s1125
      $region60: #{_device_pipeline.5} parent=55 // pred_fallthru
        _
    $region56: #{_device_pipeline.5} parent=5 // pred_fallthru
      _
  $region6: #{_device_pipeline.5} parent=0 // loop_footer
    %s15 = sadd.s32 1, %s11
  $region7: #{_device_pipeline.5} parent=0 // loop_footer_branch
    %10 = sbr.rel target = $region3
  $region8: #{_device_pipeline.5} parent=0 // loop_exit
    _

// kernel: _device_pipeline.6
$region0: #{_device_pipeline.6}
  #allocation0 [shape = 'u32[]', space=smem, size = 0x4, offset = 0x4, fixed_abs, tag = 'smem constant byte address 0x4 - core index']
  #allocation1 [shape = 'u32[144,128]{1,0:T(1,128)}', space=vmem, size = 0x12000, scoped, tag = 'internal scratch']
  %s0 = inlined_call_operand.vmem [shape: f32[2048,128], index: 0, kind: input, shape index: {}]
  %s1 = inlined_call_operand.vmem [shape: f32[1,128], index: 1, kind: input, shape index: {}]
  %s2 = inlined_call_operand.vmem [shape: f32[1,128], index: 2, kind: input, shape index: {}]
  %s3 = inlined_call_operand.vmem [shape: bf16[128,128], index: 3, kind: input, shape index: {}]
  %s4 = inlined_call_operand.vmem [shape: f32[2048,128], index: 4, kind: output, shape index: {}]
  %s5 = sld [smem:[#allocation0]]
  $region49: #{_device_pipeline.6} parent=0
    _
  %s7 = ssub.s32 1, %s5
  %s8 = scalar_select 0, %s7, %s5
  loop: start=0, step=1, limit=6
  $region2: #{_device_pipeline.6} parent=0 // loop_pre_header
    _
  $region3: #{_device_pipeline.6} parent=0 // loop_header
    %s10 = sphi 0, %s14
    %p11 = scmp.ge.s32.totalorder %s10, 6
    %s20 = sphi 0, %s22
    %s23 = sphi 0, %s20
    %s24 = sphi 0, %s23
    %s40 = sphi 0, %s24
    %s44 = sphi 0, %s44
    %s46 = sphi 0, %s44
    %s47 = sphi 0, %s46
    %s61 = sphi 0, %s47
    %s65 = sphi 0, %s65
    %s67 = sphi 0, %s65
    %s68 = sphi 0, %s67
    %s82 = sphi 0, %s68
    %s86 = sphi 0, %s86
    %s88 = sphi 0, %s86
    %s89 = sphi 0, %s88
    %s103 = sphi 0, %s89
    %s109 = sphi 0, %s111
    %s112 = sphi 0, %s109
    %s113 = sphi 0, %s112
    %s129 = sphi 0, %s113
  $region4: #{_device_pipeline.6} parent=0 // loop_header_branch
    %13 = sbr.rel (%p11) target = $region8
  $region5: #{_device_pipeline.6} parent=0 // loop_body
    %s15 = ssub.s32 %s10, 1
    %s16 = ssub.s32 %s10, 2
    %s17 = sadd.s32 %s10, 1
    %s18 = ssub.s32 %s10, %s17
    %p19 = scmp.eq.s32.totalorder %s18, 0
    %s21 = sadd.s32 %s20, 1
    %s22 = scalar_select %p19, %s20, %s21
    %p25 = pneg %p19
    %p26 = scmp.eq.s32.totalorder %s10, 3
    %p27 = por %p25, %p26
    %p28 = scmp.ne.s32.totalorder %s20, %s23
    %p29 = scmp.eq.s32.totalorder %s10, 0
    %p30 = por %p28, %p29
    %p31 = scmp.ne.s32.totalorder %s20, %s23
    %p32 = scmp.eq.s32.totalorder %s15, 3
    %p33 = por %p31, %p32
    %p34 = scmp.ne.s32.totalorder %s23, %s24
    %p35 = scmp.eq.s32.totalorder %s15, 0
    %p36 = por %p34, %p35
    %p37 = scmp.ne.s32.totalorder %s23, %s24
    %p38 = scmp.eq.s32.totalorder %s16, 3
    %p39 = por %p37, %p38
    %p41 = scmp.ne.s32.totalorder %s24, %s40
    %p42 = scmp.eq.s32.totalorder %s16, 0
    %p43 = por %p41, %p42
    %s45 = sadd.s32 %s44, 1
    %p48 = scmp.eq.s32.totalorder %s10, 3
    %p49 = scmp.ne.s32.totalorder %s44, %s46
    %p50 = scmp.eq.s32.totalorder %s10, 0
    %p51 = por %p49, %p50
    %p52 = scmp.ne.s32.totalorder %s44, %s46
    %p53 = scmp.eq.s32.totalorder %s15, 3
    %p54 = por %p52, %p53
    %p55 = scmp.ne.s32.totalorder %s46, %s47
    %p56 = scmp.eq.s32.totalorder %s15, 0
    %p57 = por %p55, %p56
    %p58 = scmp.ne.s32.totalorder %s46, %s47
    %p59 = scmp.eq.s32.totalorder %s16, 3
    %p60 = por %p58, %p59
    %p62 = scmp.ne.s32.totalorder %s47, %s61
    %p63 = scmp.eq.s32.totalorder %s16, 0
    %p64 = por %p62, %p63
    %s66 = sadd.s32 %s65, 1
    %p69 = scmp.eq.s32.totalorder %s10, 3
    %p70 = scmp.ne.s32.totalorder %s65, %s67
    %p71 = scmp.eq.s32.totalorder %s10, 0
    %p72 = por %p70, %p71
    %p73 = scmp.ne.s32.totalorder %s65, %s67
    %p74 = scmp.eq.s32.totalorder %s15, 3
    %p75 = por %p73, %p74
    %p76 = scmp.ne.s32.totalorder %s67, %s68
    %p77 = scmp.eq.s32.totalorder %s15, 0
    %p78 = por %p76, %p77
    %p79 = scmp.ne.s32.totalorder %s67, %s68
    %p80 = scmp.eq.s32.totalorder %s16, 3
    %p81 = por %p79, %p80
    %p83 = scmp.ne.s32.totalorder %s68, %s82
    %p84 = scmp.eq.s32.totalorder %s16, 0
    %p85 = por %p83, %p84
    %s87 = sadd.s32 %s86, 1
    %p90 = scmp.eq.s32.totalorder %s10, 3
    %p91 = scmp.ne.s32.totalorder %s86, %s88
    %p92 = scmp.eq.s32.totalorder %s10, 0
    %p93 = por %p91, %p92
    %p94 = scmp.ne.s32.totalorder %s86, %s88
    %p95 = scmp.eq.s32.totalorder %s15, 3
    %p96 = por %p94, %p95
    %p97 = scmp.ne.s32.totalorder %s88, %s89
    %p98 = scmp.eq.s32.totalorder %s15, 0
    %p99 = por %p97, %p98
    %p100 = scmp.ne.s32.totalorder %s88, %s89
    %p101 = scmp.eq.s32.totalorder %s16, 3
    %p102 = por %p100, %p101
    %p104 = scmp.ne.s32.totalorder %s89, %s103
    %p105 = scmp.eq.s32.totalorder %s16, 0
    %p106 = por %p104, %p105
    %s107 = ssub.s32 %s10, %s17
    %p108 = scmp.eq.s32.totalorder %s107, 0
    %s110 = sadd.s32 %s109, 1
    %s111 = scalar_select %p108, %s109, %s110
    %p114 = pneg %p108
    %p115 = scmp.eq.s32.totalorder %s10, 3
    %p116 = por %p114, %p115
    %p117 = scmp.ne.s32.totalorder %s109, %s112
    %p118 = scmp.eq.s32.totalorder %s10, 0
    %p119 = por %p117, %p118
    %p120 = scmp.ne.s32.totalorder %s109, %s112
    %p121 = scmp.eq.s32.totalorder %s15, 3
    %p122 = por %p120, %p121
    %p123 = scmp.ne.s32.totalorder %s112, %s113
    %p124 = scmp.eq.s32.totalorder %s15, 0
    %p125 = por %p123, %p124
    %p126 = scmp.ne.s32.totalorder %s112, %s113
    %p127 = scmp.eq.s32.totalorder %s16, 3
    %p128 = por %p126, %p127
    %p130 = scmp.ne.s32.totalorder %s113, %s129
    %p131 = scmp.eq.s32.totalorder %s16, 0
    %p132 = por %p130, %p131
    %p133 = scmp.le.s32.totalorder 1, %s10
    %p134 = scmp.lt.s32.totalorder %s10, 5
    %p135 = pnand %p133, %p134
    %p136 = pneg %p135
    // Predicated region
    $region9: #{_device_pipeline.6} parent=5 // pred_check
      _
    $region10: #{_device_pipeline.6} parent=5 // pred_check_branch
      %138 = sbr.rel (%p135) target = $region12
    $region11: #{_device_pipeline.6} parent=5 // pred_region
      %s139 = ssub.s32 %s10, 1
      // Predicated region
      $region13: #{_device_pipeline.6} parent=11 // pred_check
        %p140 = pneg %p57
      $region14: #{_device_pipeline.6} parent=11 // pred_check_branch
        %142 = sbr.rel (%p140) target = $region16
      $region15: #{_device_pipeline.6} parent=11 // pred_region
        _
      $region16: #{_device_pipeline.6} parent=11 // pred_fallthru
        _
      // Predicated region
      $region17: #{_device_pipeline.6} parent=11 // pred_check
        %p143 = pneg %p78
      $region18: #{_device_pipeline.6} parent=11 // pred_check_branch
        %145 = sbr.rel (%p143) target = $region20
      $region19: #{_device_pipeline.6} parent=11 // pred_region
        _
      $region20: #{_device_pipeline.6} parent=11 // pred_fallthru
        _
      // Predicated region
      $region21: #{_device_pipeline.6} parent=11 // pred_check
        %p146 = pneg %p99
      $region22: #{_device_pipeline.6} parent=11 // pred_check_branch
        %148 = sbr.rel (%p146) target = $region24
      $region23: #{_device_pipeline.6} parent=11 // pred_region
        _
      $region24: #{_device_pipeline.6} parent=11 // pred_fallthru
        _
    $region12: #{_device_pipeline.6} parent=5 // pred_fallthru
      _
    %p149 = scmp.lt.s32.totalorder %s10, 4
    // Predicated region
    $region25: #{_device_pipeline.6} parent=5 // pred_check
      %p150 = pneg %p149
    $region26: #{_device_pipeline.6} parent=5 // pred_check_branch
      %152 = sbr.rel (%p150) target = $region28
    $region27: #{_device_pipeline.6} parent=5 // pred_region
      // Predicated region
      $region29: #{_device_pipeline.6} parent=27 // pred_check
        %p153 = pneg %p30
      $region30: #{_device_pipeline.6} parent=27 // pred_check_branch
        %155 = sbr.rel (%p153) target = $region32
      $region31: #{_device_pipeline.6} parent=27 // pred_region
        %s156 = smul.u32 64, %s10
        %p157 = scmp.lt.s32.totalorder %s156, 255
        %s158 = scalar_select %p157, %s156, 255
        %s159 = smul.addr %s158, 8
        %s160 = scalar_lea.vmem %s0, %s159
        %s161 = smul.u32 64, %s10
      $region32: #{_device_pipeline.6} parent=27 // pred_fallthru
        _
    $region28: #{_device_pipeline.6} parent=5 // pred_fallthru
      _
    %p162 = scmp.le.s32.totalorder 1, %s10
    %p163 = scmp.lt.s32.totalorder %s10, 5
    %p164 = pnand %p162, %p163
    %p165 = pneg %p164
    // Predicated region
    $region33: #{_device_pipeline.6} parent=5 // pred_check
      _
    $region34: #{_device_pipeline.6} parent=5 // pred_check_branch
      %167 = sbr.rel (%p164) target = $region36
    $region35: #{_device_pipeline.6} parent=5 // pred_region
      %s168 = ssub.s32 %s10, 1
      %s169 = smul.u32 64, %s15
      %p170 = scmp.lt.s32.totalorder %s169, 255
      %s171 = scalar_select %p170, %s169, 255
      %s172 = smul.addr %s171, 8
      %s173 = scalar_lea.vmem %s0, %s172
      %p174 = pneg %p36
      %p175 = pneg %p33
      %p176 = pneg %p57
      %p177 = pneg %p54
      %p178 = pneg %p78
      %p179 = pneg %p75
      %p180 = pneg %p99
      %p181 = pneg %p96
      %p182 = pneg %p125
      %p183 = pneg %p122
      %s184 = smul.u32 64, %s15
      %p185 = scmp.lt.s32.totalorder %s184, 255
      %s186 = scalar_select %p185, %s184, 255
      %s187 = smul.addr %s186, 8
      %s188 = scalar_lea.vmem %s4, %s187
      %s189 = smul.u32 64, %s15
      %p190 = scmp.lt.s32.totalorder %s189, 255
      %s191 = scalar_select %p190, %s189, 255
      %s192 = smul.addr %s191, 8
      %s193 = scalar_lea.vmem %s0, %s192
      %s194 = smul.u32 64, %s15
      %s195 = smul.u32 64, %s15
      %p196 = scmp.lt.s32.totalorder %s195, 255
      %s197 = scalar_select %p196, %s195, 255
      %s198 = smul.addr %s197, 8
      %s199 = scalar_lea.vmem %s4, %s198
      %s200 = smul.u32 64, %s15
      %v202 = vld [vmem:[%s193] sm:$0xff]
      %v203 = vld [vmem:[%s193 + $0x8] sm:$0xff]
      %v204 = vld [vmem:[%s193 + $0x10] sm:$0xff]
      %v205 = vld [vmem:[%s193 + $0x18] sm:$0xff]
      %v206 = vld [vmem:[%s193 + $0x20] sm:$0xff]
      %v207 = vld [vmem:[%s193 + $0x28] sm:$0xff]
      %v208 = vld [vmem:[%s193 + $0x30] sm:$0xff]
      %v209 = vld [vmem:[%s193 + $0x38] sm:$0xff]
      %v210 = vld [vmem:[%s193 + $0x40] sm:$0xff]
      %v211 = vld [vmem:[%s193 + $0x48] sm:$0xff]
      %v212 = vld [vmem:[%s193 + $0x50] sm:$0xff]
      %v213 = vld [vmem:[%s193 + $0x58] sm:$0xff]
      %v214 = vld [vmem:[%s193 + $0x60] sm:$0xff]
      %v215 = vld [vmem:[%s193 + $0x68] sm:$0xff]
      %v216 = vld [vmem:[%s193 + $0x70] sm:$0xff]
      %v217 = vld [vmem:[%s193 + $0x78] sm:$0xff]
      %v218 = vld [vmem:[%s193 + $0x80] sm:$0xff]
      %v219 = vld [vmem:[%s193 + $0x88] sm:$0xff]
      %v220 = vld [vmem:[%s193 + $0x90] sm:$0xff]
      %v221 = vld [vmem:[%s193 + $0x98] sm:$0xff]
      %v222 = vld [vmem:[%s193 + $0xa0] sm:$0xff]
      %v223 = vld [vmem:[%s193 + $0xa8] sm:$0xff]
      %v224 = vld [vmem:[%s193 + $0xb0] sm:$0xff]
      %v225 = vld [vmem:[%s193 + $0xb8] sm:$0xff]
      %v226 = vld [vmem:[%s193 + $0xc0] sm:$0xff]
      %v227 = vld [vmem:[%s193 + $0xc8] sm:$0xff]
      %v228 = vld [vmem:[%s193 + $0xd0] sm:$0xff]
      %v229 = vld [vmem:[%s193 + $0xd8] sm:$0xff]
      %v230 = vld [vmem:[%s193 + $0xe0] sm:$0xff]
      %v231 = vld [vmem:[%s193 + $0xe8] sm:$0xff]
      %v232 = vld [vmem:[%s193 + $0xf0] sm:$0xff]
      %v233 = vld [vmem:[%s193 + $0xf8] sm:$0xff]
      %v234 = vld [vmem:[%s193 + $0x100] sm:$0xff]
      %v235 = vld [vmem:[%s193 + $0x108] sm:$0xff]
      %v236 = vld [vmem:[%s193 + $0x110] sm:$0xff]
      %v237 = vld [vmem:[%s193 + $0x118] sm:$0xff]
      %v238 = vld [vmem:[%s193 + $0x120] sm:$0xff]
      %v239 = vld [vmem:[%s193 + $0x128] sm:$0xff]
      %v240 = vld [vmem:[%s193 + $0x130] sm:$0xff]
      %v241 = vld [vmem:[%s193 + $0x138] sm:$0xff]
      %v242 = vld [vmem:[%s193 + $0x140] sm:$0xff]
      %v243 = vld [vmem:[%s193 + $0x148] sm:$0xff]
      %v244 = vld [vmem:[%s193 + $0x150] sm:$0xff]
      %v245 = vld [vmem:[%s193 + $0x158] sm:$0xff]
      %v246 = vld [vmem:[%s193 + $0x160] sm:$0xff]
      %v247 = vld [vmem:[%s193 + $0x168] sm:$0xff]
      %v248 = vld [vmem:[%s193 + $0x170] sm:$0xff]
      %v249 = vld [vmem:[%s193 + $0x178] sm:$0xff]
      %v250 = vld [vmem:[%s193 + $0x180] sm:$0xff]
      %v251 = vld [vmem:[%s193 + $0x188] sm:$0xff]
      %v252 = vld [vmem:[%s193 + $0x190] sm:$0xff]
      %v253 = vld [vmem:[%s193 + $0x198] sm:$0xff]
      %v254 = vld [vmem:[%s193 + $0x1a0] sm:$0xff]
      %v255 = vld [vmem:[%s193 + $0x1a8] sm:$0xff]
      %v256 = vld [vmem:[%s193 + $0x1b0] sm:$0xff]
      %v257 = vld [vmem:[%s193 + $0x1b8] sm:$0xff]
      %v258 = vld [vmem:[%s193 + $0x1c0] sm:$0xff]
      %v259 = vld [vmem:[%s193 + $0x1c8] sm:$0xff]
      %v260 = vld [vmem:[%s193 + $0x1d0] sm:$0xff]
      %v261 = vld [vmem:[%s193 + $0x1d8] sm:$0xff]
      %v262 = vld [vmem:[%s193 + $0x1e0] sm:$0xff]
      %v263 = vld [vmem:[%s193 + $0x1e8] sm:$0xff]
      %v264 = vld [vmem:[%s193 + $0x1f0] sm:$0xff]
      %v265 = vld [vmem:[%s193 + $0x1f8] sm:$0xff]
      %v266 = vld [vmem:[%s1] sm:$0x1]
      %v268 = vlaneseq
      %v269 = vshrl.u32 %v268, 7
      %v270 = vsub.s32 0, %v269
      %v271 = vrot.slane %v266, %v270
      %v273 = vmul.f32 %v202, %v271
      %v274 = vmul.f32 %v203, %v271
      %v275 = vmul.f32 %v204, %v271
      %v276 = vmul.f32 %v205, %v271
      %v277 = vmul.f32 %v206, %v271
      %v278 = vmul.f32 %v207, %v271
      %v279 = vmul.f32 %v208, %v271
      %v280 = vmul.f32 %v209, %v271
      %v281 = vmul.f32 %v210, %v271
      %v282 = vmul.f32 %v211, %v271
      %v283 = vmul.f32 %v212, %v271
      %v284 = vmul.f32 %v213, %v271
      %v285 = vmul.f32 %v214, %v271
      %v286 = vmul.f32 %v215, %v271
      %v287 = vmul.f32 %v216, %v271
      %v288 = vmul.f32 %v217, %v271
      %v289 = vmul.f32 %v218, %v271
      %v290 = vmul.f32 %v219, %v271
      %v291 = vmul.f32 %v220, %v271
      %v292 = vmul.f32 %v221, %v271
      %v293 = vmul.f32 %v222, %v271
      %v294 = vmul.f32 %v223, %v271
      %v295 = vmul.f32 %v224, %v271
      %v296 = vmul.f32 %v225, %v271
      %v297 = vmul.f32 %v226, %v271
      %v298 = vmul.f32 %v227, %v271
      %v299 = vmul.f32 %v228, %v271
      %v300 = vmul.f32 %v229, %v271
      %v301 = vmul.f32 %v230, %v271
      %v302 = vmul.f32 %v231, %v271
      %v303 = vmul.f32 %v232, %v271
      %v304 = vmul.f32 %v233, %v271
      %v305 = vmul.f32 %v234, %v271
      %v306 = vmul.f32 %v235, %v271
      %v307 = vmul.f32 %v236, %v271
      %v308 = vmul.f32 %v237, %v271
      %v309 = vmul.f32 %v238, %v271
      %v310 = vmul.f32 %v239, %v271
      %v311 = vmul.f32 %v240, %v271
      %v312 = vmul.f32 %v241, %v271
      %v313 = vmul.f32 %v242, %v271
      %v314 = vmul.f32 %v243, %v271
      %v315 = vmul.f32 %v244, %v271
      %v316 = vmul.f32 %v245, %v271
      %v317 = vmul.f32 %v246, %v271
      %v318 = vmul.f32 %v247, %v271
      %v319 = vmul.f32 %v248, %v271
      %v320 = vmul.f32 %v249, %v271
      %v321 = vmul.f32 %v250, %v271
      %v322 = vmul.f32 %v251, %v271
      %v323 = vmul.f32 %v252, %v271
      %v324 = vmul.f32 %v253, %v271
      %v325 = vmul.f32 %v254, %v271
      %v326 = vmul.f32 %v255, %v271
      %v327 = vmul.f32 %v256, %v271
      %v328 = vmul.f32 %v257, %v271
      %v329 = vmul.f32 %v258, %v271
      %v330 = vmul.f32 %v259, %v271
      %v331 = vmul.f32 %v260, %v271
      %v332 = vmul.f32 %v261, %v271
      %v333 = vmul.f32 %v262, %v271
      %v334 = vmul.f32 %v263, %v271
      %v335 = vmul.f32 %v264, %v271
      %v336 = vmul.f32 %v265, %v271
      %v337 = vld [vmem:[%s2] sm:$0x1]
      %v339 = vlaneseq
      %v340 = vshrl.u32 %v339, 7
      %v341 = vsub.s32 0, %v340
      %v342 = vrot.slane %v337, %v341
      %v344 = vadd.f32 %v273, %v342
      %v345 = vadd.f32 %v274, %v342
      %v346 = vadd.f32 %v275, %v342
      %v347 = vadd.f32 %v276, %v342
      %v348 = vadd.f32 %v277, %v342
      %v349 = vadd.f32 %v278, %v342
      %v350 = vadd.f32 %v279, %v342
      %v351 = vadd.f32 %v280, %v342
      %v352 = vadd.f32 %v281, %v342
      %v353 = vadd.f32 %v282, %v342
      %v354 = vadd.f32 %v283, %v342
      %v355 = vadd.f32 %v284, %v342
      %v356 = vadd.f32 %v285, %v342
      %v357 = vadd.f32 %v286, %v342
      %v358 = vadd.f32 %v287, %v342
      %v359 = vadd.f32 %v288, %v342
      %v360 = vadd.f32 %v289, %v342
      %v361 = vadd.f32 %v290, %v342
      %v362 = vadd.f32 %v291, %v342
      %v363 = vadd.f32 %v292, %v342
      %v364 = vadd.f32 %v293, %v342
      %v365 = vadd.f32 %v294, %v342
      %v366 = vadd.f32 %v295, %v342
      %v367 = vadd.f32 %v296, %v342
      %v368 = vadd.f32 %v297, %v342
      %v369 = vadd.f32 %v298, %v342
      %v370 = vadd.f32 %v299, %v342
      %v371 = vadd.f32 %v300, %v342
      %v372 = vadd.f32 %v301, %v342
      %v373 = vadd.f32 %v302, %v342
      %v374 = vadd.f32 %v303, %v342
      %v375 = vadd.f32 %v304, %v342
      %v376 = vadd.f32 %v305, %v342
      %v377 = vadd.f32 %v306, %v342
      %v378 = vadd.f32 %v307, %v342
      %v379 = vadd.f32 %v308, %v342
      %v380 = vadd.f32 %v309, %v342
      %v381 = vadd.f32 %v310, %v342
      %v382 = vadd.f32 %v311, %v342
      %v383 = vadd.f32 %v312, %v342
      %v384 = vadd.f32 %v313, %v342
      %v385 = vadd.f32 %v314, %v342
      %v386 = vadd.f32 %v315, %v342
      %v387 = vadd.f32 %v316, %v342
      %v388 = vadd.f32 %v317, %v342
      %v389 = vadd.f32 %v318, %v342
      %v390 = vadd.f32 %v319, %v342
      %v391 = vadd.f32 %v320, %v342
      %v392 = vadd.f32 %v321, %v342
      %v393 = vadd.f32 %v322, %v342
      %v394 = vadd.f32 %v323, %v342
      %v395 = vadd.f32 %v324, %v342
      %v396 = vadd.f32 %v325, %v342
      %v397 = vadd.f32 %v326, %v342
      %v398 = vadd.f32 %v327, %v342
      %v399 = vadd.f32 %v328, %v342
      %v400 = vadd.f32 %v329, %v342
      %v401 = vadd.f32 %v330, %v342
      %v402 = vadd.f32 %v331, %v342
      %v403 = vadd.f32 %v332, %v342
      %v404 = vadd.f32 %v333, %v342
      %v405 = vadd.f32 %v334, %v342
      %v406 = vadd.f32 %v335, %v342
      %v407 = vadd.f32 %v336, %v342
      %v408 = vmax.f32 %v344, 0.0
      %v409 = vmax.f32 %v345, 0.0
      %v410 = vmax.f32 %v346, 0.0
      %v411 = vmax.f32 %v347, 0.0
      %v412 = vmax.f32 %v348, 0.0
      %v413 = vmax.f32 %v349, 0.0
      %v414 = vmax.f32 %v350, 0.0
      %v415 = vmax.f32 %v351, 0.0
      %v416 = vmax.f32 %v352, 0.0
      %v417 = vmax.f32 %v353, 0.0
      %v418 = vmax.f32 %v354, 0.0
      %v419 = vmax.f32 %v355, 0.0
      %v420 = vmax.f32 %v356, 0.0
      %v421 = vmax.f32 %v357, 0.0
      %v422 = vmax.f32 %v358, 0.0
      %v423 = vmax.f32 %v359, 0.0
      %v424 = vmax.f32 %v360, 0.0
      %v425 = vmax.f32 %v361, 0.0
      %v426 = vmax.f32 %v362, 0.0
      %v427 = vmax.f32 %v363, 0.0
      %v428 = vmax.f32 %v364, 0.0
      %v429 = vmax.f32 %v365, 0.0
      %v430 = vmax.f32 %v366, 0.0
      %v431 = vmax.f32 %v367, 0.0
      %v432 = vmax.f32 %v368, 0.0
      %v433 = vmax.f32 %v369, 0.0
      %v434 = vmax.f32 %v370, 0.0
      %v435 = vmax.f32 %v371, 0.0
      %v436 = vmax.f32 %v372, 0.0
      %v437 = vmax.f32 %v373, 0.0
      %v438 = vmax.f32 %v374, 0.0
      %v439 = vmax.f32 %v375, 0.0
      %v440 = vmax.f32 %v376, 0.0
      %v441 = vmax.f32 %v377, 0.0
      %v442 = vmax.f32 %v378, 0.0
      %v443 = vmax.f32 %v379, 0.0
      %v444 = vmax.f32 %v380, 0.0
      %v445 = vmax.f32 %v381, 0.0
      %v446 = vmax.f32 %v382, 0.0
      %v447 = vmax.f32 %v383, 0.0
      %v448 = vmax.f32 %v384, 0.0
      %v449 = vmax.f32 %v385, 0.0
      %v450 = vmax.f32 %v386, 0.0
      %v451 = vmax.f32 %v387, 0.0
      %v452 = vmax.f32 %v388, 0.0
      %v453 = vmax.f32 %v389, 0.0
      %v454 = vmax.f32 %v390, 0.0
      %v455 = vmax.f32 %v391, 0.0
      %v456 = vmax.f32 %v392, 0.0
      %v457 = vmax.f32 %v393, 0.0
      %v458 = vmax.f32 %v394, 0.0
      %v459 = vmax.f32 %v395, 0.0
      %v460 = vmax.f32 %v396, 0.0
      %v461 = vmax.f32 %v397, 0.0
      %v462 = vmax.f32 %v398, 0.0
      %v463 = vmax.f32 %v399, 0.0
      %v464 = vmax.f32 %v400, 0.0
      %v465 = vmax.f32 %v401, 0.0
      %v466 = vmax.f32 %v402, 0.0
      %v467 = vmax.f32 %v403, 0.0
      %v468 = vmax.f32 %v404, 0.0
      %v469 = vmax.f32 %v405, 0.0
      %v470 = vmax.f32 %v406, 0.0
      %v471 = vmax.f32 %v407, 0.0
      %v472 = vpack.c.bf16 %v409, %v408
      %v473 = vpack.c.bf16 %v411, %v410
      %v474 = vpack.c.bf16 %v413, %v412
      %v475 = vpack.c.bf16 %v415, %v414
      %v476 = vpack.c.bf16 %v417, %v416
      %v477 = vpack.c.bf16 %v419, %v418
      %v478 = vpack.c.bf16 %v421, %v420
      %v479 = vpack.c.bf16 %v423, %v422
      %v480 = vpack.c.bf16 %v425, %v424
      %v481 = vpack.c.bf16 %v427, %v426
      %v482 = vpack.c.bf16 %v429, %v428
      %v483 = vpack.c.bf16 %v431, %v430
      %v484 = vpack.c.bf16 %v433, %v432
      %v485 = vpack.c.bf16 %v435, %v434
      %v486 = vpack.c.bf16 %v437, %v436
      %v487 = vpack.c.bf16 %v439, %v438
      %v488 = vpack.c.bf16 %v441, %v440
      %v489 = vpack.c.bf16 %v443, %v442
      %v490 = vpack.c.bf16 %v445, %v444
      %v491 = vpack.c.bf16 %v447, %v446
      %v492 = vpack.c.bf16 %v449, %v448
      %v493 = vpack.c.bf16 %v451, %v450
      %v494 = vpack.c.bf16 %v453, %v452
      %v495 = vpack.c.bf16 %v455, %v454
      %v496 = vpack.c.bf16 %v457, %v456
      %v497 = vpack.c.bf16 %v459, %v458
      %v498 = vpack.c.bf16 %v461, %v460
      %v499 = vpack.c.bf16 %v463, %v462
      %v500 = vpack.c.bf16 %v465, %v464
      %v501 = vpack.c.bf16 %v467, %v466
      %v502 = vpack.c.bf16 %v469, %v468
      %v503 = vpack.c.bf16 %v471, %v470
      %v504 = vld [vmem:[%s3] sm:$0xf]
      %v505 = vld [vmem:[%s3 + $0x4] sm:$0xf]
      %v506 = vld [vmem:[%s3 + $0x8] sm:$0xf]
      %v507 = vld [vmem:[%s3 + $0xc] sm:$0xf]
      %v508 = vld [vmem:[%s3 + $0x10] sm:$0xf]
      %v509 = vld [vmem:[%s3 + $0x14] sm:$0xf]
      %v510 = vld [vmem:[%s3 + $0x18] sm:$0xf]
      %v511 = vld [vmem:[%s3 + $0x1c] sm:$0xf]
      %v512 = vld [vmem:[%s3 + $0x20] sm:$0xf]
      %v513 = vld [vmem:[%s3 + $0x24] sm:$0xf]
      %v514 = vld [vmem:[%s3 + $0x28] sm:$0xf]
      %v515 = vld [vmem:[%s3 + $0x2c] sm:$0xf]
      %v516 = vld [vmem:[%s3 + $0x30] sm:$0xf]
      %v517 = vld [vmem:[%s3 + $0x34] sm:$0xf]
      %v518 = vld [vmem:[%s3 + $0x38] sm:$0xf]
      %v519 = vld [vmem:[%s3 + $0x3c] sm:$0xf]
      %v536 = vunpack.c.l.b16 %v504
      %v537 = vunpack.c.l.b16 %v505
      %v538 = vunpack.c.l.b16 %v506
      %v539 = vunpack.c.l.b16 %v507
      %v540 = vunpack.c.l.b16 %v508
      %v541 = vunpack.c.l.b16 %v509
      %v542 = vunpack.c.l.b16 %v510
      %v543 = vunpack.c.l.b16 %v511
      %v544 = vunpack.c.l.b16 %v512
      %v545 = vunpack.c.l.b16 %v513
      %v546 = vunpack.c.l.b16 %v514
      %v547 = vunpack.c.l.b16 %v515
      %v548 = vunpack.c.l.b16 %v516
      %v549 = vunpack.c.l.b16 %v517
      %v550 = vunpack.c.l.b16 %v518
      %v551 = vunpack.c.l.b16 %v519
      %v552 = vpack.c.b16 %v537, %v536
      %v553 = vpack.c.b16 %v539, %v538
      %v554 = vpack.c.b16 %v541, %v540
      %v555 = vpack.c.b16 %v543, %v542
      %v556 = vpack.c.b16 %v545, %v544
      %v557 = vpack.c.b16 %v547, %v546
      %v558 = vpack.c.b16 %v549, %v548
      %v559 = vpack.c.b16 %v551, %v550
      %568 = vmatprep.subr.bf16.mxu0 0
      %569 = vmatpush1.bf16.msra.mxu0 %v559
      %570 = vmatprep.subr.bf16.mxu0 0
      %571 = vmatpush1.bf16.msra.mxu0 %v558
      %572 = vmatprep.subr.bf16.mxu0 0
      %573 = vmatpush1.bf16.msra.mxu0 %v557
      %574 = vmatprep.subr.bf16.mxu0 0
      %575 = vmatpush1.bf16.msra.mxu0 %v556
      %576 = vmatprep.subr.bf16.mxu0 0
      %577 = vmatpush1.bf16.msra.mxu0 %v555
      %578 = vmatprep.subr.bf16.mxu0 0
      %579 = vmatpush1.bf16.msra.mxu0 %v554
      %580 = vmatprep.subr.bf16.mxu0 0
      %581 = vmatpush1.bf16.msra.mxu0 %v553
      %582 = vmatprep.subr.bf16.mxu0 0
      %583 = vmatpush1.bf16.msra.mxu0 %v552
      %584 = vmatprep.subr.bf16.mxu0 0
      %585 = vmatpush2.bf16.msra.mxu0 0
      %586 = vmatprep.subr.bf16.mxu0 0
      %587 = vmatpush2.bf16.msra.mxu0 0
      %588 = vmatprep.subr.bf16.mxu0 0
      %589 = vmatpush2.bf16.msra.mxu0 0
      %590 = vmatprep.subr.bf16.mxu0 0
      %591 = vmatpush2.bf16.msra.mxu0 0
      %592 = vmatprep.subr.bf16.mxu0 0
      %593 = vmatpush2.bf16.msra.mxu0 0
      %594 = vmatprep.subr.bf16.mxu0 0
      %595 = vmatpush2.bf16.msra.mxu0 0
      %596 = vmatprep.subr.bf16.mxu0 0
      %597 = vmatpush2.bf16.msra.mxu0 0
      %598 = vmatprep.subr.bf16.mxu0 0
      %599 = vmatpush2.bf16.msra.mxu0 0
      %600 = vmatprep.mubr.bf16.mxu0 0
      %601 = vmatmul.mubr.bf16.gmra.mxu0 %v472
      %v602 = vpop.f32.mrf.mxu0
      %v603 = vadd.f32 0.0, %v602
      %v604 = vpop.f32.mrf.mxu0
      %v605 = vpop.f32.mrf.mxu0
      %v606 = vadd.f32 0.0, %v605
      %v607 = vpop.f32.mrf.mxu0
      %608 = vmatprep.mubr.bf16.mxu0 0
      %609 = vmatmul.mubr.bf16.gmra.mxu0 %v473
      %v610 = vpop.f32.mrf.mxu0
      %v611 = vadd.f32 0.0, %v610
      %v612 = vpop.f32.mrf.mxu0
      %v613 = vpop.f32.mrf.mxu0
      %v614 = vadd.f32 0.0, %v613
      %v615 = vpop.f32.mrf.mxu0
      %616 = vmatprep.mubr.bf16.mxu0 0
      %617 = vmatmul.mubr.bf16.gmra.mxu0 %v474
      %v618 = vpop.f32.mrf.mxu0
      %v619 = vadd.f32 0.0, %v618
      %v620 = vpop.f32.mrf.mxu0
      %v621 = vpop.f32.mrf.mxu0
      %v622 = vadd.f32 0.0, %v621
      %v623 = vpop.f32.mrf.mxu0
      %624 = vmatprep.mubr.bf16.mxu0 0
      %625 = vmatmul.mubr.bf16.gmra.mxu0 %v475
      %v626 = vpop.f32.mrf.mxu0
      %v627 = vadd.f32 0.0, %v626
      %v628 = vpop.f32.mrf.mxu0
      %v629 = vpop.f32.mrf.mxu0
      %v630 = vadd.f32 0.0, %v629
      %v631 = vpop.f32.mrf.mxu0
      %632 = vmatprep.mubr.bf16.mxu0 0
      %633 = vmatmul.mubr.bf16.gmra.mxu0 %v476
      %v634 = vpop.f32.mrf.mxu0
      %v635 = vadd.f32 0.0, %v634
      %v636 = vpop.f32.mrf.mxu0
      %v637 = vpop.f32.mrf.mxu0
      %v638 = vadd.f32 0.0, %v637
      %v639 = vpop.f32.mrf.mxu0
      %640 = vmatprep.mubr.bf16.mxu0 0
      %641 = vmatmul.mubr.bf16.gmra.mxu0 %v477
      %v642 = vpop.f32.mrf.mxu0
      %v643 = vadd.f32 0.0, %v642
      %v644 = vpop.f32.mrf.mxu0
      %v645 = vpop.f32.mrf.mxu0
      %v646 = vadd.f32 0.0, %v645
      %v647 = vpop.f32.mrf.mxu0
      %648 = vmatprep.mubr.bf16.mxu0 0
      %649 = vmatmul.mubr.bf16.gmra.mxu0 %v478
      %v650 = vpop.f32.mrf.mxu0
      %v651 = vadd.f32 0.0, %v650
      %v652 = vpop.f32.mrf.mxu0
      %v653 = vpop.f32.mrf.mxu0
      %v654 = vadd.f32 0.0, %v653
      %v655 = vpop.f32.mrf.mxu0
      %656 = vmatprep.mubr.bf16.mxu0 0
      %657 = vmatmul.mubr.bf16.gmra.mxu0 %v479
      %v658 = vpop.f32.mrf.mxu0
      %v659 = vadd.f32 0.0, %v658
      %v660 = vpop.f32.mrf.mxu0
      %v661 = vpop.f32.mrf.mxu0
      %v662 = vadd.f32 0.0, %v661
      %v663 = vpop.f32.mrf.mxu0
      %664 = vmatprep.mubr.bf16.mxu0 0
      %665 = vmatmul.mubr.bf16.gmra.mxu0 %v480
      %v666 = vpop.f32.mrf.mxu0
      %v667 = vadd.f32 0.0, %v666
      %v668 = vpop.f32.mrf.mxu0
      %v669 = vpop.f32.mrf.mxu0
      %v670 = vadd.f32 0.0, %v669
      %v671 = vpop.f32.mrf.mxu0
      %672 = vmatprep.mubr.bf16.mxu0 0
      %673 = vmatmul.mubr.bf16.gmra.mxu0 %v481
      %v674 = vpop.f32.mrf.mxu0
      %v675 = vadd.f32 0.0, %v674
      %v676 = vpop.f32.mrf.mxu0
      %v677 = vpop.f32.mrf.mxu0
      %v678 = vadd.f32 0.0, %v677
      %v679 = vpop.f32.mrf.mxu0
      %680 = vmatprep.mubr.bf16.mxu0 0
      %681 = vmatmul.mubr.bf16.gmra.mxu0 %v482
      %v682 = vpop.f32.mrf.mxu0
      %v683 = vadd.f32 0.0, %v682
      %v684 = vpop.f32.mrf.mxu0
      %v685 = vpop.f32.mrf.mxu0
      %v686 = vadd.f32 0.0, %v685
      %v687 = vpop.f32.mrf.mxu0
      %688 = vmatprep.mubr.bf16.mxu0 0
      %689 = vmatmul.mubr.bf16.gmra.mxu0 %v483
      %v690 = vpop.f32.mrf.mxu0
      %v691 = vadd.f32 0.0, %v690
      %v692 = vpop.f32.mrf.mxu0
      %v693 = vpop.f32.mrf.mxu0
      %v694 = vadd.f32 0.0, %v693
      %v695 = vpop.f32.mrf.mxu0
      %696 = vmatprep.mubr.bf16.mxu0 0
      %697 = vmatmul.mubr.bf16.gmra.mxu0 %v484
      %v698 = vpop.f32.mrf.mxu0
      %v699 = vadd.f32 0.0, %v698
      %v700 = vpop.f32.mrf.mxu0
      %v701 = vpop.f32.mrf.mxu0
      %v702 = vadd.f32 0.0, %v701
      %v703 = vpop.f32.mrf.mxu0
      %704 = vmatprep.mubr.bf16.mxu0 0
      %705 = vmatmul.mubr.bf16.gmra.mxu0 %v485
      %v706 = vpop.f32.mrf.mxu0
      %v707 = vadd.f32 0.0, %v706
      %v708 = vpop.f32.mrf.mxu0
      %v709 = vpop.f32.mrf.mxu0
      %v710 = vadd.f32 0.0, %v709
      %v711 = vpop.f32.mrf.mxu0
      %712 = vmatprep.mubr.bf16.mxu0 0
      %713 = vmatmul.mubr.bf16.gmra.mxu0 %v486
      %v714 = vpop.f32.mrf.mxu0
      %v715 = vadd.f32 0.0, %v714
      %v716 = vpop.f32.mrf.mxu0
      %v717 = vpop.f32.mrf.mxu0
      %v718 = vadd.f32 0.0, %v717
      %v719 = vpop.f32.mrf.mxu0
      %720 = vmatprep.mubr.bf16.mxu0 0
      %721 = vmatmul.mubr.bf16.gmra.mxu0 %v487
      %v722 = vpop.f32.mrf.mxu0
      %v723 = vadd.f32 0.0, %v722
      %v724 = vpop.f32.mrf.mxu0
      %v725 = vpop.f32.mrf.mxu0
      %v726 = vadd.f32 0.0, %v725
      %v727 = vpop.f32.mrf.mxu0
      %728 = vmatprep.mubr.bf16.mxu0 0
      %729 = vmatmul.mubr.bf16.gmra.mxu0 %v488
      %v730 = vpop.f32.mrf.mxu0
      %v731 = vadd.f32 0.0, %v730
      %v732 = vpop.f32.mrf.mxu0
      %v733 = vpop.f32.mrf.mxu0
      %v734 = vadd.f32 0.0, %v733
      %v735 = vpop.f32.mrf.mxu0
      %736 = vmatprep.mubr.bf16.mxu0 0
      %737 = vmatmul.mubr.bf16.gmra.mxu0 %v489
      %v738 = vpop.f32.mrf.mxu0
      %v739 = vadd.f32 0.0, %v738
      %v740 = vpop.f32.mrf.mxu0
      %v741 = vpop.f32.mrf.mxu0
      %v742 = vadd.f32 0.0, %v741
      %v743 = vpop.f32.mrf.mxu0
      %744 = vmatprep.mubr.bf16.mxu0 0
      %745 = vmatmul.mubr.bf16.gmra.mxu0 %v490
      %v746 = vpop.f32.mrf.mxu0
      %v747 = vadd.f32 0.0, %v746
      %v748 = vpop.f32.mrf.mxu0
      %v749 = vpop.f32.mrf.mxu0
      %v750 = vadd.f32 0.0, %v749
      %v751 = vpop.f32.mrf.mxu0
      %752 = vmatprep.mubr.bf16.mxu0 0
      %753 = vmatmul.mubr.bf16.gmra.mxu0 %v491
      %v754 = vpop.f32.mrf.mxu0
      %v755 = vadd.f32 0.0, %v754
      %v756 = vpop.f32.mrf.mxu0
      %v757 = vpop.f32.mrf.mxu0
      %v758 = vadd.f32 0.0, %v757
      %v759 = vpop.f32.mrf.mxu0
      %760 = vmatprep.mubr.bf16.mxu0 0
      %761 = vmatmul.mubr.bf16.gmra.mxu0 %v492
      %v762 = vpop.f32.mrf.mxu0
      %v763 = vadd.f32 0.0, %v762
      %v764 = vpop.f32.mrf.mxu0
      %v765 = vpop.f32.mrf.mxu0
      %v766 = vadd.f32 0.0, %v765
      %v767 = vpop.f32.mrf.mxu0
      %768 = vmatprep.mubr.bf16.mxu0 0
      %769 = vmatmul.mubr.bf16.gmra.mxu0 %v493
      %v770 = vpop.f32.mrf.mxu0
      %v771 = vadd.f32 0.0, %v770
      %v772 = vpop.f32.mrf.mxu0
      %v773 = vpop.f32.mrf.mxu0
      %v774 = vadd.f32 0.0, %v773
      %v775 = vpop.f32.mrf.mxu0
      %776 = vmatprep.mubr.bf16.mxu0 0
      %777 = vmatmul.mubr.bf16.gmra.mxu0 %v494
      %v778 = vpop.f32.mrf.mxu0
      %v779 = vadd.f32 0.0, %v778
      %v780 = vpop.f32.mrf.mxu0
      %v781 = vpop.f32.mrf.mxu0
      %v782 = vadd.f32 0.0, %v781
      %v783 = vpop.f32.mrf.mxu0
      %784 = vmatprep.mubr.bf16.mxu0 0
      %785 = vmatmul.mubr.bf16.gmra.mxu0 %v495
      %v786 = vpop.f32.mrf.mxu0
      %v787 = vadd.f32 0.0, %v786
      %v788 = vpop.f32.mrf.mxu0
      %v789 = vpop.f32.mrf.mxu0
      %v790 = vadd.f32 0.0, %v789
      %v791 = vpop.f32.mrf.mxu0
      %792 = vmatprep.mubr.bf16.mxu0 0
      %793 = vmatmul.mubr.bf16.gmra.mxu0 %v496
      %v794 = vpop.f32.mrf.mxu0
      %v795 = vadd.f32 0.0, %v794
      %v796 = vpop.f32.mrf.mxu0
      %v797 = vpop.f32.mrf.mxu0
      %v798 = vadd.f32 0.0, %v797
      %v799 = vpop.f32.mrf.mxu0
      %800 = vmatprep.mubr.bf16.mxu0 0
      %801 = vmatmul.mubr.bf16.gmra.mxu0 %v497
      %v802 = vpop.f32.mrf.mxu0
      %v803 = vadd.f32 0.0, %v802
      %v804 = vpop.f32.mrf.mxu0
      %v805 = vpop.f32.mrf.mxu0
      %v806 = vadd.f32 0.0, %v805
      %v807 = vpop.f32.mrf.mxu0
      %808 = vmatprep.mubr.bf16.mxu0 0
      %809 = vmatmul.mubr.bf16.gmra.mxu0 %v498
      %v810 = vpop.f32.mrf.mxu0
      %v811 = vadd.f32 0.0, %v810
      %v812 = vpop.f32.mrf.mxu0
      %v813 = vpop.f32.mrf.mxu0
      %v814 = vadd.f32 0.0, %v813
      %v815 = vpop.f32.mrf.mxu0
      %816 = vmatprep.mubr.bf16.mxu0 0
      %817 = vmatmul.mubr.bf16.gmra.mxu0 %v499
      %v818 = vpop.f32.mrf.mxu0
      %v819 = vadd.f32 0.0, %v818
      %v820 = vpop.f32.mrf.mxu0
      %v821 = vpop.f32.mrf.mxu0
      %v822 = vadd.f32 0.0, %v821
      %v823 = vpop.f32.mrf.mxu0
      %824 = vmatprep.mubr.bf16.mxu0 0
      %825 = vmatmul.mubr.bf16.gmra.mxu0 %v500
      %v826 = vpop.f32.mrf.mxu0
      %v827 = vadd.f32 0.0, %v826
      %v828 = vpop.f32.mrf.mxu0
      %v829 = vpop.f32.mrf.mxu0
      %v830 = vadd.f32 0.0, %v829
      %v831 = vpop.f32.mrf.mxu0
      %832 = vmatprep.mubr.bf16.mxu0 0
      %833 = vmatmul.mubr.bf16.gmra.mxu0 %v501
      %v834 = vpop.f32.mrf.mxu0
      %v835 = vadd.f32 0.0, %v834
      %v836 = vpop.f32.mrf.mxu0
      %v837 = vpop.f32.mrf.mxu0
      %v838 = vadd.f32 0.0, %v837
      %v839 = vpop.f32.mrf.mxu0
      %840 = vmatprep.mubr.bf16.mxu0 0
      %841 = vmatmul.mubr.bf16.gmra.mxu0 %v502
      %v842 = vpop.f32.mrf.mxu0
      %v843 = vadd.f32 0.0, %v842
      %v844 = vpop.f32.mrf.mxu0
      %v845 = vpop.f32.mrf.mxu0
      %v846 = vadd.f32 0.0, %v845
      %v847 = vpop.f32.mrf.mxu0
      %848 = vmatprep.mubr.bf16.mxu0 0
      %849 = vmatmul.mubr.bf16.gmra.mxu0 %v503
      %v850 = vpop.f32.mrf.mxu0
      %v851 = vadd.f32 0.0, %v850
      %v852 = vpop.f32.mrf.mxu0
      %v853 = vpop.f32.mrf.mxu0
      %v854 = vadd.f32 0.0, %v853
      %v855 = vpop.f32.mrf.mxu0
      %856 = vdwg.mxu0
      %v857 = vmul.f32 %v603, %v603
      %v858 = vmul.f32 %v606, %v606
      %v859 = vmul.f32 %v611, %v611
      %v860 = vmul.f32 %v614, %v614
      %v861 = vmul.f32 %v619, %v619
      %v862 = vmul.f32 %v622, %v622
      %v863 = vmul.f32 %v627, %v627
      %v864 = vmul.f32 %v630, %v630
      %v865 = vmul.f32 %v635, %v635
      %v866 = vmul.f32 %v638, %v638
      %v867 = vmul.f32 %v643, %v643
      %v868 = vmul.f32 %v646, %v646
      %v869 = vmul.f32 %v651, %v651
      %v870 = vmul.f32 %v654, %v654
      %v871 = vmul.f32 %v659, %v659
      %v872 = vmul.f32 %v662, %v662
      %v873 = vmul.f32 %v667, %v667
      %v874 = vmul.f32 %v670, %v670
      %v875 = vmul.f32 %v675, %v675
      %v876 = vmul.f32 %v678, %v678
      %v877 = vmul.f32 %v683, %v683
      %v878 = vmul.f32 %v686, %v686
      %v879 = vmul.f32 %v691, %v691
      %v880 = vmul.f32 %v694, %v694
      %v881 = vmul.f32 %v699, %v699
      %v882 = vmul.f32 %v702, %v702
      %v883 = vmul.f32 %v707, %v707
      %v884 = vmul.f32 %v710, %v710
      %v885 = vmul.f32 %v715, %v715
      %v886 = vmul.f32 %v718, %v718
      %v887 = vmul.f32 %v723, %v723
      %v888 = vmul.f32 %v726, %v726
      %v889 = vmul.f32 %v731, %v731
      %v890 = vmul.f32 %v734, %v734
      %v891 = vmul.f32 %v739, %v739
      %v892 = vmul.f32 %v742, %v742
      %v893 = vmul.f32 %v747, %v747
      %v894 = vmul.f32 %v750, %v750
      %v895 = vmul.f32 %v755, %v755
      %v896 = vmul.f32 %v758, %v758
      %v897 = vmul.f32 %v763, %v763
      %v898 = vmul.f32 %v766, %v766
      %v899 = vmul.f32 %v771, %v771
      %v900 = vmul.f32 %v774, %v774
      %v901 = vmul.f32 %v779, %v779
      %v902 = vmul.f32 %v782, %v782
      %v903 = vmul.f32 %v787, %v787
      %v904 = vmul.f32 %v790, %v790
      %v905 = vmul.f32 %v795, %v795
      %v906 = vmul.f32 %v798, %v798
      %v907 = vmul.f32 %v803, %v803
      %v908 = vmul.f32 %v806, %v806
      %v909 = vmul.f32 %v811, %v811
      %v910 = vmul.f32 %v814, %v814
      %v911 = vmul.f32 %v819, %v819
      %v912 = vmul.f32 %v822, %v822
      %v913 = vmul.f32 %v827, %v827
      %v914 = vmul.f32 %v830, %v830
      %v915 = vmul.f32 %v835, %v835
      %v916 = vmul.f32 %v838, %v838
      %v917 = vmul.f32 %v843, %v843
      %v918 = vmul.f32 %v846, %v846
      %v919 = vmul.f32 %v851, %v851
      %v920 = vmul.f32 %v854, %v854
      %921 = vadd.xlane.f32.xlu0 %v857
      %v922 = vpop.xlane.xlu0 %921
      %923 = vadd.xlane.f32.xlu0 %v858
      %v924 = vpop.xlane.xlu0 %923
      %925 = vadd.xlane.f32.xlu0 %v859
      %v926 = vpop.xlane.xlu0 %925
      %927 = vadd.xlane.f32.xlu0 %v860
      %v928 = vpop.xlane.xlu0 %927
      %929 = vadd.xlane.f32.xlu0 %v861
      %v930 = vpop.xlane.xlu0 %929
      %931 = vadd.xlane.f32.xlu0 %v862
      %v932 = vpop.xlane.xlu0 %931
      %933 = vadd.xlane.f32.xlu0 %v863
      %v934 = vpop.xlane.xlu0 %933
      %935 = vadd.xlane.f32.xlu0 %v864
      %v936 = vpop.xlane.xlu0 %935
      %937 = vadd.xlane.f32.xlu0 %v865
      %v938 = vpop.xlane.xlu0 %937
      %939 = vadd.xlane.f32.xlu0 %v866
      %v940 = vpop.xlane.xlu0 %939
      %941 = vadd.xlane.f32.xlu0 %v867
      %v942 = vpop.xlane.xlu0 %941
      %943 = vadd.xlane.f32.xlu0 %v868
      %v944 = vpop.xlane.xlu0 %943
      %945 = vadd.xlane.f32.xlu0 %v869
      %v946 = vpop.xlane.xlu0 %945
      %947 = vadd.xlane.f32.xlu0 %v870
      %v948 = vpop.xlane.xlu0 %947
      %949 = vadd.xlane.f32.xlu0 %v871
      %v950 = vpop.xlane.xlu0 %949
      %951 = vadd.xlane.f32.xlu0 %v872
      %v952 = vpop.xlane.xlu0 %951
      %953 = vadd.xlane.f32.xlu0 %v873
      %v954 = vpop.xlane.xlu0 %953
      %955 = vadd.xlane.f32.xlu0 %v874
      %v956 = vpop.xlane.xlu0 %955
      %957 = vadd.xlane.f32.xlu0 %v875
      %v958 = vpop.xlane.xlu0 %957
      %959 = vadd.xlane.f32.xlu0 %v876
      %v960 = vpop.xlane.xlu0 %959
      %961 = vadd.xlane.f32.xlu0 %v877
      %v962 = vpop.xlane.xlu0 %961
      %963 = vadd.xlane.f32.xlu0 %v878
      %v964 = vpop.xlane.xlu0 %963
      %965 = vadd.xlane.f32.xlu0 %v879
      %v966 = vpop.xlane.xlu0 %965
      %967 = vadd.xlane.f32.xlu0 %v880
      %v968 = vpop.xlane.xlu0 %967
      %969 = vadd.xlane.f32.xlu0 %v881
      %v970 = vpop.xlane.xlu0 %969
      %971 = vadd.xlane.f32.xlu0 %v882
      %v972 = vpop.xlane.xlu0 %971
      %973 = vadd.xlane.f32.xlu0 %v883
      %v974 = vpop.xlane.xlu0 %973
      %975 = vadd.xlane.f32.xlu0 %v884
      %v976 = vpop.xlane.xlu0 %975
      %977 = vadd.xlane.f32.xlu0 %v885
      %v978 = vpop.xlane.xlu0 %977
      %979 = vadd.xlane.f32.xlu0 %v886
      %v980 = vpop.xlane.xlu0 %979
      %981 = vadd.xlane.f32.xlu0 %v887
      %v982 = vpop.xlane.xlu0 %981
      %983 = vadd.xlane.f32.xlu0 %v888
      %v984 = vpop.xlane.xlu0 %983
      %985 = vadd.xlane.f32.xlu0 %v889
      %v986 = vpop.xlane.xlu0 %985
      %987 = vadd.xlane.f32.xlu0 %v890
      %v988 = vpop.xlane.xlu0 %987
      %989 = vadd.xlane.f32.xlu0 %v891
      %v990 = vpop.xlane.xlu0 %989
      %991 = vadd.xlane.f32.xlu0 %v892
      %v992 = vpop.xlane.xlu0 %991
      %993 = vadd.xlane.f32.xlu0 %v893
      %v994 = vpop.xlane.xlu0 %993
      %995 = vadd.xlane.f32.xlu0 %v894
      %v996 = vpop.xlane.xlu0 %995
      %997 = vadd.xlane.f32.xlu0 %v895
      %v998 = vpop.xlane.xlu0 %997
      %999 = vadd.xlane.f32.xlu0 %v896
      %v1000 = vpop.xlane.xlu0 %999
      %1001 = vadd.xlane.f32.xlu0 %v897
      %v1002 = vpop.xlane.xlu0 %1001
      %1003 = vadd.xlane.f32.xlu0 %v898
      %v1004 = vpop.xlane.xlu0 %1003
      %1005 = vadd.xlane.f32.xlu0 %v899
      %v1006 = vpop.xlane.xlu0 %1005
      %1007 = vadd.xlane.f32.xlu0 %v900
      %v1008 = vpop.xlane.xlu0 %1007
      %1009 = vadd.xlane.f32.xlu0 %v901
      %v1010 = vpop.xlane.xlu0 %1009
      %1011 = vadd.xlane.f32.xlu0 %v902
      %v1012 = vpop.xlane.xlu0 %1011
      %1013 = vadd.xlane.f32.xlu0 %v903
      %v1014 = vpop.xlane.xlu0 %1013
      %1015 = vadd.xlane.f32.xlu0 %v904
      %v1016 = vpop.xlane.xlu0 %1015
      %1017 = vadd.xlane.f32.xlu0 %v905
      %v1018 = vpop.xlane.xlu0 %1017
      %1019 = vadd.xlane.f32.xlu0 %v906
      %v1020 = vpop.xlane.xlu0 %1019
      %1021 = vadd.xlane.f32.xlu0 %v907
      %v1022 = vpop.xlane.xlu0 %1021
      %1023 = vadd.xlane.f32.xlu0 %v908
      %v1024 = vpop.xlane.xlu0 %1023
      %1025 = vadd.xlane.f32.xlu0 %v909
      %v1026 = vpop.xlane.xlu0 %1025
      %1027 = vadd.xlane.f32.xlu0 %v910
      %v1028 = vpop.xlane.xlu0 %1027
      %1029 = vadd.xlane.f32.xlu0 %v911
      %v1030 = vpop.xlane.xlu0 %1029
      %1031 = vadd.xlane.f32.xlu0 %v912
      %v1032 = vpop.xlane.xlu0 %1031
      %1033 = vadd.xlane.f32.xlu0 %v913
      %v1034 = vpop.xlane.xlu0 %1033
      %1035 = vadd.xlane.f32.xlu0 %v914
      %v1036 = vpop.xlane.xlu0 %1035
      %1037 = vadd.xlane.f32.xlu0 %v915
      %v1038 = vpop.xlane.xlu0 %1037
      %1039 = vadd.xlane.f32.xlu0 %v916
      %v1040 = vpop.xlane.xlu0 %1039
      %1041 = vadd.xlane.f32.xlu0 %v917
      %v1042 = vpop.xlane.xlu0 %1041
      %1043 = vadd.xlane.f32.xlu0 %v918
      %v1044 = vpop.xlane.xlu0 %1043
      %1045 = vadd.xlane.f32.xlu0 %v919
      %v1046 = vpop.xlane.xlu0 %1045
      %1047 = vadd.xlane.f32.xlu0 %v920
      %v1048 = vpop.xlane.xlu0 %1047
      %v1049 = vmax.f32 %v922, 1e-24
      %v1050 = vmax.f32 %v924, 1e-24
      %v1051 = vmax.f32 %v926, 1e-24
      %v1052 = vmax.f32 %v928, 1e-24
      %v1053 = vmax.f32 %v930, 1e-24
      %v1054 = vmax.f32 %v932, 1e-24
      %v1055 = vmax.f32 %v934, 1e-24
      %v1056 = vmax.f32 %v936, 1e-24
      %v1057 = vmax.f32 %v938, 1e-24
      %v1058 = vmax.f32 %v940, 1e-24
      %v1059 = vmax.f32 %v942, 1e-24
      %v1060 = vmax.f32 %v944, 1e-24
      %v1061 = vmax.f32 %v946, 1e-24
      %v1062 = vmax.f32 %v948, 1e-24
      %v1063 = vmax.f32 %v950, 1e-24
      %v1064 = vmax.f32 %v952, 1e-24
      %v1065 = vmax.f32 %v954, 1e-24
      %v1066 = vmax.f32 %v956, 1e-24
      %v1067 = vmax.f32 %v958, 1e-24
      %v1068 = vmax.f32 %v960, 1e-24
      %v1069 = vmax.f32 %v962, 1e-24
      %v1070 = vmax.f32 %v964, 1e-24
      %v1071 = vmax.f32 %v966, 1e-24
      %v1072 = vmax.f32 %v968, 1e-24
      %v1073 = vmax.f32 %v970, 1e-24
      %v1074 = vmax.f32 %v972, 1e-24
      %v1075 = vmax.f32 %v974, 1e-24
      %v1076 = vmax.f32 %v976, 1e-24
      %v1077 = vmax.f32 %v978, 1e-24
      %v1078 = vmax.f32 %v980, 1e-24
      %v1079 = vmax.f32 %v982, 1e-24
      %v1080 = vmax.f32 %v984, 1e-24
      %v1081 = vmax.f32 %v986, 1e-24
      %v1082 = vmax.f32 %v988, 1e-24
      %v1083 = vmax.f32 %v990, 1e-24
      %v1084 = vmax.f32 %v992, 1e-24
      %v1085 = vmax.f32 %v994, 1e-24
      %v1086 = vmax.f32 %v996, 1e-24
      %v1087 = vmax.f32 %v998, 1e-24
      %v1088 = vmax.f32 %v1000, 1e-24
      %v1089 = vmax.f32 %v1002, 1e-24
      %v1090 = vmax.f32 %v1004, 1e-24
      %v1091 = vmax.f32 %v1006, 1e-24
      %v1092 = vmax.f32 %v1008, 1e-24
      %v1093 = vmax.f32 %v1010, 1e-24
      %v1094 = vmax.f32 %v1012, 1e-24
      %v1095 = vmax.f32 %v1014, 1e-24
      %v1096 = vmax.f32 %v1016, 1e-24
      %v1097 = vmax.f32 %v1018, 1e-24
      %v1098 = vmax.f32 %v1020, 1e-24
      %v1099 = vmax.f32 %v1022, 1e-24
      %v1100 = vmax.f32 %v1024, 1e-24
      %v1101 = vmax.f32 %v1026, 1e-24
      %v1102 = vmax.f32 %v1028, 1e-24
      %v1103 = vmax.f32 %v1030, 1e-24
      %v1104 = vmax.f32 %v1032, 1e-24
      %v1105 = vmax.f32 %v1034, 1e-24
      %v1106 = vmax.f32 %v1036, 1e-24
      %v1107 = vmax.f32 %v1038, 1e-24
      %v1108 = vmax.f32 %v1040, 1e-24
      %v1109 = vmax.f32 %v1042, 1e-24
      %v1110 = vmax.f32 %v1044, 1e-24
      %v1111 = vmax.f32 %v1046, 1e-24
      %v1112 = vmax.f32 %v1048, 1e-24
      %v1113 = vrsqrt.pop %v1049
      %v1114 = vrsqrt.pop %v1050
      %v1115 = vrsqrt.pop %v1051
      %v1116 = vrsqrt.pop %v1052
      %v1117 = vrsqrt.pop %v1053
      %v1118 = vrsqrt.pop %v1054
      %v1119 = vrsqrt.pop %v1055
      %v1120 = vrsqrt.pop %v1056
      %v1121 = vrsqrt.pop %v1057
      %v1122 = vrsqrt.pop %v1058
      %v1123 = vrsqrt.pop %v1059
      %v1124 = vrsqrt.pop %v1060
      %v1125 = vrsqrt.pop %v1061
      %v1126 = vrsqrt.pop %v1062
      %v1127 = vrsqrt.pop %v1063
      %v1128 = vrsqrt.pop %v1064
      %v1129 = vrsqrt.pop %v1065
      %v1130 = vrsqrt.pop %v1066
      %v1131 = vrsqrt.pop %v1067
      %v1132 = vrsqrt.pop %v1068
      %v1133 = vrsqrt.pop %v1069
      %v1134 = vrsqrt.pop %v1070
      %v1135 = vrsqrt.pop %v1071
      %v1136 = vrsqrt.pop %v1072
      %v1137 = vrsqrt.pop %v1073
      %v1138 = vrsqrt.pop %v1074
      %v1139 = vrsqrt.pop %v1075
      %v1140 = vrsqrt.pop %v1076
      %v1141 = vrsqrt.pop %v1077
      %v1142 = vrsqrt.pop %v1078
      %v1143 = vrsqrt.pop %v1079
      %v1144 = vrsqrt.pop %v1080
      %v1145 = vrsqrt.pop %v1081
      %v1146 = vrsqrt.pop %v1082
      %v1147 = vrsqrt.pop %v1083
      %v1148 = vrsqrt.pop %v1084
      %v1149 = vrsqrt.pop %v1085
      %v1150 = vrsqrt.pop %v1086
      %v1151 = vrsqrt.pop %v1087
      %v1152 = vrsqrt.pop %v1088
      %v1153 = vrsqrt.pop %v1089
      %v1154 = vrsqrt.pop %v1090
      %v1155 = vrsqrt.pop %v1091
      %v1156 = vrsqrt.pop %v1092
      %v1157 = vrsqrt.pop %v1093
      %v1158 = vrsqrt.pop %v1094
      %v1159 = vrsqrt.pop %v1095
      %v1160 = vrsqrt.pop %v1096
      %v1161 = vrsqrt.pop %v1097
      %v1162 = vrsqrt.pop %v1098
      %v1163 = vrsqrt.pop %v1099
      %v1164 = vrsqrt.pop %v1100
      %v1165 = vrsqrt.pop %v1101
      %v1166 = vrsqrt.pop %v1102
      %v1167 = vrsqrt.pop %v1103
      %v1168 = vrsqrt.pop %v1104
      %v1169 = vrsqrt.pop %v1105
      %v1170 = vrsqrt.pop %v1106
      %v1171 = vrsqrt.pop %v1107
      %v1172 = vrsqrt.pop %v1108
      %v1173 = vrsqrt.pop %v1109
      %v1174 = vrsqrt.pop %v1110
      %v1175 = vrsqrt.pop %v1111
      %v1176 = vrsqrt.pop %v1112
      %v1177 = vmul.f32 %v603, %v1113
      %v1178 = vmul.f32 %v606, %v1114
      %v1179 = vmul.f32 %v611, %v1115
      %v1180 = vmul.f32 %v614, %v1116
      %v1181 = vmul.f32 %v619, %v1117
      %v1182 = vmul.f32 %v622, %v1118
      %v1183 = vmul.f32 %v627, %v1119
      %v1184 = vmul.f32 %v630, %v1120
      %v1185 = vmul.f32 %v635, %v1121
      %v1186 = vmul.f32 %v638, %v1122
      %v1187 = vmul.f32 %v643, %v1123
      %v1188 = vmul.f32 %v646, %v1124
      %v1189 = vmul.f32 %v651, %v1125
      %v1190 = vmul.f32 %v654, %v1126
      %v1191 = vmul.f32 %v659, %v1127
      %v1192 = vmul.f32 %v662, %v1128
      %v1193 = vmul.f32 %v667, %v1129
      %v1194 = vmul.f32 %v670, %v1130
      %v1195 = vmul.f32 %v675, %v1131
      %v1196 = vmul.f32 %v678, %v1132
      %v1197 = vmul.f32 %v683, %v1133
      %v1198 = vmul.f32 %v686, %v1134
      %v1199 = vmul.f32 %v691, %v1135
      %v1200 = vmul.f32 %v694, %v1136
      %v1201 = vmul.f32 %v699, %v1137
      %v1202 = vmul.f32 %v702, %v1138
      %v1203 = vmul.f32 %v707, %v1139
      %v1204 = vmul.f32 %v710, %v1140
      %v1205 = vmul.f32 %v715, %v1141
      %v1206 = vmul.f32 %v718, %v1142
      %v1207 = vmul.f32 %v723, %v1143
      %v1208 = vmul.f32 %v726, %v1144
      %v1209 = vmul.f32 %v731, %v1145
      %v1210 = vmul.f32 %v734, %v1146
      %v1211 = vmul.f32 %v739, %v1147
      %v1212 = vmul.f32 %v742, %v1148
      %v1213 = vmul.f32 %v747, %v1149
      %v1214 = vmul.f32 %v750, %v1150
      %v1215 = vmul.f32 %v755, %v1151
      %v1216 = vmul.f32 %v758, %v1152
      %v1217 = vmul.f32 %v763, %v1153
      %v1218 = vmul.f32 %v766, %v1154
      %v1219 = vmul.f32 %v771, %v1155
      %v1220 = vmul.f32 %v774, %v1156
      %v1221 = vmul.f32 %v779, %v1157
      %v1222 = vmul.f32 %v782, %v1158
      %v1223 = vmul.f32 %v787, %v1159
      %v1224 = vmul.f32 %v790, %v1160
      %v1225 = vmul.f32 %v795, %v1161
      %v1226 = vmul.f32 %v798, %v1162
      %v1227 = vmul.f32 %v803, %v1163
      %v1228 = vmul.f32 %v806, %v1164
      %v1229 = vmul.f32 %v811, %v1165
      %v1230 = vmul.f32 %v814, %v1166
      %v1231 = vmul.f32 %v819, %v1167
      %v1232 = vmul.f32 %v822, %v1168
      %v1233 = vmul.f32 %v827, %v1169
      %v1234 = vmul.f32 %v830, %v1170
      %v1235 = vmul.f32 %v835, %v1171
      %v1236 = vmul.f32 %v838, %v1172
      %v1237 = vmul.f32 %v843, %v1173
      %v1238 = vmul.f32 %v846, %v1174
      %v1239 = vmul.f32 %v851, %v1175
      %v1240 = vmul.f32 %v854, %v1176
      %1241 = vst [vmem:[%s199] sm:$0xff] %v1177
      %1242 = vst [vmem:[%s199 + $0x8] sm:$0xff] %v1178
      %1243 = vst [vmem:[%s199 + $0x10] sm:$0xff] %v1179
      %1244 = vst [vmem:[%s199 + $0x18] sm:$0xff] %v1180
      %1245 = vst [vmem:[%s199 + $0x20] sm:$0xff] %v1181
      %1246 = vst [vmem:[%s199 + $0x28] sm:$0xff] %v1182
      %1247 = vst [vmem:[%s199 + $0x30] sm:$0xff] %v1183
      %1248 = vst [vmem:[%s199 + $0x38] sm:$0xff] %v1184
      %1249 = vst [vmem:[%s199 + $0x40] sm:$0xff] %v1185
      %1250 = vst [vmem:[%s199 + $0x48] sm:$0xff] %v1186
      %1251 = vst [vmem:[%s199 + $0x50] sm:$0xff] %v1187
      %1252 = vst [vmem:[%s199 + $0x58] sm:$0xff] %v1188
      %1253 = vst [vmem:[%s199 + $0x60] sm:$0xff] %v1189
      %1254 = vst [vmem:[%s199 + $0x68] sm:$0xff] %v1190
      %1255 = vst [vmem:[%s199 + $0x70] sm:$0xff] %v1191
      %1256 = vst [vmem:[%s199 + $0x78] sm:$0xff] %v1192
      %1257 = vst [vmem:[%s199 + $0x80] sm:$0xff] %v1193
      %1258 = vst [vmem:[%s199 + $0x88] sm:$0xff] %v1194
      %1259 = vst [vmem:[%s199 + $0x90] sm:$0xff] %v1195
      %1260 = vst [vmem:[%s199 + $0x98] sm:$0xff] %v1196
      %1261 = vst [vmem:[%s199 + $0xa0] sm:$0xff] %v1197
      %1262 = vst [vmem:[%s199 + $0xa8] sm:$0xff] %v1198
      %1263 = vst [vmem:[%s199 + $0xb0] sm:$0xff] %v1199
      %1264 = vst [vmem:[%s199 + $0xb8] sm:$0xff] %v1200
      %1265 = vst [vmem:[%s199 + $0xc0] sm:$0xff] %v1201
      %1266 = vst [vmem:[%s199 + $0xc8] sm:$0xff] %v1202
      %1267 = vst [vmem:[%s199 + $0xd0] sm:$0xff] %v1203
      %1268 = vst [vmem:[%s199 + $0xd8] sm:$0xff] %v1204
      %1269 = vst [vmem:[%s199 + $0xe0] sm:$0xff] %v1205
      %1270 = vst [vmem:[%s199 + $0xe8] sm:$0xff] %v1206
      %1271 = vst [vmem:[%s199 + $0xf0] sm:$0xff] %v1207
      %1272 = vst [vmem:[%s199 + $0xf8] sm:$0xff] %v1208
      %1273 = vst [vmem:[%s199 + $0x100] sm:$0xff] %v1209
      %1274 = vst [vmem:[%s199 + $0x108] sm:$0xff] %v1210
      %1275 = vst [vmem:[%s199 + $0x110] sm:$0xff] %v1211
      %1276 = vst [vmem:[%s199 + $0x118] sm:$0xff] %v1212
      %1277 = vst [vmem:[%s199 + $0x120] sm:$0xff] %v1213
      %1278 = vst [vmem:[%s199 + $0x128] sm:$0xff] %v1214
      %1279 = vst [vmem:[%s199 + $0x130] sm:$0xff] %v1215
      %1280 = vst [vmem:[%s199 + $0x138] sm:$0xff] %v1216
      %1281 = vst [vmem:[%s199 + $0x140] sm:$0xff] %v1217
      %1282 = vst [vmem:[%s199 + $0x148] sm:$0xff] %v1218
      %1283 = vst [vmem:[%s199 + $0x150] sm:$0xff] %v1219
      %1284 = vst [vmem:[%s199 + $0x158] sm:$0xff] %v1220
      %1285 = vst [vmem:[%s199 + $0x160] sm:$0xff] %v1221
      %1286 = vst [vmem:[%s199 + $0x168] sm:$0xff] %v1222
      %1287 = vst [vmem:[%s199 + $0x170] sm:$0xff] %v1223
      %1288 = vst [vmem:[%s199 + $0x178] sm:$0xff] %v1224
      %1289 = vst [vmem:[%s199 + $0x180] sm:$0xff] %v1225
      %1290 = vst [vmem:[%s199 + $0x188] sm:$0xff] %v1226
      %1291 = vst [vmem:[%s199 + $0x190] sm:$0xff] %v1227
      %1292 = vst [vmem:[%s199 + $0x198] sm:$0xff] %v1228
      %1293 = vst [vmem:[%s199 + $0x1a0] sm:$0xff] %v1229
      %1294 = vst [vmem:[%s199 + $0x1a8] sm:$0xff] %v1230
      %1295 = vst [vmem:[%s199 + $0x1b0] sm:$0xff] %v1231
      %1296 = vst [vmem:[%s199 + $0x1b8] sm:$0xff] %v1232
      %1297 = vst [vmem:[%s199 + $0x1c0] sm:$0xff] %v1233
      %1298 = vst [vmem:[%s199 + $0x1c8] sm:$0xff] %v1234
      %1299 = vst [vmem:[%s199 + $0x1d0] sm:$0xff] %v1235
      %1300 = vst [vmem:[%s199 + $0x1d8] sm:$0xff] %v1236
      %1301 = vst [vmem:[%s199 + $0x1e0] sm:$0xff] %v1237
      %1302 = vst [vmem:[%s199 + $0x1e8] sm:$0xff] %v1238
      %1303 = vst [vmem:[%s199 + $0x1f0] sm:$0xff] %v1239
      %1304 = vst [vmem:[%s199 + $0x1f8] sm:$0xff] %v1240
      %s1305 = smul.u32 64, %s15
      %p1306 = scmp.lt.s32.totalorder %s1305, 255
      %s1307 = scalar_select %p1306, %s1305, 255
      %s1308 = smul.addr %s1307, 8
      %s1309 = scalar_lea.vmem %s4, %s1308
      // Predicated region
      $region37: #{_device_pipeline.6} parent=35 // pred_check
        %p1310 = pneg %p122
      $region38: #{_device_pipeline.6} parent=35 // pred_check_branch
        %1312 = sbr.rel (%p1310) target = $region40
      $region39: #{_device_pipeline.6} parent=35 // pred_region
        %s1313 = smul.u32 64, %s15
      $region40: #{_device_pipeline.6} parent=35 // pred_fallthru
        _
    $region36: #{_device_pipeline.6} parent=5 // pred_fallthru
      _
    %p1314 = scmp.le.s32.totalorder 2, %s10
    // Predicated region
    $region41: #{_device_pipeline.6} parent=5 // pred_check
      %p1315 = pneg %p1314
    $region42: #{_device_pipeline.6} parent=5 // pred_check_branch
      %1317 = sbr.rel (%p1315) target = $region44
    $region43: #{_device_pipeline.6} parent=5 // pred_region
      %s1318 = ssub.s32 %s10, 2
      // Predicated region
      $region45: #{_device_pipeline.6} parent=43 // pred_check
        %p1319 = pneg %p128
      $region46: #{_device_pipeline.6} parent=43 // pred_check_branch
        %1321 = sbr.rel (%p1319) target = $region48
      $region47: #{_device_pipeline.6} parent=43 // pred_region
        %s1322 = smul.u32 64, %s16
        %p1323 = scmp.lt.s32.totalorder %s1322, 255
        %s1324 = scalar_select %p1323, %s1322, 255
        %s1325 = smul.addr %s1324, 8
        %s1326 = scalar_lea.vmem %s4, %s1325
      $region48: #{_device_pipeline.6} parent=43 // pred_fallthru
        _
    $region44: #{_device_pipeline.6} parent=5 // pred_fallthru
      _
  $region6: #{_device_pipeline.6} parent=0 // loop_footer
    %s14 = sadd.s32 1, %s10
  $region7: #{_device_pipeline.6} parent=0 // loop_footer_branch
    %9 = sbr.rel target = $region3
  $region8: #{_device_pipeline.6} parent=0 // loop_exit
    _

// kernel: _device_pipeline.7
$region0: #{_device_pipeline.7}
  #allocation0 [shape = 'u32[]', space=smem, size = 0x4, offset = 0x4, fixed_abs, tag = 'smem constant byte address 0x4 - core index']
  #allocation1 [shape = 'u32[144,128]{1,0:T(1,128)}', space=vmem, size = 0x12000, scoped, tag = 'internal scratch']
  %s0 = inlined_call_operand.vmem [shape: f32[2048,128], index: 0, kind: input, shape index: {}]
  %s1 = inlined_call_operand.vmem [shape: f32[2048,128], index: 1, kind: output, shape index: {}]
  %s2 = sld [smem:[#allocation0]]
  $region37: #{_device_pipeline.7} parent=0
    _
  %s4 = ssub.s32 1, %s2
  %s5 = scalar_select 0, %s4, %s2
  loop: start=0, step=1, limit=6
  $region2: #{_device_pipeline.7} parent=0 // loop_pre_header
    _
  $region3: #{_device_pipeline.7} parent=0 // loop_header
    %s7 = sphi 0, %s11
    %p8 = scmp.ge.s32.totalorder %s7, 6
    %s17 = sphi 0, %s19
    %s20 = sphi 0, %s17
    %s21 = sphi 0, %s20
    %s37 = sphi 0, %s21
    %s43 = sphi 0, %s45
    %s46 = sphi 0, %s43
    %s47 = sphi 0, %s46
    %s63 = sphi 0, %s47
  $region4: #{_device_pipeline.7} parent=0 // loop_header_branch
    %10 = sbr.rel (%p8) target = $region8
  $region5: #{_device_pipeline.7} parent=0 // loop_body
    %s12 = ssub.s32 %s7, 1
    %s13 = ssub.s32 %s7, 2
    %s14 = sadd.s32 %s7, 1
    %s15 = ssub.s32 %s7, %s14
    %p16 = scmp.eq.s32.totalorder %s15, 0
    %s18 = sadd.s32 %s17, 1
    %s19 = scalar_select %p16, %s17, %s18
    %p22 = pneg %p16
    %p23 = scmp.eq.s32.totalorder %s7, 3
    %p24 = por %p22, %p23
    %p25 = scmp.ne.s32.totalorder %s17, %s20
    %p26 = scmp.eq.s32.totalorder %s7, 0
    %p27 = por %p25, %p26
    %p28 = scmp.ne.s32.totalorder %s17, %s20
    %p29 = scmp.eq.s32.totalorder %s12, 3
    %p30 = por %p28, %p29
    %p31 = scmp.ne.s32.totalorder %s20, %s21
    %p32 = scmp.eq.s32.totalorder %s12, 0
    %p33 = por %p31, %p32
    %p34 = scmp.ne.s32.totalorder %s20, %s21
    %p35 = scmp.eq.s32.totalorder %s13, 3
    %p36 = por %p34, %p35
    %p38 = scmp.ne.s32.totalorder %s21, %s37
    %p39 = scmp.eq.s32.totalorder %s13, 0
    %p40 = por %p38, %p39
    %s41 = ssub.s32 %s7, %s14
    %p42 = scmp.eq.s32.totalorder %s41, 0
    %s44 = sadd.s32 %s43, 1
    %s45 = scalar_select %p42, %s43, %s44
    %p48 = pneg %p42
    %p49 = scmp.eq.s32.totalorder %s7, 3
    %p50 = por %p48, %p49
    %p51 = scmp.ne.s32.totalorder %s43, %s46
    %p52 = scmp.eq.s32.totalorder %s7, 0
    %p53 = por %p51, %p52
    %p54 = scmp.ne.s32.totalorder %s43, %s46
    %p55 = scmp.eq.s32.totalorder %s12, 3
    %p56 = por %p54, %p55
    %p57 = scmp.ne.s32.totalorder %s46, %s47
    %p58 = scmp.eq.s32.totalorder %s12, 0
    %p59 = por %p57, %p58
    %p60 = scmp.ne.s32.totalorder %s46, %s47
    %p61 = scmp.eq.s32.totalorder %s13, 3
    %p62 = por %p60, %p61
    %p64 = scmp.ne.s32.totalorder %s47, %s63
    %p65 = scmp.eq.s32.totalorder %s13, 0
    %p66 = por %p64, %p65
    %p67 = scmp.le.s32.totalorder 1, %s7
    %p68 = scmp.lt.s32.totalorder %s7, 5
    %p69 = pnand %p67, %p68
    %p70 = pneg %p69
    // Predicated region
    $region9: #{_device_pipeline.7} parent=5 // pred_check
      _
    $region10: #{_device_pipeline.7} parent=5 // pred_check_branch
      %72 = sbr.rel (%p69) target = $region12
    $region11: #{_device_pipeline.7} parent=5 // pred_region
      %s73 = ssub.s32 %s7, 1
    $region12: #{_device_pipeline.7} parent=5 // pred_fallthru
      _
    %p74 = scmp.lt.s32.totalorder %s7, 4
    // Predicated region
    $region13: #{_device_pipeline.7} parent=5 // pred_check
      %p75 = pneg %p74
    $region14: #{_device_pipeline.7} parent=5 // pred_check_branch
      %77 = sbr.rel (%p75) target = $region16
    $region15: #{_device_pipeline.7} parent=5 // pred_region
      // Predicated region
      $region17: #{_device_pipeline.7} parent=15 // pred_check
        %p78 = pneg %p27
      $region18: #{_device_pipeline.7} parent=15 // pred_check_branch
        %80 = sbr.rel (%p78) target = $region20
      $region19: #{_device_pipeline.7} parent=15 // pred_region
        %s81 = smul.u32 64, %s7
        %p82 = scmp.lt.s32.totalorder %s81, 255
        %s83 = scalar_select %p82, %s81, 255
        %s84 = smul.addr %s83, 8
        %s85 = scalar_lea.vmem %s0, %s84
        %s86 = smul.u32 64, %s7
      $region20: #{_device_pipeline.7} parent=15 // pred_fallthru
        _
    $region16: #{_device_pipeline.7} parent=5 // pred_fallthru
      _
    %p87 = scmp.le.s32.totalorder 1, %s7
    %p88 = scmp.lt.s32.totalorder %s7, 5
    %p89 = pnand %p87, %p88
    %p90 = pneg %p89
    // Predicated region
    $region21: #{_device_pipeline.7} parent=5 // pred_check
      _
    $region22: #{_device_pipeline.7} parent=5 // pred_check_branch
      %92 = sbr.rel (%p89) target = $region24
    $region23: #{_device_pipeline.7} parent=5 // pred_region
      %s93 = ssub.s32 %s7, 1
      %s94 = smul.u32 64, %s12
      %p95 = scmp.lt.s32.totalorder %s94, 255
      %s96 = scalar_select %p95, %s94, 255
      %s97 = smul.addr %s96, 8
      %s98 = scalar_lea.vmem %s0, %s97
      %p99 = pneg %p33
      %p100 = pneg %p30
      %p101 = pneg %p59
      %p102 = pneg %p56
      %s103 = smul.u32 64, %s12
      %p104 = scmp.lt.s32.totalorder %s103, 255
      %s105 = scalar_select %p104, %s103, 255
      %s106 = smul.addr %s105, 8
      %s107 = scalar_lea.vmem %s1, %s106
      %s108 = smul.u32 64, %s12
      %p109 = scmp.lt.s32.totalorder %s108, 255
      %s110 = scalar_select %p109, %s108, 255
      %s111 = smul.addr %s110, 8
      %s112 = scalar_lea.vmem %s0, %s111
      %s113 = smul.u32 64, %s12
      %s114 = smul.u32 64, %s12
      %p115 = scmp.lt.s32.totalorder %s114, 255
      %s116 = scalar_select %p115, %s114, 255
      %s117 = smul.addr %s116, 8
      %s118 = scalar_lea.vmem %s1, %s117
      %s119 = smul.u32 64, %s12
      %v120 = vld [vmem:[%s112] sm:$0xff]
      %v121 = vld [vmem:[%s112 + $0x8] sm:$0xff]
      %v122 = vld [vmem:[%s112 + $0x10] sm:$0xff]
      %v123 = vld [vmem:[%s112 + $0x18] sm:$0xff]
      %v124 = vld [vmem:[%s112 + $0x20] sm:$0xff]
      %v125 = vld [vmem:[%s112 + $0x28] sm:$0xff]
      %v126 = vld [vmem:[%s112 + $0x30] sm:$0xff]
      %v127 = vld [vmem:[%s112 + $0x38] sm:$0xff]
      %v128 = vld [vmem:[%s112 + $0x40] sm:$0xff]
      %v129 = vld [vmem:[%s112 + $0x48] sm:$0xff]
      %v130 = vld [vmem:[%s112 + $0x50] sm:$0xff]
      %v131 = vld [vmem:[%s112 + $0x58] sm:$0xff]
      %v132 = vld [vmem:[%s112 + $0x60] sm:$0xff]
      %v133 = vld [vmem:[%s112 + $0x68] sm:$0xff]
      %v134 = vld [vmem:[%s112 + $0x70] sm:$0xff]
      %v135 = vld [vmem:[%s112 + $0x78] sm:$0xff]
      %v136 = vld [vmem:[%s112 + $0x80] sm:$0xff]
      %v137 = vld [vmem:[%s112 + $0x88] sm:$0xff]
      %v138 = vld [vmem:[%s112 + $0x90] sm:$0xff]
      %v139 = vld [vmem:[%s112 + $0x98] sm:$0xff]
      %v140 = vld [vmem:[%s112 + $0xa0] sm:$0xff]
      %v141 = vld [vmem:[%s112 + $0xa8] sm:$0xff]
      %v142 = vld [vmem:[%s112 + $0xb0] sm:$0xff]
      %v143 = vld [vmem:[%s112 + $0xb8] sm:$0xff]
      %v144 = vld [vmem:[%s112 + $0xc0] sm:$0xff]
      %v145 = vld [vmem:[%s112 + $0xc8] sm:$0xff]
      %v146 = vld [vmem:[%s112 + $0xd0] sm:$0xff]
      %v147 = vld [vmem:[%s112 + $0xd8] sm:$0xff]
      %v148 = vld [vmem:[%s112 + $0xe0] sm:$0xff]
      %v149 = vld [vmem:[%s112 + $0xe8] sm:$0xff]
      %v150 = vld [vmem:[%s112 + $0xf0] sm:$0xff]
      %v151 = vld [vmem:[%s112 + $0xf8] sm:$0xff]
      %v152 = vld [vmem:[%s112 + $0x100] sm:$0xff]
      %v153 = vld [vmem:[%s112 + $0x108] sm:$0xff]
      %v154 = vld [vmem:[%s112 + $0x110] sm:$0xff]
      %v155 = vld [vmem:[%s112 + $0x118] sm:$0xff]
      %v156 = vld [vmem:[%s112 + $0x120] sm:$0xff]
      %v157 = vld [vmem:[%s112 + $0x128] sm:$0xff]
      %v158 = vld [vmem:[%s112 + $0x130] sm:$0xff]
      %v159 = vld [vmem:[%s112 + $0x138] sm:$0xff]
      %v160 = vld [vmem:[%s112 + $0x140] sm:$0xff]
      %v161 = vld [vmem:[%s112 + $0x148] sm:$0xff]
      %v162 = vld [vmem:[%s112 + $0x150] sm:$0xff]
      %v163 = vld [vmem:[%s112 + $0x158] sm:$0xff]
      %v164 = vld [vmem:[%s112 + $0x160] sm:$0xff]
      %v165 = vld [vmem:[%s112 + $0x168] sm:$0xff]
      %v166 = vld [vmem:[%s112 + $0x170] sm:$0xff]
      %v167 = vld [vmem:[%s112 + $0x178] sm:$0xff]
      %v168 = vld [vmem:[%s112 + $0x180] sm:$0xff]
      %v169 = vld [vmem:[%s112 + $0x188] sm:$0xff]
      %v170 = vld [vmem:[%s112 + $0x190] sm:$0xff]
      %v171 = vld [vmem:[%s112 + $0x198] sm:$0xff]
      %v172 = vld [vmem:[%s112 + $0x1a0] sm:$0xff]
      %v173 = vld [vmem:[%s112 + $0x1a8] sm:$0xff]
      %v174 = vld [vmem:[%s112 + $0x1b0] sm:$0xff]
      %v175 = vld [vmem:[%s112 + $0x1b8] sm:$0xff]
      %v176 = vld [vmem:[%s112 + $0x1c0] sm:$0xff]
      %v177 = vld [vmem:[%s112 + $0x1c8] sm:$0xff]
      %v178 = vld [vmem:[%s112 + $0x1d0] sm:$0xff]
      %v179 = vld [vmem:[%s112 + $0x1d8] sm:$0xff]
      %v180 = vld [vmem:[%s112 + $0x1e0] sm:$0xff]
      %v181 = vld [vmem:[%s112 + $0x1e8] sm:$0xff]
      %v182 = vld [vmem:[%s112 + $0x1f0] sm:$0xff]
      %v183 = vld [vmem:[%s112 + $0x1f8] sm:$0xff]
      %v184 = vmul.f32 %v120, %v120
      %v185 = vmul.f32 %v121, %v121
      %v186 = vmul.f32 %v122, %v122
      %v187 = vmul.f32 %v123, %v123
      %v188 = vmul.f32 %v124, %v124
      %v189 = vmul.f32 %v125, %v125
      %v190 = vmul.f32 %v126, %v126
      %v191 = vmul.f32 %v127, %v127
      %v192 = vmul.f32 %v128, %v128
      %v193 = vmul.f32 %v129, %v129
      %v194 = vmul.f32 %v130, %v130
      %v195 = vmul.f32 %v131, %v131
      %v196 = vmul.f32 %v132, %v132
      %v197 = vmul.f32 %v133, %v133
      %v198 = vmul.f32 %v134, %v134
      %v199 = vmul.f32 %v135, %v135
      %v200 = vmul.f32 %v136, %v136
      %v201 = vmul.f32 %v137, %v137
      %v202 = vmul.f32 %v138, %v138
      %v203 = vmul.f32 %v139, %v139
      %v204 = vmul.f32 %v140, %v140
      %v205 = vmul.f32 %v141, %v141
      %v206 = vmul.f32 %v142, %v142
      %v207 = vmul.f32 %v143, %v143
      %v208 = vmul.f32 %v144, %v144
      %v209 = vmul.f32 %v145, %v145
      %v210 = vmul.f32 %v146, %v146
      %v211 = vmul.f32 %v147, %v147
      %v212 = vmul.f32 %v148, %v148
      %v213 = vmul.f32 %v149, %v149
      %v214 = vmul.f32 %v150, %v150
      %v215 = vmul.f32 %v151, %v151
      %v216 = vmul.f32 %v152, %v152
      %v217 = vmul.f32 %v153, %v153
      %v218 = vmul.f32 %v154, %v154
      %v219 = vmul.f32 %v155, %v155
      %v220 = vmul.f32 %v156, %v156
      %v221 = vmul.f32 %v157, %v157
      %v222 = vmul.f32 %v158, %v158
      %v223 = vmul.f32 %v159, %v159
      %v224 = vmul.f32 %v160, %v160
      %v225 = vmul.f32 %v161, %v161
      %v226 = vmul.f32 %v162, %v162
      %v227 = vmul.f32 %v163, %v163
      %v228 = vmul.f32 %v164, %v164
      %v229 = vmul.f32 %v165, %v165
      %v230 = vmul.f32 %v166, %v166
      %v231 = vmul.f32 %v167, %v167
      %v232 = vmul.f32 %v168, %v168
      %v233 = vmul.f32 %v169, %v169
      %v234 = vmul.f32 %v170, %v170
      %v235 = vmul.f32 %v171, %v171
      %v236 = vmul.f32 %v172, %v172
      %v237 = vmul.f32 %v173, %v173
      %v238 = vmul.f32 %v174, %v174
      %v239 = vmul.f32 %v175, %v175
      %v240 = vmul.f32 %v176, %v176
      %v241 = vmul.f32 %v177, %v177
      %v242 = vmul.f32 %v178, %v178
      %v243 = vmul.f32 %v179, %v179
      %v244 = vmul.f32 %v180, %v180
      %v245 = vmul.f32 %v181, %v181
      %v246 = vmul.f32 %v182, %v182
      %v247 = vmul.f32 %v183, %v183
      %248 = vadd.xlane.f32.xlu0 %v184
      %v249 = vpop.xlane.xlu0 %248
      %250 = vadd.xlane.f32.xlu0 %v185
      %v251 = vpop.xlane.xlu0 %250
      %252 = vadd.xlane.f32.xlu0 %v186
      %v253 = vpop.xlane.xlu0 %252
      %254 = vadd.xlane.f32.xlu0 %v187
      %v255 = vpop.xlane.xlu0 %254
      %256 = vadd.xlane.f32.xlu0 %v188
      %v257 = vpop.xlane.xlu0 %256
      %258 = vadd.xlane.f32.xlu0 %v189
      %v259 = vpop.xlane.xlu0 %258
      %260 = vadd.xlane.f32.xlu0 %v190
      %v261 = vpop.xlane.xlu0 %260
      %262 = vadd.xlane.f32.xlu0 %v191
      %v263 = vpop.xlane.xlu0 %262
      %264 = vadd.xlane.f32.xlu0 %v192
      %v265 = vpop.xlane.xlu0 %264
      %266 = vadd.xlane.f32.xlu0 %v193
      %v267 = vpop.xlane.xlu0 %266
      %268 = vadd.xlane.f32.xlu0 %v194
      %v269 = vpop.xlane.xlu0 %268
      %270 = vadd.xlane.f32.xlu0 %v195
      %v271 = vpop.xlane.xlu0 %270
      %272 = vadd.xlane.f32.xlu0 %v196
      %v273 = vpop.xlane.xlu0 %272
      %274 = vadd.xlane.f32.xlu0 %v197
      %v275 = vpop.xlane.xlu0 %274
      %276 = vadd.xlane.f32.xlu0 %v198
      %v277 = vpop.xlane.xlu0 %276
      %278 = vadd.xlane.f32.xlu0 %v199
      %v279 = vpop.xlane.xlu0 %278
      %280 = vadd.xlane.f32.xlu0 %v200
      %v281 = vpop.xlane.xlu0 %280
      %282 = vadd.xlane.f32.xlu0 %v201
      %v283 = vpop.xlane.xlu0 %282
      %284 = vadd.xlane.f32.xlu0 %v202
      %v285 = vpop.xlane.xlu0 %284
      %286 = vadd.xlane.f32.xlu0 %v203
      %v287 = vpop.xlane.xlu0 %286
      %288 = vadd.xlane.f32.xlu0 %v204
      %v289 = vpop.xlane.xlu0 %288
      %290 = vadd.xlane.f32.xlu0 %v205
      %v291 = vpop.xlane.xlu0 %290
      %292 = vadd.xlane.f32.xlu0 %v206
      %v293 = vpop.xlane.xlu0 %292
      %294 = vadd.xlane.f32.xlu0 %v207
      %v295 = vpop.xlane.xlu0 %294
      %296 = vadd.xlane.f32.xlu0 %v208
      %v297 = vpop.xlane.xlu0 %296
      %298 = vadd.xlane.f32.xlu0 %v209
      %v299 = vpop.xlane.xlu0 %298
      %300 = vadd.xlane.f32.xlu0 %v210
      %v301 = vpop.xlane.xlu0 %300
      %302 = vadd.xlane.f32.xlu0 %v211
      %v303 = vpop.xlane.xlu0 %302
      %304 = vadd.xlane.f32.xlu0 %v212
      %v305 = vpop.xlane.xlu0 %304
      %306 = vadd.xlane.f32.xlu0 %v213
      %v307 = vpop.xlane.xlu0 %306
      %308 = vadd.xlane.f32.xlu0 %v214
      %v309 = vpop.xlane.xlu0 %308
      %310 = vadd.xlane.f32.xlu0 %v215
      %v311 = vpop.xlane.xlu0 %310
      %312 = vadd.xlane.f32.xlu0 %v216
      %v313 = vpop.xlane.xlu0 %312
      %314 = vadd.xlane.f32.xlu0 %v217
      %v315 = vpop.xlane.xlu0 %314
      %316 = vadd.xlane.f32.xlu0 %v218
      %v317 = vpop.xlane.xlu0 %316
      %318 = vadd.xlane.f32.xlu0 %v219
      %v319 = vpop.xlane.xlu0 %318
      %320 = vadd.xlane.f32.xlu0 %v220
      %v321 = vpop.xlane.xlu0 %320
      %322 = vadd.xlane.f32.xlu0 %v221
      %v323 = vpop.xlane.xlu0 %322
      %324 = vadd.xlane.f32.xlu0 %v222
      %v325 = vpop.xlane.xlu0 %324
      %326 = vadd.xlane.f32.xlu0 %v223
      %v327 = vpop.xlane.xlu0 %326
      %328 = vadd.xlane.f32.xlu0 %v224
      %v329 = vpop.xlane.xlu0 %328
      %330 = vadd.xlane.f32.xlu0 %v225
      %v331 = vpop.xlane.xlu0 %330
      %332 = vadd.xlane.f32.xlu0 %v226
      %v333 = vpop.xlane.xlu0 %332
      %334 = vadd.xlane.f32.xlu0 %v227
      %v335 = vpop.xlane.xlu0 %334
      %336 = vadd.xlane.f32.xlu0 %v228
      %v337 = vpop.xlane.xlu0 %336
      %338 = vadd.xlane.f32.xlu0 %v229
      %v339 = vpop.xlane.xlu0 %338
      %340 = vadd.xlane.f32.xlu0 %v230
      %v341 = vpop.xlane.xlu0 %340
      %342 = vadd.xlane.f32.xlu0 %v231
      %v343 = vpop.xlane.xlu0 %342
      %344 = vadd.xlane.f32.xlu0 %v232
      %v345 = vpop.xlane.xlu0 %344
      %346 = vadd.xlane.f32.xlu0 %v233
      %v347 = vpop.xlane.xlu0 %346
      %348 = vadd.xlane.f32.xlu0 %v234
      %v349 = vpop.xlane.xlu0 %348
      %350 = vadd.xlane.f32.xlu0 %v235
      %v351 = vpop.xlane.xlu0 %350
      %352 = vadd.xlane.f32.xlu0 %v236
      %v353 = vpop.xlane.xlu0 %352
      %354 = vadd.xlane.f32.xlu0 %v237
      %v355 = vpop.xlane.xlu0 %354
      %356 = vadd.xlane.f32.xlu0 %v238
      %v357 = vpop.xlane.xlu0 %356
      %358 = vadd.xlane.f32.xlu0 %v239
      %v359 = vpop.xlane.xlu0 %358
      %360 = vadd.xlane.f32.xlu0 %v240
      %v361 = vpop.xlane.xlu0 %360
      %362 = vadd.xlane.f32.xlu0 %v241
      %v363 = vpop.xlane.xlu0 %362
      %364 = vadd.xlane.f32.xlu0 %v242
      %v365 = vpop.xlane.xlu0 %364
      %366 = vadd.xlane.f32.xlu0 %v243
      %v367 = vpop.xlane.xlu0 %366
      %368 = vadd.xlane.f32.xlu0 %v244
      %v369 = vpop.xlane.xlu0 %368
      %370 = vadd.xlane.f32.xlu0 %v245
      %v371 = vpop.xlane.xlu0 %370
      %372 = vadd.xlane.f32.xlu0 %v246
      %v373 = vpop.xlane.xlu0 %372
      %374 = vadd.xlane.f32.xlu0 %v247
      %v375 = vpop.xlane.xlu0 %374
      %v376 = vmax.f32 %v249, 1e-24
      %v377 = vmax.f32 %v251, 1e-24
      %v378 = vmax.f32 %v253, 1e-24
      %v379 = vmax.f32 %v255, 1e-24
      %v380 = vmax.f32 %v257, 1e-24
      %v381 = vmax.f32 %v259, 1e-24
      %v382 = vmax.f32 %v261, 1e-24
      %v383 = vmax.f32 %v263, 1e-24
      %v384 = vmax.f32 %v265, 1e-24
      %v385 = vmax.f32 %v267, 1e-24
      %v386 = vmax.f32 %v269, 1e-24
      %v387 = vmax.f32 %v271, 1e-24
      %v388 = vmax.f32 %v273, 1e-24
      %v389 = vmax.f32 %v275, 1e-24
      %v390 = vmax.f32 %v277, 1e-24
      %v391 = vmax.f32 %v279, 1e-24
      %v392 = vmax.f32 %v281, 1e-24
      %v393 = vmax.f32 %v283, 1e-24
      %v394 = vmax.f32 %v285, 1e-24
      %v395 = vmax.f32 %v287, 1e-24
      %v396 = vmax.f32 %v289, 1e-24
      %v397 = vmax.f32 %v291, 1e-24
      %v398 = vmax.f32 %v293, 1e-24
      %v399 = vmax.f32 %v295, 1e-24
      %v400 = vmax.f32 %v297, 1e-24
      %v401 = vmax.f32 %v299, 1e-24
      %v402 = vmax.f32 %v301, 1e-24
      %v403 = vmax.f32 %v303, 1e-24
      %v404 = vmax.f32 %v305, 1e-24
      %v405 = vmax.f32 %v307, 1e-24
      %v406 = vmax.f32 %v309, 1e-24
      %v407 = vmax.f32 %v311, 1e-24
      %v408 = vmax.f32 %v313, 1e-24
      %v409 = vmax.f32 %v315, 1e-24
      %v410 = vmax.f32 %v317, 1e-24
      %v411 = vmax.f32 %v319, 1e-24
      %v412 = vmax.f32 %v321, 1e-24
      %v413 = vmax.f32 %v323, 1e-24
      %v414 = vmax.f32 %v325, 1e-24
      %v415 = vmax.f32 %v327, 1e-24
      %v416 = vmax.f32 %v329, 1e-24
      %v417 = vmax.f32 %v331, 1e-24
      %v418 = vmax.f32 %v333, 1e-24
      %v419 = vmax.f32 %v335, 1e-24
      %v420 = vmax.f32 %v337, 1e-24
      %v421 = vmax.f32 %v339, 1e-24
      %v422 = vmax.f32 %v341, 1e-24
      %v423 = vmax.f32 %v343, 1e-24
      %v424 = vmax.f32 %v345, 1e-24
      %v425 = vmax.f32 %v347, 1e-24
      %v426 = vmax.f32 %v349, 1e-24
      %v427 = vmax.f32 %v351, 1e-24
      %v428 = vmax.f32 %v353, 1e-24
      %v429 = vmax.f32 %v355, 1e-24
      %v430 = vmax.f32 %v357, 1e-24
      %v431 = vmax.f32 %v359, 1e-24
      %v432 = vmax.f32 %v361, 1e-24
      %v433 = vmax.f32 %v363, 1e-24
      %v434 = vmax.f32 %v365, 1e-24
      %v435 = vmax.f32 %v367, 1e-24
      %v436 = vmax.f32 %v369, 1e-24
      %v437 = vmax.f32 %v371, 1e-24
      %v438 = vmax.f32 %v373, 1e-24
      %v439 = vmax.f32 %v375, 1e-24
      %v440 = vrsqrt.pop %v376
      %v441 = vrsqrt.pop %v377
      %v442 = vrsqrt.pop %v378
      %v443 = vrsqrt.pop %v379
      %v444 = vrsqrt.pop %v380
      %v445 = vrsqrt.pop %v381
      %v446 = vrsqrt.pop %v382
      %v447 = vrsqrt.pop %v383
      %v448 = vrsqrt.pop %v384
      %v449 = vrsqrt.pop %v385
      %v450 = vrsqrt.pop %v386
      %v451 = vrsqrt.pop %v387
      %v452 = vrsqrt.pop %v388
      %v453 = vrsqrt.pop %v389
      %v454 = vrsqrt.pop %v390
      %v455 = vrsqrt.pop %v391
      %v456 = vrsqrt.pop %v392
      %v457 = vrsqrt.pop %v393
      %v458 = vrsqrt.pop %v394
      %v459 = vrsqrt.pop %v395
      %v460 = vrsqrt.pop %v396
      %v461 = vrsqrt.pop %v397
      %v462 = vrsqrt.pop %v398
      %v463 = vrsqrt.pop %v399
      %v464 = vrsqrt.pop %v400
      %v465 = vrsqrt.pop %v401
      %v466 = vrsqrt.pop %v402
      %v467 = vrsqrt.pop %v403
      %v468 = vrsqrt.pop %v404
      %v469 = vrsqrt.pop %v405
      %v470 = vrsqrt.pop %v406
      %v471 = vrsqrt.pop %v407
      %v472 = vrsqrt.pop %v408
      %v473 = vrsqrt.pop %v409
      %v474 = vrsqrt.pop %v410
      %v475 = vrsqrt.pop %v411
      %v476 = vrsqrt.pop %v412
      %v477 = vrsqrt.pop %v413
      %v478 = vrsqrt.pop %v414
      %v479 = vrsqrt.pop %v415
      %v480 = vrsqrt.pop %v416
      %v481 = vrsqrt.pop %v417
      %v482 = vrsqrt.pop %v418
      %v483 = vrsqrt.pop %v419
      %v484 = vrsqrt.pop %v420
      %v485 = vrsqrt.pop %v421
      %v486 = vrsqrt.pop %v422
      %v487 = vrsqrt.pop %v423
      %v488 = vrsqrt.pop %v424
      %v489 = vrsqrt.pop %v425
      %v490 = vrsqrt.pop %v426
      %v491 = vrsqrt.pop %v427
      %v492 = vrsqrt.pop %v428
      %v493 = vrsqrt.pop %v429
      %v494 = vrsqrt.pop %v430
      %v495 = vrsqrt.pop %v431
      %v496 = vrsqrt.pop %v432
      %v497 = vrsqrt.pop %v433
      %v498 = vrsqrt.pop %v434
      %v499 = vrsqrt.pop %v435
      %v500 = vrsqrt.pop %v436
      %v501 = vrsqrt.pop %v437
      %v502 = vrsqrt.pop %v438
      %v503 = vrsqrt.pop %v439
      %v504 = vmul.f32 %v120, %v440
      %v505 = vmul.f32 %v121, %v441
      %v506 = vmul.f32 %v122, %v442
      %v507 = vmul.f32 %v123, %v443
      %v508 = vmul.f32 %v124, %v444
      %v509 = vmul.f32 %v125, %v445
      %v510 = vmul.f32 %v126, %v446
      %v511 = vmul.f32 %v127, %v447
      %v512 = vmul.f32 %v128, %v448
      %v513 = vmul.f32 %v129, %v449
      %v514 = vmul.f32 %v130, %v450
      %v515 = vmul.f32 %v131, %v451
      %v516 = vmul.f32 %v132, %v452
      %v517 = vmul.f32 %v133, %v453
      %v518 = vmul.f32 %v134, %v454
      %v519 = vmul.f32 %v135, %v455
      %v520 = vmul.f32 %v136, %v456
      %v521 = vmul.f32 %v137, %v457
      %v522 = vmul.f32 %v138, %v458
      %v523 = vmul.f32 %v139, %v459
      %v524 = vmul.f32 %v140, %v460
      %v525 = vmul.f32 %v141, %v461
      %v526 = vmul.f32 %v142, %v462
      %v527 = vmul.f32 %v143, %v463
      %v528 = vmul.f32 %v144, %v464
      %v529 = vmul.f32 %v145, %v465
      %v530 = vmul.f32 %v146, %v466
      %v531 = vmul.f32 %v147, %v467
      %v532 = vmul.f32 %v148, %v468
      %v533 = vmul.f32 %v149, %v469
      %v534 = vmul.f32 %v150, %v470
      %v535 = vmul.f32 %v151, %v471
      %v536 = vmul.f32 %v152, %v472
      %v537 = vmul.f32 %v153, %v473
      %v538 = vmul.f32 %v154, %v474
      %v539 = vmul.f32 %v155, %v475
      %v540 = vmul.f32 %v156, %v476
      %v541 = vmul.f32 %v157, %v477
      %v542 = vmul.f32 %v158, %v478
      %v543 = vmul.f32 %v159, %v479
      %v544 = vmul.f32 %v160, %v480
      %v545 = vmul.f32 %v161, %v481
      %v546 = vmul.f32 %v162, %v482
      %v547 = vmul.f32 %v163, %v483
      %v548 = vmul.f32 %v164, %v484
      %v549 = vmul.f32 %v165, %v485
      %v550 = vmul.f32 %v166, %v486
      %v551 = vmul.f32 %v167, %v487
      %v552 = vmul.f32 %v168, %v488
      %v553 = vmul.f32 %v169, %v489
      %v554 = vmul.f32 %v170, %v490
      %v555 = vmul.f32 %v171, %v491
      %v556 = vmul.f32 %v172, %v492
      %v557 = vmul.f32 %v173, %v493
      %v558 = vmul.f32 %v174, %v494
      %v559 = vmul.f32 %v175, %v495
      %v560 = vmul.f32 %v176, %v496
      %v561 = vmul.f32 %v177, %v497
      %v562 = vmul.f32 %v178, %v498
      %v563 = vmul.f32 %v179, %v499
      %v564 = vmul.f32 %v180, %v500
      %v565 = vmul.f32 %v181, %v501
      %v566 = vmul.f32 %v182, %v502
      %v567 = vmul.f32 %v183, %v503
      %568 = vst [vmem:[%s118] sm:$0xff] %v504
      %569 = vst [vmem:[%s118 + $0x8] sm:$0xff] %v505
      %570 = vst [vmem:[%s118 + $0x10] sm:$0xff] %v506
      %571 = vst [vmem:[%s118 + $0x18] sm:$0xff] %v507
      %572 = vst [vmem:[%s118 + $0x20] sm:$0xff] %v508
      %573 = vst [vmem:[%s118 + $0x28] sm:$0xff] %v509
      %574 = vst [vmem:[%s118 + $0x30] sm:$0xff] %v510
      %575 = vst [vmem:[%s118 + $0x38] sm:$0xff] %v511
      %576 = vst [vmem:[%s118 + $0x40] sm:$0xff] %v512
      %577 = vst [vmem:[%s118 + $0x48] sm:$0xff] %v513
      %578 = vst [vmem:[%s118 + $0x50] sm:$0xff] %v514
      %579 = vst [vmem:[%s118 + $0x58] sm:$0xff] %v515
      %580 = vst [vmem:[%s118 + $0x60] sm:$0xff] %v516
      %581 = vst [vmem:[%s118 + $0x68] sm:$0xff] %v517
      %582 = vst [vmem:[%s118 + $0x70] sm:$0xff] %v518
      %583 = vst [vmem:[%s118 + $0x78] sm:$0xff] %v519
      %584 = vst [vmem:[%s118 + $0x80] sm:$0xff] %v520
      %585 = vst [vmem:[%s118 + $0x88] sm:$0xff] %v521
      %586 = vst [vmem:[%s118 + $0x90] sm:$0xff] %v522
      %587 = vst [vmem:[%s118 + $0x98] sm:$0xff] %v523
      %588 = vst [vmem:[%s118 + $0xa0] sm:$0xff] %v524
      %589 = vst [vmem:[%s118 + $0xa8] sm:$0xff] %v525
      %590 = vst [vmem:[%s118 + $0xb0] sm:$0xff] %v526
      %591 = vst [vmem:[%s118 + $0xb8] sm:$0xff] %v527
      %592 = vst [vmem:[%s118 + $0xc0] sm:$0xff] %v528
      %593 = vst [vmem:[%s118 + $0xc8] sm:$0xff] %v529
      %594 = vst [vmem:[%s118 + $0xd0] sm:$0xff] %v530
      %595 = vst [vmem:[%s118 + $0xd8] sm:$0xff] %v531
      %596 = vst [vmem:[%s118 + $0xe0] sm:$0xff] %v532
      %597 = vst [vmem:[%s118 + $0xe8] sm:$0xff] %v533
      %598 = vst [vmem:[%s118 + $0xf0] sm:$0xff] %v534
      %599 = vst [vmem:[%s118 + $0xf8] sm:$0xff] %v535
      %600 = vst [vmem:[%s118 + $0x100] sm:$0xff] %v536
      %601 = vst [vmem:[%s118 + $0x108] sm:$0xff] %v537
      %602 = vst [vmem:[%s118 + $0x110] sm:$0xff] %v538
      %603 = vst [vmem:[%s118 + $0x118] sm:$0xff] %v539
      %604 = vst [vmem:[%s118 + $0x120] sm:$0xff] %v540
      %605 = vst [vmem:[%s118 + $0x128] sm:$0xff] %v541
      %606 = vst [vmem:[%s118 + $0x130] sm:$0xff] %v542
      %607 = vst [vmem:[%s118 + $0x138] sm:$0xff] %v543
      %608 = vst [vmem:[%s118 + $0x140] sm:$0xff] %v544
      %609 = vst [vmem:[%s118 + $0x148] sm:$0xff] %v545
      %610 = vst [vmem:[%s118 + $0x150] sm:$0xff] %v546
      %611 = vst [vmem:[%s118 + $0x158] sm:$0xff] %v547
      %612 = vst [vmem:[%s118 + $0x160] sm:$0xff] %v548
      %613 = vst [vmem:[%s118 + $0x168] sm:$0xff] %v549
      %614 = vst [vmem:[%s118 + $0x170] sm:$0xff] %v550
      %615 = vst [vmem:[%s118 + $0x178] sm:$0xff] %v551
      %616 = vst [vmem:[%s118 + $0x180] sm:$0xff] %v552
      %617 = vst [vmem:[%s118 + $0x188] sm:$0xff] %v553
      %618 = vst [vmem:[%s118 + $0x190] sm:$0xff] %v554
      %619 = vst [vmem:[%s118 + $0x198] sm:$0xff] %v555
      %620 = vst [vmem:[%s118 + $0x1a0] sm:$0xff] %v556
      %621 = vst [vmem:[%s118 + $0x1a8] sm:$0xff] %v557
      %622 = vst [vmem:[%s118 + $0x1b0] sm:$0xff] %v558
      %623 = vst [vmem:[%s118 + $0x1b8] sm:$0xff] %v559
      %624 = vst [vmem:[%s118 + $0x1c0] sm:$0xff] %v560
      %625 = vst [vmem:[%s118 + $0x1c8] sm:$0xff] %v561
      %626 = vst [vmem:[%s118 + $0x1d0] sm:$0xff] %v562
      %627 = vst [vmem:[%s118 + $0x1d8] sm:$0xff] %v563
      %628 = vst [vmem:[%s118 + $0x1e0] sm:$0xff] %v564
      %629 = vst [vmem:[%s118 + $0x1e8] sm:$0xff] %v565
      %630 = vst [vmem:[%s118 + $0x1f0] sm:$0xff] %v566
      %631 = vst [vmem:[%s118 + $0x1f8] sm:$0xff] %v567
      %s632 = smul.u32 64, %s12
      %p633 = scmp.lt.s32.totalorder %s632, 255
      %s634 = scalar_select %p633, %s632, 255
      %s635 = smul.addr %s634, 8
      %s636 = scalar_lea.vmem %s1, %s635
      // Predicated region
      $region25: #{_device_pipeline.7} parent=23 // pred_check
        %p637 = pneg %p56
      $region26: #{_device_pipeline.7} parent=23 // pred_check_branch
        %639 = sbr.rel (%p637) target = $region28
      $region27: #{_device_pipeline.7} parent=23 // pred_region
        %s640 = smul.u32 64, %s12
      $region28: #{_device_pipeline.7} parent=23 // pred_fallthru
        _
    $region24: #{_device_pipeline.7} parent=5 // pred_fallthru
      _
    %p641 = scmp.le.s32.totalorder 2, %s7
    // Predicated region
    $region29: #{_device_pipeline.7} parent=5 // pred_check
      %p642 = pneg %p641
    $region30: #{_device_pipeline.7} parent=5 // pred_check_branch
      %644 = sbr.rel (%p642) target = $region32
    $region31: #{_device_pipeline.7} parent=5 // pred_region
      %s645 = ssub.s32 %s7, 2
      // Predicated region
      $region33: #{_device_pipeline.7} parent=31 // pred_check
        %p646 = pneg %p62
      $region34: #{_device_pipeline.7} parent=31 // pred_check_branch
        %648 = sbr.rel (%p646) target = $region36
      $region35: #{_device_pipeline.7} parent=31 // pred_region
        %s649 = smul.u32 64, %s13
        %p650 = scmp.lt.s32.totalorder %s649, 255
        %s651 = scalar_select %p650, %s649, 255
        %s652 = smul.addr %s651, 8
        %s653 = scalar_lea.vmem %s1, %s652
      $region36: #{_device_pipeline.7} parent=31 // pred_fallthru
        _
    $region32: #{_device_pipeline.7} parent=5 // pred_fallthru
      _
  $region6: #{_device_pipeline.7} parent=0 // loop_footer
    %s11 = sadd.s32 1, %s7
  $region7: #{_device_pipeline.7} parent=0 // loop_footer_branch
    %6 = sbr.rel target = $region3
  $region8: #{_device_pipeline.7} parent=0 // loop_exit
    _

// kernel: _device_pipeline.8
$region0: #{_device_pipeline.8}
  #allocation0 [shape = 'u32[]', space=smem, size = 0x4, offset = 0x4, fixed_abs, tag = 'smem constant byte address 0x4 - core index']
  #allocation1 [shape = 'u32[144,128]{1,0:T(1,128)}', space=vmem, size = 0x12000, scoped, tag = 'internal scratch']
  %s0 = inlined_call_operand.vmem [shape: bf16[2,32,32], index: 0, kind: input, shape index: {}]
  %s1 = inlined_call_operand.vmem [shape: bf16[2,32,32], index: 1, kind: input, shape index: {}]
  %s2 = inlined_call_operand.vmem [shape: f32[2,32,32], index: 2, kind: output, shape index: {0}]
  %s3 = inlined_call_operand.vmem [shape: f32[2,32,32], index: 3, kind: output, shape index: {1}]
  %4 = xla_tuple %s2, %s3
  %s5 = sld [smem:[#allocation0]]
  $region49: #{_device_pipeline.8} parent=0
    _
  %s7 = ssub.s32 1, %s5
  %s8 = scalar_select 0, %s7, %s5
  loop: start=0, step=1, limit=4
  $region2: #{_device_pipeline.8} parent=0 // loop_pre_header
    _
  $region3: #{_device_pipeline.8} parent=0 // loop_header
    %s10 = sphi 0, %s14
    %p11 = scmp.ge.s32.totalorder %s10, 4
    %s20 = sphi 0, %s22
    %s23 = sphi 0, %s20
    %s24 = sphi 0, %s23
    %s40 = sphi 0, %s24
    %s46 = sphi 0, %s48
    %s49 = sphi 0, %s46
    %s50 = sphi 0, %s49
    %s66 = sphi 0, %s50
    %s72 = sphi 0, %s74
    %s75 = sphi 0, %s72
    %s76 = sphi 0, %s75
    %s92 = sphi 0, %s76
    %s98 = sphi 0, %s100
    %s101 = sphi 0, %s98
    %s102 = sphi 0, %s101
    %s118 = sphi 0, %s102
  $region4: #{_device_pipeline.8} parent=0 // loop_header_branch
    %13 = sbr.rel (%p11) target = $region8
  $region5: #{_device_pipeline.8} parent=0 // loop_body
    %s15 = ssub.s32 %s10, 1
    %s16 = ssub.s32 %s10, 2
    %s17 = sadd.s32 %s10, 1
    %s18 = ssub.s32 %s10, %s17
    %p19 = scmp.eq.s32.totalorder %s18, 0
    %s21 = sadd.s32 %s20, 1
    %s22 = scalar_select %p19, %s20, %s21
    %p25 = pneg %p19
    %p26 = scmp.eq.s32.totalorder %s10, 1
    %p27 = por %p25, %p26
    %p28 = scmp.ne.s32.totalorder %s20, %s23
    %p29 = scmp.eq.s32.totalorder %s10, 0
    %p30 = por %p28, %p29
    %p31 = scmp.ne.s32.totalorder %s20, %s23
    %p32 = scmp.eq.s32.totalorder %s15, 1
    %p33 = por %p31, %p32
    %p34 = scmp.ne.s32.totalorder %s23, %s24
    %p35 = scmp.eq.s32.totalorder %s15, 0
    %p36 = por %p34, %p35
    %p37 = scmp.ne.s32.totalorder %s23, %s24
    %p38 = scmp.eq.s32.totalorder %s16, 1
    %p39 = por %p37, %p38
    %p41 = scmp.ne.s32.totalorder %s24, %s40
    %p42 = scmp.eq.s32.totalorder %s16, 0
    %p43 = por %p41, %p42
    %s44 = ssub.s32 %s10, %s17
    %p45 = scmp.eq.s32.totalorder %s44, 0
    %s47 = sadd.s32 %s46, 1
    %s48 = scalar_select %p45, %s46, %s47
    %p51 = pneg %p45
    %p52 = scmp.eq.s32.totalorder %s10, 1
    %p53 = por %p51, %p52
    %p54 = scmp.ne.s32.totalorder %s46, %s49
    %p55 = scmp.eq.s32.totalorder %s10, 0
    %p56 = por %p54, %p55
    %p57 = scmp.ne.s32.totalorder %s46, %s49
    %p58 = scmp.eq.s32.totalorder %s15, 1
    %p59 = por %p57, %p58
    %p60 = scmp.ne.s32.totalorder %s49, %s50
    %p61 = scmp.eq.s32.totalorder %s15, 0
    %p62 = por %p60, %p61
    %p63 = scmp.ne.s32.totalorder %s49, %s50
    %p64 = scmp.eq.s32.totalorder %s16, 1
    %p65 = por %p63, %p64
    %p67 = scmp.ne.s32.totalorder %s50, %s66
    %p68 = scmp.eq.s32.totalorder %s16, 0
    %p69 = por %p67, %p68
    %s70 = ssub.s32 %s10, %s17
    %p71 = scmp.eq.s32.totalorder %s70, 0
    %s73 = sadd.s32 %s72, 1
    %s74 = scalar_select %p71, %s72, %s73
    %p77 = pneg %p71
    %p78 = scmp.eq.s32.totalorder %s10, 1
    %p79 = por %p77, %p78
    %p80 = scmp.ne.s32.totalorder %s72, %s75
    %p81 = scmp.eq.s32.totalorder %s10, 0
    %p82 = por %p80, %p81
    %p83 = scmp.ne.s32.totalorder %s72, %s75
    %p84 = scmp.eq.s32.totalorder %s15, 1
    %p85 = por %p83, %p84
    %p86 = scmp.ne.s32.totalorder %s75, %s76
    %p87 = scmp.eq.s32.totalorder %s15, 0
    %p88 = por %p86, %p87
    %p89 = scmp.ne.s32.totalorder %s75, %s76
    %p90 = scmp.eq.s32.totalorder %s16, 1
    %p91 = por %p89, %p90
    %p93 = scmp.ne.s32.totalorder %s76, %s92
    %p94 = scmp.eq.s32.totalorder %s16, 0
    %p95 = por %p93, %p94
    %s96 = ssub.s32 %s10, %s17
    %p97 = scmp.eq.s32.totalorder %s96, 0
    %s99 = sadd.s32 %s98, 1
    %s100 = scalar_select %p97, %s98, %s99
    %p103 = pneg %p97
    %p104 = scmp.eq.s32.totalorder %s10, 1
    %p105 = por %p103, %p104
    %p106 = scmp.ne.s32.totalorder %s98, %s101
    %p107 = scmp.eq.s32.totalorder %s10, 0
    %p108 = por %p106, %p107
    %p109 = scmp.ne.s32.totalorder %s98, %s101
    %p110 = scmp.eq.s32.totalorder %s15, 1
    %p111 = por %p109, %p110
    %p112 = scmp.ne.s32.totalorder %s101, %s102
    %p113 = scmp.eq.s32.totalorder %s15, 0
    %p114 = por %p112, %p113
    %p115 = scmp.ne.s32.totalorder %s101, %s102
    %p116 = scmp.eq.s32.totalorder %s16, 1
    %p117 = por %p115, %p116
    %p119 = scmp.ne.s32.totalorder %s102, %s118
    %p120 = scmp.eq.s32.totalorder %s16, 0
    %p121 = por %p119, %p120
    %p122 = scmp.le.s32.totalorder 1, %s10
    %p123 = scmp.lt.s32.totalorder %s10, 3
    %p124 = pnand %p122, %p123
    %p125 = pneg %p124
    // Predicated region
    $region9: #{_device_pipeline.8} parent=5 // pred_check
      _
    $region10: #{_device_pipeline.8} parent=5 // pred_check_branch
      %127 = sbr.rel (%p124) target = $region12
    $region11: #{_device_pipeline.8} parent=5 // pred_region
      %s128 = ssub.s32 %s10, 1
    $region12: #{_device_pipeline.8} parent=5 // pred_fallthru
      _
    %p129 = scmp.lt.s32.totalorder %s10, 2
    // Predicated region
    $region13: #{_device_pipeline.8} parent=5 // pred_check
      %p130 = pneg %p129
    $region14: #{_device_pipeline.8} parent=5 // pred_check_branch
      %132 = sbr.rel (%p130) target = $region16
    $region15: #{_device_pipeline.8} parent=5 // pred_region
      // Predicated region
      $region17: #{_device_pipeline.8} parent=15 // pred_check
        %p133 = pneg %p30
      $region18: #{_device_pipeline.8} parent=15 // pred_check_branch
        %135 = sbr.rel (%p133) target = $region20
      $region19: #{_device_pipeline.8} parent=15 // pred_region
        %p136 = scmp.lt.s32.totalorder %s10, 1
        %s137 = scalar_select %p136, %s10, 1
        %s138 = smul.addr %s137, 4
        %s139 = smul.addr %s138, 4
        %s140 = scalar_lea.vmem %s0, %s139
      $region20: #{_device_pipeline.8} parent=15 // pred_fallthru
        _
      // Predicated region
      $region21: #{_device_pipeline.8} parent=15 // pred_check
        %p141 = pneg %p56
      $region22: #{_device_pipeline.8} parent=15 // pred_check_branch
        %143 = sbr.rel (%p141) target = $region24
      $region23: #{_device_pipeline.8} parent=15 // pred_region
        %p144 = scmp.lt.s32.totalorder %s10, 1
        %s145 = scalar_select %p144, %s10, 1
        %s146 = smul.addr %s145, 4
        %s147 = smul.addr %s146, 4
        %s148 = scalar_lea.vmem %s1, %s147
      $region24: #{_device_pipeline.8} parent=15 // pred_fallthru
        _
    $region16: #{_device_pipeline.8} parent=5 // pred_fallthru
      _
    %p149 = scmp.le.s32.totalorder 1, %s10
    %p150 = scmp.lt.s32.totalorder %s10, 3
    %p151 = pnand %p149, %p150
    %p152 = pneg %p151
    // Predicated region
    $region25: #{_device_pipeline.8} parent=5 // pred_check
      _
    $region26: #{_device_pipeline.8} parent=5 // pred_check_branch
      %154 = sbr.rel (%p151) target = $region28
    $region27: #{_device_pipeline.8} parent=5 // pred_region
      %s155 = ssub.s32 %s10, 1
      %p156 = scmp.lt.s32.totalorder %s15, 1
      %s157 = scalar_select %p156, %s15, 1
      %s158 = smul.addr %s157, 4
      %s159 = smul.addr %s158, 4
      %s160 = scalar_lea.vmem %s0, %s159
      %p161 = pneg %p36
      %p162 = pneg %p33
      %p163 = scmp.lt.s32.totalorder %s15, 1
      %s164 = scalar_select %p163, %s15, 1
      %s165 = smul.addr %s164, 4
      %s166 = smul.addr %s165, 4
      %s167 = scalar_lea.vmem %s1, %s166
      %p168 = pneg %p62
      %p169 = pneg %p59
      %p170 = pneg %p88
      %p171 = pneg %p85
      %p172 = scmp.lt.s32.totalorder %s15, 1
      %s173 = scalar_select %p172, %s15, 1
      %s174 = smul.addr %s173, 4
      %s175 = smul.addr %s174, 8
      %s176 = scalar_lea.vmem %s2, %s175
      %p177 = pneg %p114
      %p178 = pneg %p111
      %p179 = scmp.lt.s32.totalorder %s15, 1
      %s180 = scalar_select %p179, %s15, 1
      %s181 = smul.addr %s180, 4
      %s182 = smul.addr %s181, 8
      %s183 = scalar_lea.vmem %s3, %s182
      %p184 = scmp.lt.s32.totalorder %s15, 1
      %s185 = scalar_select %p184, %s15, 1
      %s186 = smul.addr %s185, 4
      %s187 = smul.addr %s186, 4
      %s188 = scalar_lea.vmem %s0, %s187
      %p189 = scmp.lt.s32.totalorder %s15, 1
      %s190 = scalar_select %p189, %s15, 1
      %s191 = smul.addr %s190, 4
      %s192 = smul.addr %s191, 4
      %s193 = scalar_lea.vmem %s1, %s192
      %p194 = scmp.lt.s32.totalorder %s15, 1
      %s195 = scalar_select %p194, %s15, 1
      %s196 = smul.addr %s195, 4
      %s197 = smul.addr %s196, 8
      %s198 = scalar_lea.vmem %s2, %s197
      %p199 = scmp.lt.s32.totalorder %s15, 1
      %s200 = scalar_select %p199, %s15, 1
      %s201 = smul.addr %s200, 4
      %s202 = smul.addr %s201, 8
      %s203 = scalar_lea.vmem %s3, %s202
      %v205 = vld [vmem:[%s188] sm:$0xf]
      %v206 = vld [vmem:[%s188 + $0x4] sm:$0xf]
      %v207 = vld [vmem:[%s188 + $0x8] sm:$0xf]
      %v208 = vld [vmem:[%s188 + $0xc] sm:$0xf]
      %v209 = vld [vmem:[%s193] sm:$0xf]
      %v210 = vld [vmem:[%s193 + $0x4] sm:$0xf]
      %v211 = vld [vmem:[%s193 + $0x8] sm:$0xf]
      %v212 = vld [vmem:[%s193 + $0xc] sm:$0xf]
      %v217 = vunpack.c.l.b16 %v205
      %v218 = vunpack.c.l.b16 %v206
      %v219 = vunpack.c.l.b16 %v207
      %v220 = vunpack.c.l.b16 %v208
      %v221 = vpack.c.b16 %v218, %v217
      %v222 = vpack.c.b16 %v220, %v219
      %vm223 = vcmask 261120
      %v225 = vsel %vm223, %v221, 0
      %v228 = vsel %vm223, %v222, 0
      %230 = vmatprep.subr.bf16.mxu0 0
      %231 = vmatpush1.bf16.xpose.msra.mxu0 0
      %232 = vmatprep.subr.bf16.mxu0 0
      %233 = vmatpush1.bf16.xpose.msra.mxu0 0
      %234 = vmatprep.subr.bf16.mxu0 0
      %235 = vmatpush1.bf16.xpose.msra.mxu0 0
      %236 = vmatprep.subr.bf16.mxu0 0
      %237 = vmatpush1.bf16.xpose.msra.mxu0 0
      %238 = vmatprep.subr.bf16.mxu0 0
      %239 = vmatpush1.bf16.xpose.msra.mxu0 0
      %240 = vmatprep.subr.bf16.mxu0 0
      %241 = vmatpush1.bf16.xpose.msra.mxu0 0
      %242 = vmatprep.subr.bf16.mxu0 0
      %243 = vmatpush1.bf16.xpose.msra.mxu0 %v228
      %244 = vmatprep.subr.bf16.mxu0 0
      %245 = vmatpush1.bf16.xpose.msra.mxu0 %v225
      %246 = vmatprep.subr.bf16.mxu0 0
      %247 = vmatpush2.bf16.xpose.msra.mxu0 0
      %248 = vmatprep.subr.bf16.mxu0 0
      %249 = vmatpush2.bf16.xpose.msra.mxu0 0
      %250 = vmatprep.subr.bf16.mxu0 0
      %251 = vmatpush2.bf16.xpose.msra.mxu0 0
      %252 = vmatprep.subr.bf16.mxu0 0
      %253 = vmatpush2.bf16.xpose.msra.mxu0 0
      %254 = vmatprep.subr.bf16.mxu0 0
      %255 = vmatpush2.bf16.xpose.msra.mxu0 0
      %256 = vmatprep.subr.bf16.mxu0 0
      %257 = vmatpush2.bf16.xpose.msra.mxu0 0
      %258 = vmatprep.subr.bf16.mxu0 0
      %259 = vmatpush2.bf16.xpose.msra.mxu0 0
      %260 = vmatprep.subr.bf16.mxu0 0
      %261 = vmatpush2.bf16.xpose.msra.mxu0 0
      %262 = vmatprep.mubr.bf16.mxu0 0
      %263 = vmatmul.mubr.bf16.gmra.mxu0 %v225
      %v264 = vpop.f32.mrf.mxu0
      %v265 = vadd.f32 0.0, %v264
      %v266 = vpop.f32.mrf.mxu0
      %v267 = vpop.f32.mrf.mxu0
      %v268 = vadd.f32 0.0, %v267
      %v269 = vpop.f32.mrf.mxu0
      %270 = vmatprep.mubr.bf16.mxu0 0
      %271 = vmatmul.mubr.bf16.gmra.mxu0 %v228
      %v272 = vpop.f32.mrf.mxu0
      %v273 = vadd.f32 0.0, %v272
      %v274 = vpop.f32.mrf.mxu0
      %v275 = vpop.f32.mrf.mxu0
      %v276 = vadd.f32 0.0, %v275
      %v277 = vpop.f32.mrf.mxu0
      %278 = vdwg.mxu0
      %279 = vst.msk [vmem:[%s198] sm:$0xff] %vm223, %v265
      %280 = vst.msk [vmem:[%s198 + $0x8] sm:$0xff] %vm223, %v268
      %281 = vst.msk [vmem:[%s198 + $0x10] sm:$0xff] %vm223, %v273
      %282 = vst.msk [vmem:[%s198 + $0x18] sm:$0xff] %vm223, %v276
      %v287 = vunpack.c.l.b16 %v209
      %v288 = vunpack.c.l.b16 %v210
      %v289 = vunpack.c.l.b16 %v211
      %v290 = vunpack.c.l.b16 %v212
      %v291 = vpack.c.b16 %v288, %v287
      %v292 = vpack.c.b16 %v290, %v289
      %v294 = vsel %vm223, %v291, 0
      %v297 = vsel %vm223, %v292, 0
      %299 = vmatprep.subr.bf16.mxu0 0
      %300 = vmatpush1.bf16.xpose.msra.mxu0 0
      %301 = vmatprep.subr.bf16.mxu0 0
      %302 = vmatpush1.bf16.xpose.msra.mxu0 0
      %303 = vmatprep.subr.bf16.mxu0 0
      %304 = vmatpush1.bf16.xpose.msra.mxu0 0
      %305 = vmatprep.subr.bf16.mxu0 0
      %306 = vmatpush1.bf16.xpose.msra.mxu0 0
      %307 = vmatprep.subr.bf16.mxu0 0
      %308 = vmatpush1.bf16.xpose.msra.mxu0 0
      %309 = vmatprep.subr.bf16.mxu0 0
      %310 = vmatpush1.bf16.xpose.msra.mxu0 0
      %311 = vmatprep.subr.bf16.mxu0 0
      %312 = vmatpush1.bf16.xpose.msra.mxu0 %v297
      %313 = vmatprep.subr.bf16.mxu0 0
      %314 = vmatpush1.bf16.xpose.msra.mxu0 %v294
      %315 = vmatprep.subr.bf16.mxu0 0
      %316 = vmatpush2.bf16.xpose.msra.mxu0 0
      %317 = vmatprep.subr.bf16.mxu0 0
      %318 = vmatpush2.bf16.xpose.msra.mxu0 0
      %319 = vmatprep.subr.bf16.mxu0 0
      %320 = vmatpush2.bf16.xpose.msra.mxu0 0
      %321 = vmatprep.subr.bf16.mxu0 0
      %322 = vmatpush2.bf16.xpose.msra.mxu0 0
      %323 = vmatprep.subr.bf16.mxu0 0
      %324 = vmatpush2.bf16.xpose.msra.mxu0 0
      %325 = vmatprep.subr.bf16.mxu0 0
      %326 = vmatpush2.bf16.xpose.msra.mxu0 0
      %327 = vmatprep.subr.bf16.mxu0 0
      %328 = vmatpush2.bf16.xpose.msra.mxu0 0
      %329 = vmatprep.subr.bf16.mxu0 0
      %330 = vmatpush2.bf16.xpose.msra.mxu0 0
      %331 = vmatprep.mubr.bf16.mxu0 0
      %332 = vmatmul.mubr.bf16.gmra.mxu0 %v294
      %v333 = vpop.f32.mrf.mxu0
      %v334 = vadd.f32 0.0, %v333
      %v335 = vpop.f32.mrf.mxu0
      %v336 = vpop.f32.mrf.mxu0
      %v337 = vadd.f32 0.0, %v336
      %v338 = vpop.f32.mrf.mxu0
      %339 = vmatprep.mubr.bf16.mxu0 0
      %340 = vmatmul.mubr.bf16.gmra.mxu0 %v297
      %v341 = vpop.f32.mrf.mxu0
      %v342 = vadd.f32 0.0, %v341
      %v343 = vpop.f32.mrf.mxu0
      %v344 = vpop.f32.mrf.mxu0
      %v345 = vadd.f32 0.0, %v344
      %v346 = vpop.f32.mrf.mxu0
      %347 = vdwg.mxu0
      %348 = vst.msk [vmem:[%s203] sm:$0xff] %vm223, %v334
      %349 = vst.msk [vmem:[%s203 + $0x8] sm:$0xff] %vm223, %v337
      %350 = vst.msk [vmem:[%s203 + $0x10] sm:$0xff] %vm223, %v342
      %351 = vst.msk [vmem:[%s203 + $0x18] sm:$0xff] %vm223, %v345
      %p352 = scmp.lt.s32.totalorder %s15, 1
      %s353 = scalar_select %p352, %s15, 1
      %s354 = smul.addr %s353, 4
      %s355 = smul.addr %s354, 8
      %s356 = scalar_lea.vmem %s2, %s355
      %p357 = scmp.lt.s32.totalorder %s15, 1
      %s358 = scalar_select %p357, %s15, 1
      %s359 = smul.addr %s358, 4
      %s360 = smul.addr %s359, 8
      %s361 = scalar_lea.vmem %s3, %s360
      // Predicated region
      $region29: #{_device_pipeline.8} parent=27 // pred_check
        %p362 = pneg %p85
      $region30: #{_device_pipeline.8} parent=27 // pred_check_branch
        %364 = sbr.rel (%p362) target = $region32
      $region31: #{_device_pipeline.8} parent=27 // pred_region
        _
      $region32: #{_device_pipeline.8} parent=27 // pred_fallthru
        _
      // Predicated region
      $region33: #{_device_pipeline.8} parent=27 // pred_check
        %p365 = pneg %p111
      $region34: #{_device_pipeline.8} parent=27 // pred_check_branch
        %367 = sbr.rel (%p365) target = $region36
      $region35: #{_device_pipeline.8} parent=27 // pred_region
        _
      $region36: #{_device_pipeline.8} parent=27 // pred_fallthru
        _
    $region28: #{_device_pipeline.8} parent=5 // pred_fallthru
      _
    %p368 = scmp.le.s32.totalorder 2, %s10
    // Predicated region
    $region37: #{_device_pipeline.8} parent=5 // pred_check
      %p369 = pneg %p368
    $region38: #{_device_pipeline.8} parent=5 // pred_check_branch
      %371 = sbr.rel (%p369) target = $region40
    $region39: #{_device_pipeline.8} parent=5 // pred_region
      %s372 = ssub.s32 %s10, 2
      // Predicated region
      $region41: #{_device_pipeline.8} parent=39 // pred_check
        %p373 = pneg %p91
      $region42: #{_device_pipeline.8} parent=39 // pred_check_branch
        %375 = sbr.rel (%p373) target = $region44
      $region43: #{_device_pipeline.8} parent=39 // pred_region
        %p376 = scmp.lt.s32.totalorder %s16, 1
        %s377 = scalar_select %p376, %s16, 1
        %s378 = smul.addr %s377, 4
        %s379 = smul.addr %s378, 8
        %s380 = scalar_lea.vmem %s2, %s379
      $region44: #{_device_pipeline.8} parent=39 // pred_fallthru
        _
      // Predicated region
      $region45: #{_device_pipeline.8} parent=39 // pred_check
        %p381 = pneg %p117
      $region46: #{_device_pipeline.8} parent=39 // pred_check_branch
        %383 = sbr.rel (%p381) target = $region48
      $region47: #{_device_pipeline.8} parent=39 // pred_region
        %p384 = scmp.lt.s32.totalorder %s16, 1
        %s385 = scalar_select %p384, %s16, 1
        %s386 = smul.addr %s385, 4
        %s387 = smul.addr %s386, 8
        %s388 = scalar_lea.vmem %s3, %s387
      $region48: #{_device_pipeline.8} parent=39 // pred_fallthru
        _
    $region40: #{_device_pipeline.8} parent=5 // pred_fallthru
      _
  $region6: #{_device_pipeline.8} parent=0 // loop_footer
    %s14 = sadd.s32 1, %s10
  $region7: #{_device_pipeline.8} parent=0 // loop_footer_branch
    %9 = sbr.rel target = $region3
  $region8: #{_device_pipeline.8} parent=0 // loop_exit
    _

// kernel: _device_pipeline.9
$region0: #{_device_pipeline.9}
  #allocation0 [shape = 'u32[]', space=smem, size = 0x4, offset = 0x4, fixed_abs, tag = 'smem constant byte address 0x4 - core index']
  #allocation1 [shape = 'u32[144,128]{1,0:T(1,128)}', space=vmem, size = 0x12000, scoped, tag = 'internal scratch']
  %s0 = inlined_call_operand.vmem [shape: f32[2,8,128], index: 0, kind: input, shape index: {}]
  %s1 = inlined_call_operand.vmem [shape: f32[2,8,128], index: 1, kind: input, shape index: {}]
  %s2 = inlined_call_operand.vmem [shape: f32[2,8,128], index: 2, kind: input, shape index: {}]
  %s3 = inlined_call_operand.vmem [shape: f32[2,1,1], index: 3, kind: output, shape index: {}]
  %s4 = sld [smem:[#allocation0]]
  $region45: #{_device_pipeline.9} parent=0
    _
  %s6 = ssub.s32 1, %s4
  %s7 = scalar_select 0, %s6, %s4
  loop: start=0, step=1, limit=4
  $region2: #{_device_pipeline.9} parent=0 // loop_pre_header
    _
  $region3: #{_device_pipeline.9} parent=0 // loop_header
    %s9 = sphi 0, %s13
    %p10 = scmp.ge.s32.totalorder %s9, 4
    %s19 = sphi 0, %s21
    %s22 = sphi 0, %s19
    %s23 = sphi 0, %s22
    %s39 = sphi 0, %s23
    %s45 = sphi 0, %s47
    %s48 = sphi 0, %s45
    %s49 = sphi 0, %s48
    %s65 = sphi 0, %s49
    %s71 = sphi 0, %s73
    %s74 = sphi 0, %s71
    %s75 = sphi 0, %s74
    %s91 = sphi 0, %s75
    %s97 = sphi 0, %s99
    %s100 = sphi 0, %s97
    %s101 = sphi 0, %s100
    %s117 = sphi 0, %s101
  $region4: #{_device_pipeline.9} parent=0 // loop_header_branch
    %12 = sbr.rel (%p10) target = $region8
  $region5: #{_device_pipeline.9} parent=0 // loop_body
    %s14 = ssub.s32 %s9, 1
    %s15 = ssub.s32 %s9, 2
    %s16 = sadd.s32 %s9, 1
    %s17 = ssub.s32 %s9, %s16
    %p18 = scmp.eq.s32.totalorder %s17, 0
    %s20 = sadd.s32 %s19, 1
    %s21 = scalar_select %p18, %s19, %s20
    %p24 = pneg %p18
    %p25 = scmp.eq.s32.totalorder %s9, 1
    %p26 = por %p24, %p25
    %p27 = scmp.ne.s32.totalorder %s19, %s22
    %p28 = scmp.eq.s32.totalorder %s9, 0
    %p29 = por %p27, %p28
    %p30 = scmp.ne.s32.totalorder %s19, %s22
    %p31 = scmp.eq.s32.totalorder %s14, 1
    %p32 = por %p30, %p31
    %p33 = scmp.ne.s32.totalorder %s22, %s23
    %p34 = scmp.eq.s32.totalorder %s14, 0
    %p35 = por %p33, %p34
    %p36 = scmp.ne.s32.totalorder %s22, %s23
    %p37 = scmp.eq.s32.totalorder %s15, 1
    %p38 = por %p36, %p37
    %p40 = scmp.ne.s32.totalorder %s23, %s39
    %p41 = scmp.eq.s32.totalorder %s15, 0
    %p42 = por %p40, %p41
    %s43 = ssub.s32 %s9, %s16
    %p44 = scmp.eq.s32.totalorder %s43, 0
    %s46 = sadd.s32 %s45, 1
    %s47 = scalar_select %p44, %s45, %s46
    %p50 = pneg %p44
    %p51 = scmp.eq.s32.totalorder %s9, 1
    %p52 = por %p50, %p51
    %p53 = scmp.ne.s32.totalorder %s45, %s48
    %p54 = scmp.eq.s32.totalorder %s9, 0
    %p55 = por %p53, %p54
    %p56 = scmp.ne.s32.totalorder %s45, %s48
    %p57 = scmp.eq.s32.totalorder %s14, 1
    %p58 = por %p56, %p57
    %p59 = scmp.ne.s32.totalorder %s48, %s49
    %p60 = scmp.eq.s32.totalorder %s14, 0
    %p61 = por %p59, %p60
    %p62 = scmp.ne.s32.totalorder %s48, %s49
    %p63 = scmp.eq.s32.totalorder %s15, 1
    %p64 = por %p62, %p63
    %p66 = scmp.ne.s32.totalorder %s49, %s65
    %p67 = scmp.eq.s32.totalorder %s15, 0
    %p68 = por %p66, %p67
    %s69 = ssub.s32 %s9, %s16
    %p70 = scmp.eq.s32.totalorder %s69, 0
    %s72 = sadd.s32 %s71, 1
    %s73 = scalar_select %p70, %s71, %s72
    %p76 = pneg %p70
    %p77 = scmp.eq.s32.totalorder %s9, 1
    %p78 = por %p76, %p77
    %p79 = scmp.ne.s32.totalorder %s71, %s74
    %p80 = scmp.eq.s32.totalorder %s9, 0
    %p81 = por %p79, %p80
    %p82 = scmp.ne.s32.totalorder %s71, %s74
    %p83 = scmp.eq.s32.totalorder %s14, 1
    %p84 = por %p82, %p83
    %p85 = scmp.ne.s32.totalorder %s74, %s75
    %p86 = scmp.eq.s32.totalorder %s14, 0
    %p87 = por %p85, %p86
    %p88 = scmp.ne.s32.totalorder %s74, %s75
    %p89 = scmp.eq.s32.totalorder %s15, 1
    %p90 = por %p88, %p89
    %p92 = scmp.ne.s32.totalorder %s75, %s91
    %p93 = scmp.eq.s32.totalorder %s15, 0
    %p94 = por %p92, %p93
    %s95 = ssub.s32 %s9, %s16
    %p96 = scmp.eq.s32.totalorder %s95, 0
    %s98 = sadd.s32 %s97, 1
    %s99 = scalar_select %p96, %s97, %s98
    %p102 = pneg %p96
    %p103 = scmp.eq.s32.totalorder %s9, 1
    %p104 = por %p102, %p103
    %p105 = scmp.ne.s32.totalorder %s97, %s100
    %p106 = scmp.eq.s32.totalorder %s9, 0
    %p107 = por %p105, %p106
    %p108 = scmp.ne.s32.totalorder %s97, %s100
    %p109 = scmp.eq.s32.totalorder %s14, 1
    %p110 = por %p108, %p109
    %p111 = scmp.ne.s32.totalorder %s100, %s101
    %p112 = scmp.eq.s32.totalorder %s14, 0
    %p113 = por %p111, %p112
    %p114 = scmp.ne.s32.totalorder %s100, %s101
    %p115 = scmp.eq.s32.totalorder %s15, 1
    %p116 = por %p114, %p115
    %p118 = scmp.ne.s32.totalorder %s101, %s117
    %p119 = scmp.eq.s32.totalorder %s15, 0
    %p120 = por %p118, %p119
    %p121 = scmp.le.s32.totalorder 1, %s9
    %p122 = scmp.lt.s32.totalorder %s9, 3
    %p123 = pnand %p121, %p122
    %p124 = pneg %p123
    // Predicated region
    $region9: #{_device_pipeline.9} parent=5 // pred_check
      _
    $region10: #{_device_pipeline.9} parent=5 // pred_check_branch
      %126 = sbr.rel (%p123) target = $region12
    $region11: #{_device_pipeline.9} parent=5 // pred_region
      %s127 = ssub.s32 %s9, 1
    $region12: #{_device_pipeline.9} parent=5 // pred_fallthru
      _
    %p128 = scmp.lt.s32.totalorder %s9, 2
    // Predicated region
    $region13: #{_device_pipeline.9} parent=5 // pred_check
      %p129 = pneg %p128
    $region14: #{_device_pipeline.9} parent=5 // pred_check_branch
      %131 = sbr.rel (%p129) target = $region16
    $region15: #{_device_pipeline.9} parent=5 // pred_region
      // Predicated region
      $region17: #{_device_pipeline.9} parent=15 // pred_check
        %p132 = pneg %p29
      $region18: #{_device_pipeline.9} parent=15 // pred_check_branch
        %134 = sbr.rel (%p132) target = $region20
      $region19: #{_device_pipeline.9} parent=15 // pred_region
        %p135 = scmp.lt.s32.totalorder %s9, 1
        %s136 = scalar_select %p135, %s9, 1
        %s137 = smul.addr %s136, 8
        %s138 = scalar_lea.vmem %s0, %s137
      $region20: #{_device_pipeline.9} parent=15 // pred_fallthru
        _
      // Predicated region
      $region21: #{_device_pipeline.9} parent=15 // pred_check
        %p139 = pneg %p55
      $region22: #{_device_pipeline.9} parent=15 // pred_check_branch
        %141 = sbr.rel (%p139) target = $region24
      $region23: #{_device_pipeline.9} parent=15 // pred_region
        %p142 = scmp.lt.s32.totalorder %s9, 1
        %s143 = scalar_select %p142, %s9, 1
        %s144 = smul.addr %s143, 8
        %s145 = scalar_lea.vmem %s1, %s144
      $region24: #{_device_pipeline.9} parent=15 // pred_fallthru
        _
      // Predicated region
      $region25: #{_device_pipeline.9} parent=15 // pred_check
        %p146 = pneg %p81
      $region26: #{_device_pipeline.9} parent=15 // pred_check_branch
        %148 = sbr.rel (%p146) target = $region28
      $region27: #{_device_pipeline.9} parent=15 // pred_region
        %p149 = scmp.lt.s32.totalorder %s9, 1
        %s150 = scalar_select %p149, %s9, 1
        %s151 = smul.addr %s150, 8
        %s152 = scalar_lea.vmem %s2, %s151
      $region28: #{_device_pipeline.9} parent=15 // pred_fallthru
        _
    $region16: #{_device_pipeline.9} parent=5 // pred_fallthru
      _
    %p153 = scmp.le.s32.totalorder 1, %s9
    %p154 = scmp.lt.s32.totalorder %s9, 3
    %p155 = pnand %p153, %p154
    %p156 = pneg %p155
    // Predicated region
    $region29: #{_device_pipeline.9} parent=5 // pred_check
      _
    $region30: #{_device_pipeline.9} parent=5 // pred_check_branch
      %158 = sbr.rel (%p155) target = $region32
    $region31: #{_device_pipeline.9} parent=5 // pred_region
      %s159 = ssub.s32 %s9, 1
      %p160 = scmp.lt.s32.totalorder %s14, 1
      %s161 = scalar_select %p160, %s14, 1
      %s162 = smul.addr %s161, 8
      %s163 = scalar_lea.vmem %s0, %s162
      %p164 = pneg %p35
      %p165 = pneg %p32
      %p166 = scmp.lt.s32.totalorder %s14, 1
      %s167 = scalar_select %p166, %s14, 1
      %s168 = smul.addr %s167, 8
      %s169 = scalar_lea.vmem %s1, %s168
      %p170 = pneg %p61
      %p171 = pneg %p58
      %p172 = scmp.lt.s32.totalorder %s14, 1
      %s173 = scalar_select %p172, %s14, 1
      %s174 = smul.addr %s173, 8
      %s175 = scalar_lea.vmem %s2, %s174
      %p176 = pneg %p87
      %p177 = pneg %p84
      %p178 = pneg %p113
      %p179 = pneg %p110
      %p180 = scmp.lt.s32.totalorder %s14, 1
      %s181 = scalar_select %p180, %s14, 1
      %s182 = scalar_lea.vmem %s3, %s181
      %p183 = scmp.lt.s32.totalorder %s14, 1
      %s184 = scalar_select %p183, %s14, 1
      %s185 = smul.addr %s184, 8
      %s186 = scalar_lea.vmem %s0, %s185
      %p187 = scmp.lt.s32.totalorder %s14, 1
      %s188 = scalar_select %p187, %s14, 1
      %s189 = smul.addr %s188, 8
      %s190 = scalar_lea.vmem %s1, %s189
      %p191 = scmp.lt.s32.totalorder %s14, 1
      %s192 = scalar_select %p191, %s14, 1
      %s193 = smul.addr %s192, 8
      %s194 = scalar_lea.vmem %s2, %s193
      %p195 = scmp.lt.s32.totalorder %s14, 1
      %s196 = scalar_select %p195, %s14, 1
      %s197 = scalar_lea.vmem %s3, %s196
      %v198 = vld [vmem:[%s194] sm:$0xff]
      %vm199 = vcmp.gt.f32.partialorder %v198, 0.0
      %v200 = vld [vmem:[%s186] sm:$0xff]
      %v201 = vmul.f32 %v200, 0.5
      %v202 = vsel %vm199, %v201, -1e+30
      %v203 = vld [vmem:[%s190] sm:$0xff]
      %v204 = vmul.f32 %v203, 0.5
      %v205 = vsel %vm199, %v204, -1e+30
      %206 = vmax.xlane.f32.xlu0 %v202
      %v207 = vpop.xlane.xlu0 %206
      %v208 = vsub.f32 %v202, %v207
      %v209 = vmul.f32 %v208, 1.442695
      %v210 = vpow.pop %v209
      %211 = vadd.xlane.f32.xlu0 %v210
      %v212 = vpop.xlane.xlu0 %211
      %v213 = vrcp.pop %v212
      %v214 = vmul.f32 %v210, %v213
      %v215 = vlog2.pop %v212
      %v216 = vmul.f32 %v215, 0.6931472
      %v217 = vsub.f32 %v208, %v216
      %218 = vmax.xlane.f32.xlu0 %v205
      %v219 = vpop.xlane.xlu0 %218
      %v220 = vsub.f32 %v205, %v219
      %v221 = vmul.f32 %v220, 1.442695
      %v222 = vpow.pop %v221
      %223 = vadd.xlane.f32.xlu0 %v222
      %v224 = vpop.xlane.xlu0 %223
      %v225 = vlog2.pop %v224
      %v226 = vmul.f32 %v225, 0.6931472
      %v227 = vsub.f32 %v220, %v226
      %v228 = vmul.f32 %v198, %v214
      %v229 = vsub.f32 %v217, %v227
      %v230 = vmul.f32 %v228, %v229
      %231 = vadd.xlane.f32.xlu0 %v230
      %v232 = vpop.xlane.xlu0 %231
      %v233 = vrot.slane %v232, 4
      %v234 = vadd.f32 %v232, %v233
      %v235 = vrot.slane %v234, 2
      %v236 = vadd.f32 %v234, %v235
      %v237 = vrot.slane %v236, 1
      %v238 = vadd.f32 %v236, %v237
      %vm239 = vcmask 0
      %240 = vst.msk [vmem:[%s197] sm:$0x1] %vm239, %v238
      %p241 = scmp.lt.s32.totalorder %s14, 1
      %s242 = scalar_select %p241, %s14, 1
      %s243 = scalar_lea.vmem %s3, %s242
      // Predicated region
      $region33: #{_device_pipeline.9} parent=31 // pred_check
        %p244 = pneg %p110
      $region34: #{_device_pipeline.9} parent=31 // pred_check_branch
        %246 = sbr.rel (%p244) target = $region36
      $region35: #{_device_pipeline.9} parent=31 // pred_region
        _
      $region36: #{_device_pipeline.9} parent=31 // pred_fallthru
        _
    $region32: #{_device_pipeline.9} parent=5 // pred_fallthru
      _
    %p247 = scmp.le.s32.totalorder 2, %s9
    // Predicated region
    $region37: #{_device_pipeline.9} parent=5 // pred_check
      %p248 = pneg %p247
    $region38: #{_device_pipeline.9} parent=5 // pred_check_branch
      %250 = sbr.rel (%p248) target = $region40
    $region39: #{_device_pipeline.9} parent=5 // pred_region
      %s251 = ssub.s32 %s9, 2
      // Predicated region
      $region41: #{_device_pipeline.9} parent=39 // pred_check
        %p252 = pneg %p116
      $region42: #{_device_pipeline.9} parent=39 // pred_check_branch
        %254 = sbr.rel (%p252) target = $region44
      $region43: #{_device_pipeline.9} parent=39 // pred_region
        %p255 = scmp.lt.s32.totalorder %s15, 1
        %s256 = scalar_select %p255, %s15, 1
        %s257 = scalar_lea.vmem %s3, %s256
      $region44: #{_device_pipeline.9} parent=39 // pred_fallthru
        _
    $region40: #{_device_pipeline.9} parent=5 // pred_fallthru
      _
  $region6: #{_device_pipeline.9} parent=0 // loop_footer
    %s13 = sadd.s32 1, %s9
  $region7: #{_device_pipeline.9} parent=0 // loop_footer_branch
    %8 = sbr.rel target = $region3
  $region8: #{_device_pipeline.9} parent=0 // loop_exit
    _

</llo_original>
